<compile_context>
chip_gen: v5e
topology: v5e:2x2
jax: 0.10.0
libtpu: 0.0.40
codegen_flags: <defaults>
</compile_context>

<pallas_src>
import math

import jax
import jax.numpy as jnp
from jax.experimental import pallas as pl
from jax.experimental.pallas import tpu as pltpu


def _decoder_kernel(x_ref,
                    w1_ref, b1_ref,
                    w2_ref, b2_ref,
                    w3_ref, b3_ref,
                    w4_ref, b4_ref,
                    o_ref):
    """Fused 4-layer MLP: all intermediates stay on-chip, single kernel body."""
    h = jnp.dot(x_ref[...], w1_ref[...], preferred_element_type=jnp.float32) + b1_ref[...]
    h = jnp.maximum(h, 0.0)
    h = jnp.dot(h, w2_ref[...], preferred_element_type=jnp.float32) + b2_ref[...]
    h = jnp.maximum(h, 0.0)
    h = jnp.dot(h, w3_ref[...], preferred_element_type=jnp.float32) + b3_ref[...]
    h = jnp.maximum(h, 0.0)
    o_ref[...] = (jnp.dot(h, w4_ref[...], preferred_element_type=jnp.float32)
                  + b4_ref[...]).astype(o_ref.dtype)


def decoder_forward(x, params, *, batch_block=256):
    """x: (B, feature_dim) f32 -> (B, input_dim) f32."""
    B, F = x.shape
    w1, b1 = params["w1"], params["b1"]
    w2, b2 = params["w2"], params["b2"]
    w3, b3 = params["w3"], params["b3"]
    w4, b4 = params["w4"], params["b4"]
    out_dim = w4.shape[1]

    # Batch tiling: whole batch in one block when small (block == full dim sidesteps
    # the (8,128) rule); otherwise a sublane-aligned tile with zero-padding.
    if B <= batch_block:
        bb, B_pad = B, B
    else:
        bb = batch_block                      # multiple of 8
        B_pad = pl.cdiv(B, bb) * bb
    x_in = x if B_pad == B else jnp.pad(x, ((0, B_pad - B), (0, 0)))
    grid = (B_pad // bb,)

    def _full(shape):
        n = len(shape)
        return pl.BlockSpec(shape, lambda i, _n=n: (0,) * _n)

    flops = 2 * B_pad * (w1.shape[0] * w1.shape[1] + w2.shape[0] * w2.shape[1]
                         + w3.shape[0] * w3.shape[1] + w4.shape[0] * w4.shape[1])
    bytes_accessed = 4 * (x_in.size + B_pad * out_dim
                          + sum(int(p.size) for p in (w1, b1, w2, b2, w3, b3, w4, b4)))

    out = pl.pallas_call(
        _decoder_kernel,
        out_shape=jax.ShapeDtypeStruct((B_pad, out_dim), jnp.float32),
        grid_spec=pltpu.PrefetchScalarGridSpec(
            num_scalar_prefetch=0,
            grid=grid,
            in_specs=[
                pl.BlockSpec((bb, F), lambda i: (i, 0)),   # activations: per batch tile
                _full(w1.shape), _full(b1.shape),          # weights: fully VMEM-resident,
                _full(w2.shape), _full(b2.shape),          # constant block index => DMA'd once
                _full(w3.shape), _full(b3.shape),
                _full(w4.shape), _full(b4.shape),
            ],
            out_specs=pl.BlockSpec((bb, out_dim), lambda i: (i, 0)),
        ),
        compiler_params=pltpu.CompilerParams(
            dimension_semantics=("parallel",),             # batch tiles independent (v7x 2-TC win)
            vmem_limit_bytes=32 * 1024 * 1024,
        ),
        cost_estimate=pl.CostEstimate(flops=flops, transcendentals=0,
                                      bytes_accessed=bytes_accessed),
    )(x_in, w1, b1, w2, b2, w3, b3, w4, b4)

    return out[:B] if B_pad != B else out


def init_params(key, feature_dim, input_dim):
    """nn.Linear-style init: uniform(-1/sqrt(fan_in), 1/sqrt(fan_in)); weights pre-transposed (in, out)."""
    dims = [feature_dim, 2000, 500, 500, input_dim]

    def linear(k, fan_in, fan_out):
        k1, k2 = jax.random.split(k)
        lim = 1.0 / math.sqrt(fan_in)
        w = jax.random.uniform(k1, (fan_in, fan_out), jnp.float32, -lim, lim)
        b = jax.random.uniform(k2, (1, fan_out), jnp.float32, -lim, lim)
        return w, b

    ks = jax.random.split(key, 4)
    params = {}
    for idx, k in enumerate(ks):
        w, b = linear(k, dims[idx], dims[idx + 1])
        params[f"w{idx + 1}"] = w
        params[f"b{idx + 1}"] = b
    return params


if __name__ == "__main__":
    B, FEATURE_DIM, INPUT_DIM = 8, 32, 128
    key = jax.random.PRNGKey(0)
    kx, kp = jax.random.split(key)

    x = jax.random.normal(kx, (B, FEATURE_DIM), jnp.float32)
    params = init_params(kp, FEATURE_DIM, INPUT_DIM)

    out = decoder_forward(x, params)
    jax.block_until_ready(out)
    assert out.shape == (B, INPUT_DIM)

    # Pure-JAX reference (same math as the PyTorch Sequential) for a correctness check.
    ref = x
    for i in range(1, 5):
        ref = ref @ params[f"w{i}"] + params[f"b{i}"]
        if i < 4:
            ref = jnp.maximum(ref, 0.0)
    assert jnp.allclose(out, ref, atol=1e-4, rtol=1e-4)

    print("KERNEL_OK")
</pallas_src>

<mosaic_0001>
module attributes {stable_mosaic.version = 11 : i64} {
  func.func @_decoder_kernel(%arg0: i32, %arg1: memref<8x32xf32, #tpu.memory_space<vmem>>, %arg2: memref<32x2000xf32, #tpu.memory_space<vmem>>, %arg3: memref<1x2000xf32, #tpu.memory_space<vmem>>, %arg4: memref<2000x500xf32, #tpu.memory_space<vmem>>, %arg5: memref<1x500xf32, #tpu.memory_space<vmem>>, %arg6: memref<500x500xf32, #tpu.memory_space<vmem>>, %arg7: memref<1x500xf32, #tpu.memory_space<vmem>>, %arg8: memref<500x128xf32, #tpu.memory_space<vmem>>, %arg9: memref<1x128xf32, #tpu.memory_space<vmem>>, %arg10: memref<8x128xf32, #tpu.memory_space<vmem>>) attributes {dimension_semantics = [#tpu.dimension_semantics<parallel>], iteration_bounds = array<i64: 1>, scalar_prefetch = 0 : i64, scratch_operands = 0 : i64, tpu.core_type = #tpu.core_type<tc>, window_params = [{transform_indices = @transform_0, window_bounds = array<i64: 8, 32>}, {pipeline_mode = #tpu.pipeline_mode<synchronous>, transform_indices = @transform_1, window_bounds = array<i64: 32, 2000>}, {pipeline_mode = #tpu.pipeline_mode<synchronous>, transform_indices = @transform_2, window_bounds = array<i64: 1, 2000>}, {pipeline_mode = #tpu.pipeline_mode<synchronous>, transform_indices = @transform_3, window_bounds = array<i64: 2000, 500>}, {pipeline_mode = #tpu.pipeline_mode<synchronous>, transform_indices = @transform_4, window_bounds = array<i64: 1, 500>}, {pipeline_mode = #tpu.pipeline_mode<synchronous>, transform_indices = @transform_5, window_bounds = array<i64: 500, 500>}, {pipeline_mode = #tpu.pipeline_mode<synchronous>, transform_indices = @transform_6, window_bounds = array<i64: 1, 500>}, {pipeline_mode = #tpu.pipeline_mode<synchronous>, transform_indices = @transform_7, window_bounds = array<i64: 500, 128>}, {pipeline_mode = #tpu.pipeline_mode<synchronous>, transform_indices = @transform_8, window_bounds = array<i64: 1, 128>}, {transform_indices = @transform_9, window_bounds = array<i64: 8, 128>}]} {
    %c0 = arith.constant 0 : index
    %c0_0 = arith.constant 0 : index
    %0 = vector.load %arg1[%c0, %c0_0] : memref<8x32xf32, #tpu.memory_space<vmem>>, vector<8x32xf32>
    %c0_1 = arith.constant 0 : index
    %c0_2 = arith.constant 0 : index
    %1 = vector.load %arg2[%c0_1, %c0_2] : memref<32x2000xf32, #tpu.memory_space<vmem>>, vector<32x2000xf32>
    %cst = arith.constant dense<0.000000e+00> : vector<8x2000xf32>
    %2 = tpu.matmul %0, %1, %cst {dimension_numbers = #tpu.dot_dimension_numbers<[1], [0], [0], [1], [0, 0, 1, 1], [], []>} : vector<8x32xf32>, vector<32x2000xf32>, vector<8x2000xf32> -> vector<8x2000xf32>
    %c0_3 = arith.constant 0 : index
    %c0_4 = arith.constant 0 : index
    %3 = vector.load %arg3[%c0_3, %c0_4] : memref<1x2000xf32, #tpu.memory_space<vmem>>, vector<1x2000xf32>
    %4 = vector.broadcast %3 : vector<1x2000xf32> to vector<8x2000xf32>
    %5 = arith.addf %2, %4 : vector<8x2000xf32>
    %cst_5 = arith.constant 0.000000e+00 : f32
    %6 = vector.broadcast %cst_5 : f32 to vector<8x2000xf32>
    %7 = arith.maximumf %5, %6 : vector<8x2000xf32>
    %c0_6 = arith.constant 0 : index
    %c0_7 = arith.constant 0 : index
    %8 = vector.load %arg4[%c0_6, %c0_7] : memref<2000x500xf32, #tpu.memory_space<vmem>>, vector<2000x500xf32>
    %cst_8 = arith.constant dense<0.000000e+00> : vector<8x500xf32>
    %9 = tpu.matmul %7, %8, %cst_8 {dimension_numbers = #tpu.dot_dimension_numbers<[1], [0], [0], [1], [0, 0, 1, 1], [], []>} : vector<8x2000xf32>, vector<2000x500xf32>, vector<8x500xf32> -> vector<8x500xf32>
    %c0_9 = arith.constant 0 : index
    %c0_10 = arith.constant 0 : index
    %10 = vector.load %arg5[%c0_9, %c0_10] : memref<1x500xf32, #tpu.memory_space<vmem>>, vector<1x500xf32>
    %11 = vector.broadcast %10 : vector<1x500xf32> to vector<8x500xf32>
    %12 = arith.addf %9, %11 : vector<8x500xf32>
    %cst_11 = arith.constant 0.000000e+00 : f32
    %13 = vector.broadcast %cst_11 : f32 to vector<8x500xf32>
    %14 = arith.maximumf %12, %13 : vector<8x500xf32>
    %c0_12 = arith.constant 0 : index
    %c0_13 = arith.constant 0 : index
    %15 = vector.load %arg6[%c0_12, %c0_13] : memref<500x500xf32, #tpu.memory_space<vmem>>, vector<500x500xf32>
    %cst_14 = arith.constant dense<0.000000e+00> : vector<8x500xf32>
    %16 = tpu.matmul %14, %15, %cst_14 {dimension_numbers = #tpu.dot_dimension_numbers<[1], [0], [0], [1], [0, 0, 1, 1], [], []>} : vector<8x500xf32>, vector<500x500xf32>, vector<8x500xf32> -> vector<8x500xf32>
    %c0_15 = arith.constant 0 : index
    %c0_16 = arith.constant 0 : index
    %17 = vector.load %arg7[%c0_15, %c0_16] : memref<1x500xf32, #tpu.memory_space<vmem>>, vector<1x500xf32>
    %18 = vector.broadcast %17 : vector<1x500xf32> to vector<8x500xf32>
    %19 = arith.addf %16, %18 : vector<8x500xf32>
    %cst_17 = arith.constant 0.000000e+00 : f32
    %20 = vector.broadcast %cst_17 : f32 to vector<8x500xf32>
    %21 = arith.maximumf %19, %20 : vector<8x500xf32>
    %c0_18 = arith.constant 0 : index
    %c0_19 = arith.constant 0 : index
    %22 = vector.load %arg8[%c0_18, %c0_19] : memref<500x128xf32, #tpu.memory_space<vmem>>, vector<500x128xf32>
    %cst_20 = arith.constant dense<0.000000e+00> : vector<8x128xf32>
    %23 = tpu.matmul %21, %22, %cst_20 {dimension_numbers = #tpu.dot_dimension_numbers<[1], [0], [0], [1], [0, 0, 1, 1], [], []>} : vector<8x500xf32>, vector<500x128xf32>, vector<8x128xf32> -> vector<8x128xf32>
    %c0_21 = arith.constant 0 : index
    %c0_22 = arith.constant 0 : index
    %24 = vector.load %arg9[%c0_21, %c0_22] : memref<1x128xf32, #tpu.memory_space<vmem>>, vector<1x128xf32>
    %25 = vector.broadcast %24 : vector<1x128xf32> to vector<8x128xf32>
    %26 = arith.addf %23, %25 : vector<8x128xf32>
    %c0_23 = arith.constant 0 : index
    %c0_24 = arith.constant 0 : index
    %27 = vector.load %arg10[%c0_23, %c0_24] : memref<8x128xf32, #tpu.memory_space<vmem>>, vector<8x128xf32>
    tpu.vector_store %arg10[%c0_23, %c0_24], %26 {strides = array<i32>} : memref<8x128xf32, #tpu.memory_space<vmem>>, vector<8x128xf32>,
    return
  }
  func.func @transform_0(%arg0: i32) -> (i32, i32) {
    %c0_i32 = arith.constant 0 : i32
    %c0_i32_0 = arith.constant 0 : i32
    return %arg0, %c0_i32 : i32, i32
  }
  func.func @transform_1(%arg0: i32) -> (i32, i32) {
    %c0_i32 = arith.constant 0 : i32
    %c0_i32_0 = arith.constant 0 : i32
    %c0_i32_1 = arith.constant 0 : i32
    return %c0_i32, %c0_i32_0 : i32, i32
  }
  func.func @transform_2(%arg0: i32) -> (i32, i32) {
    %c0_i32 = arith.constant 0 : i32
    %c0_i32_0 = arith.constant 0 : i32
    %c0_i32_1 = arith.constant 0 : i32
    return %c0_i32, %c0_i32_0 : i32, i32
  }
  func.func @transform_3(%arg0: i32) -> (i32, i32) {
    %c0_i32 = arith.constant 0 : i32
    %c0_i32_0 = arith.constant 0 : i32
    %c0_i32_1 = arith.constant 0 : i32
    return %c0_i32, %c0_i32_0 : i32, i32
  }
  func.func @transform_4(%arg0: i32) -> (i32, i32) {
    %c0_i32 = arith.constant 0 : i32
    %c0_i32_0 = arith.constant 0 : i32
    %c0_i32_1 = arith.constant 0 : i32
    return %c0_i32, %c0_i32_0 : i32, i32
  }
  func.func @transform_5(%arg0: i32) -> (i32, i32) {
    %c0_i32 = arith.constant 0 : i32
    %c0_i32_0 = arith.constant 0 : i32
    %c0_i32_1 = arith.constant 0 : i32
    return %c0_i32, %c0_i32_0 : i32, i32
  }
  func.func @transform_6(%arg0: i32) -> (i32, i32) {
    %c0_i32 = arith.constant 0 : i32
    %c0_i32_0 = arith.constant 0 : i32
    %c0_i32_1 = arith.constant 0 : i32
    return %c0_i32, %c0_i32_0 : i32, i32
  }
  func.func @transform_7(%arg0: i32) -> (i32, i32) {
    %c0_i32 = arith.constant 0 : i32
    %c0_i32_0 = arith.constant 0 : i32
    %c0_i32_1 = arith.constant 0 : i32
    return %c0_i32, %c0_i32_0 : i32, i32
  }
  func.func @transform_8(%arg0: i32) -> (i32, i32) {
    %c0_i32 = arith.constant 0 : i32
    %c0_i32_0 = arith.constant 0 : i32
    %c0_i32_1 = arith.constant 0 : i32
    return %c0_i32, %c0_i32_0 : i32, i32
  }
  func.func @transform_9(%arg0: i32) -> (i32, i32) {
    %c0_i32 = arith.constant 0 : i32
    %c0_i32_0 = arith.constant 0 : i32
    return %arg0, %c0_i32 : i32, i32
  }
}

</mosaic_0001>

<llo_original>
// kernel: tpu_custom_call.1
$region0: #{tpu_custom_call.1}
  #allocation0 [shape = 'u32[]', space=smem, size = 0x4, offset = 0x4, fixed_abs, tag = 'smem constant byte address 0x4 - core index']
  #allocation1 [shape = 'u32[72,128]{1,0:T(1,128)}', space=vmem, size = 0x9000, scoped, tag = 'internal scratch']
  %s0 = inlined_call_operand.hbm [shape: f32[8,32], index: 0, kind: input, shape index: {}]
  %s1 = inlined_call_operand.hbm [shape: f32[32,2000], index: 1, kind: input, shape index: {}]
  %s2 = inlined_call_operand.hbm [shape: f32[1,2000], index: 2, kind: input, shape index: {}]
  %s3 = inlined_call_operand.hbm [shape: f32[2000,500], index: 3, kind: input, shape index: {}]
  %s4 = inlined_call_operand.hbm [shape: f32[1,500], index: 4, kind: input, shape index: {}]
  %s5 = inlined_call_operand.hbm [shape: f32[500,500], index: 5, kind: input, shape index: {}]
  %s6 = inlined_call_operand.hbm [shape: f32[1,500], index: 6, kind: input, shape index: {}]
  %s7 = inlined_call_operand.hbm [shape: f32[500,128], index: 7, kind: input, shape index: {}]
  %s8 = inlined_call_operand.hbm [shape: f32[1,128], index: 8, kind: input, shape index: {}]
  %s9 = inlined_call_operand.hbm [shape: f32[8,128], index: 9, kind: output, shape index: {}]
  %s10 = sld [smem:[#allocation0]]
  $region82: #{tpu_custom_call.1} parent=0
    _
  %s12 = ssub.s32 1, %s10
  %s13 = scalar_select 0, %s12, %s10
  $region1: #{tpu_custom_call.1} parent=0
    #allocation2 [shape = 'u8[4096]{0}', space=vmem, size = 0x1000, scoped, tag = 'input window, operand 0, single buffered']
    #allocation3 [shape = 's32[1]{0}', space=sflag, size = 0x4, scoped, tag = 'scoped memory for tpu_custom_call.1']
    #allocation4 [shape = 's32[1]{0}', space=sflag, size = 0x4, scoped, tag = 'scoped memory for tpu_custom_call.1']
    #allocation5 [shape = 'u8[262144]{0}', space=vmem, size = 0x40000, scoped, tag = 'input window, operand 1, single buffered']
    #allocation6 [shape = 's32[1]{0}', space=sflag, size = 0x4, scoped, tag = 'scoped memory for tpu_custom_call.1']
    #allocation7 [shape = 'u8[8192]{0}', space=vmem, size = 0x2000, scoped, tag = 'input window, operand 2, single buffered']
    #allocation8 [shape = 'u8[4096000]{0}', space=vmem, size = 0x3e8000, scoped, tag = 'input window, operand 3, single buffered']
    #allocation9 [shape = 's32[1]{0}', space=sflag, size = 0x4, scoped, tag = 'scoped memory for tpu_custom_call.1']
    #allocation10 [shape = 'u8[2048]{0}', space=vmem, size = 0x800, scoped, tag = 'input window, operand 4, single buffered']
    #allocation11 [shape = 'u8[1032192]{0}', space=vmem, size = 0xfc000, scoped, tag = 'input window, operand 5, single buffered']
    #allocation12 [shape = 's32[1]{0}', space=sflag, size = 0x4, scoped, tag = 'scoped memory for tpu_custom_call.1']
    #allocation13 [shape = 'u8[2048]{0}', space=vmem, size = 0x800, scoped, tag = 'input window, operand 6, single buffered']
    #allocation14 [shape = 'u8[258048]{0}', space=vmem, size = 0x3f000, scoped, tag = 'input window, operand 7, single buffered']
    #allocation15 [shape = 's32[1]{0}', space=sflag, size = 0x4, scoped, tag = 'scoped memory for tpu_custom_call.1']
    #allocation16 [shape = 'u8[512]{0}', space=vmem, size = 0x400, scoped, tag = 'input window, operand 8, single buffered']
    #allocation17 [shape = 'u8[4096]{0}', space=vmem, size = 0x1000, scoped, tag = 'output window, operand 0, single buffered']
    %14 = vsyncpa [#allocation3], 0
    %15 = vsyncpa [#allocation6], 0
    %16 = vsyncpa [#allocation9], 0
    %17 = vsyncpa [#allocation12], 0
    %18 = vsyncpa [#allocation15], 0
    %19 = vsyncpa [#allocation4], 0
    // Predicated region
    $region2: #{tpu_custom_call.1} parent=1 // pred_check
      _
    $region3: #{tpu_custom_call.1} parent=1 // pred_check_branch
      %21 = sbr.rel (0) target = $region5
    $region4: #{tpu_custom_call.1} parent=1 // pred_region
      %23 = vsyncadd [#allocation3], 0
      %s25 = sshll.u32 %s0, 4
      %s26 = int_to_ptr.hbm [resolvable:$true] %s25
      %s27 = sshll.u32 [#allocation2], 4
      %s28 = int_to_ptr.vmem [resolvable:$true] %s27
      %30 = dma.hbm_to_vmem [thread:$0]  %s26, 128, %s28, [#allocation3]
    $region5: #{tpu_custom_call.1} parent=1 // pred_fallthru
      _
    // Predicated region
    $region6: #{tpu_custom_call.1} parent=1 // pred_check
      _
    $region7: #{tpu_custom_call.1} parent=1 // pred_check_branch
      %32 = sbr.rel (0) target = $region9
    $region8: #{tpu_custom_call.1} parent=1 // pred_region
      %34 = vsyncadd [#allocation6], 0
      %s35 = sshll.u32 %s1, 4
      %s36 = int_to_ptr.hbm [resolvable:$true] %s35
      %s37 = sshll.u32 [#allocation5], 4
      %s38 = int_to_ptr.vmem [resolvable:$true] %s37
      %43 = dma.hbm_to_vmem [thread:$0]  %s36, 8192, %s38, [#allocation6], 2048, 2048, 128
    $region9: #{tpu_custom_call.1} parent=1 // pred_fallthru
      _
    // Predicated region
    $region10: #{tpu_custom_call.1} parent=1 // pred_check
      _
    $region11: #{tpu_custom_call.1} parent=1 // pred_check_branch
      %45 = sbr.rel (0) target = $region13
    $region12: #{tpu_custom_call.1} parent=1 // pred_region
      %47 = vsyncadd [#allocation6], 0
      %s49 = sshll.u32 %s2, 4
      %s50 = int_to_ptr.hbm [resolvable:$true] %s49
      %s51 = sshll.u32 [#allocation7], 4
      %s52 = int_to_ptr.vmem [resolvable:$true] %s51
      %54 = dma.hbm_to_vmem [thread:$0]  %s50, 256, %s52, [#allocation6]
    $region13: #{tpu_custom_call.1} parent=1 // pred_fallthru
      _
    // Predicated region
    $region14: #{tpu_custom_call.1} parent=1 // pred_check
      _
    $region15: #{tpu_custom_call.1} parent=1 // pred_check_branch
      %56 = sbr.rel (0) target = $region17
    $region16: #{tpu_custom_call.1} parent=1 // pred_region
      %58 = vsyncadd [#allocation9], 0
      %s59 = sshll.u32 %s3, 4
      %s60 = int_to_ptr.hbm [resolvable:$true] %s59
      %s61 = sshll.u32 [#allocation8], 4
      %s62 = int_to_ptr.vmem [resolvable:$true] %s61
      %67 = dma.hbm_to_vmem [thread:$0]  %s60, 128000, %s62, [#allocation9], 512, 512, 32
    $region17: #{tpu_custom_call.1} parent=1 // pred_fallthru
      _
    // Predicated region
    $region18: #{tpu_custom_call.1} parent=1 // pred_check
      _
    $region19: #{tpu_custom_call.1} parent=1 // pred_check_branch
      %69 = sbr.rel (0) target = $region21
    $region20: #{tpu_custom_call.1} parent=1 // pred_region
      %71 = vsyncadd [#allocation9], 0
      %s73 = sshll.u32 %s4, 4
      %s74 = int_to_ptr.hbm [resolvable:$true] %s73
      %s75 = sshll.u32 [#allocation10], 4
      %s76 = int_to_ptr.vmem [resolvable:$true] %s75
      %78 = dma.hbm_to_vmem [thread:$0]  %s74, 64, %s76, [#allocation9]
    $region21: #{tpu_custom_call.1} parent=1 // pred_fallthru
      _
    // Predicated region
    $region22: #{tpu_custom_call.1} parent=1 // pred_check
      _
    $region23: #{tpu_custom_call.1} parent=1 // pred_check_branch
      %80 = sbr.rel (0) target = $region25
    $region24: #{tpu_custom_call.1} parent=1 // pred_region
      %82 = vsyncadd [#allocation12], 0
      %s83 = sshll.u32 %s5, 4
      %s84 = int_to_ptr.hbm [resolvable:$true] %s83
      %s85 = sshll.u32 [#allocation11], 4
      %s86 = int_to_ptr.vmem [resolvable:$true] %s85
      %91 = dma.hbm_to_vmem [thread:$0]  %s84, 32256, %s86, [#allocation12], 512, 512, 32
    $region25: #{tpu_custom_call.1} parent=1 // pred_fallthru
      _
    // Predicated region
    $region26: #{tpu_custom_call.1} parent=1 // pred_check
      _
    $region27: #{tpu_custom_call.1} parent=1 // pred_check_branch
      %93 = sbr.rel (0) target = $region29
    $region28: #{tpu_custom_call.1} parent=1 // pred_region
      %95 = vsyncadd [#allocation12], 0
      %s97 = sshll.u32 %s6, 4
      %s98 = int_to_ptr.hbm [resolvable:$true] %s97
      %s99 = sshll.u32 [#allocation13], 4
      %s100 = int_to_ptr.vmem [resolvable:$true] %s99
      %102 = dma.hbm_to_vmem [thread:$0]  %s98, 64, %s100, [#allocation12]
    $region29: #{tpu_custom_call.1} parent=1 // pred_fallthru
      _
    // Predicated region
    $region30: #{tpu_custom_call.1} parent=1 // pred_check
      _
    $region31: #{tpu_custom_call.1} parent=1 // pred_check_branch
      %104 = sbr.rel (0) target = $region33
    $region32: #{tpu_custom_call.1} parent=1 // pred_region
      %106 = vsyncadd [#allocation15], 0
      %s107 = sshll.u32 %s7, 4
      %s108 = int_to_ptr.hbm [resolvable:$true] %s107
      %s109 = sshll.u32 [#allocation14], 4
      %s110 = int_to_ptr.vmem [resolvable:$true] %s109
      %115 = dma.hbm_to_vmem [thread:$0]  %s108, 8064, %s110, [#allocation15], 128, 128, 8
    $region33: #{tpu_custom_call.1} parent=1 // pred_fallthru
      _
    // Predicated region
    $region34: #{tpu_custom_call.1} parent=1 // pred_check
      _
    $region35: #{tpu_custom_call.1} parent=1 // pred_check_branch
      %117 = sbr.rel (0) target = $region37
    $region36: #{tpu_custom_call.1} parent=1 // pred_region
      %119 = vsyncadd [#allocation15], 0
      %s121 = sshll.u32 %s8, 4
      %s122 = int_to_ptr.hbm [resolvable:$true] %s121
      %s123 = sshll.u32 [#allocation16], 4
      %s124 = int_to_ptr.vmem [resolvable:$true] %s123
      %126 = dma.hbm_to_vmem [thread:$0]  %s122, 16, %s124, [#allocation15]
    $region37: #{tpu_custom_call.1} parent=1 // pred_fallthru
      _
    // Predicated region
    $region38: #{tpu_custom_call.1} parent=1 // pred_check
      _
    $region39: #{tpu_custom_call.1} parent=1 // pred_check_branch
      %128 = sbr.rel (0) target = $region41
    $region40: #{tpu_custom_call.1} parent=1 // pred_region
      %130 = dma.done [#allocation3], 128
    $region41: #{tpu_custom_call.1} parent=1 // pred_fallthru
      _
    // Predicated region
    $region42: #{tpu_custom_call.1} parent=1 // pred_check
      _
    $region43: #{tpu_custom_call.1} parent=1 // pred_check_branch
      %132 = sbr.rel (0) target = $region45
    $region44: #{tpu_custom_call.1} parent=1 // pred_region
      %134 = dma.done [#allocation6], 8192
    $region45: #{tpu_custom_call.1} parent=1 // pred_fallthru
      _
    // Predicated region
    $region46: #{tpu_custom_call.1} parent=1 // pred_check
      _
    $region47: #{tpu_custom_call.1} parent=1 // pred_check_branch
      %136 = sbr.rel (0) target = $region49
    $region48: #{tpu_custom_call.1} parent=1 // pred_region
      %138 = dma.done [#allocation6], 256
    $region49: #{tpu_custom_call.1} parent=1 // pred_fallthru
      _
    // Predicated region
    $region50: #{tpu_custom_call.1} parent=1 // pred_check
      _
    $region51: #{tpu_custom_call.1} parent=1 // pred_check_branch
      %140 = sbr.rel (0) target = $region53
    $region52: #{tpu_custom_call.1} parent=1 // pred_region
      %142 = dma.done [#allocation9], 128000
    $region53: #{tpu_custom_call.1} parent=1 // pred_fallthru
      _
    // Predicated region
    $region54: #{tpu_custom_call.1} parent=1 // pred_check
      _
    $region55: #{tpu_custom_call.1} parent=1 // pred_check_branch
      %144 = sbr.rel (0) target = $region57
    $region56: #{tpu_custom_call.1} parent=1 // pred_region
      %146 = dma.done [#allocation9], 64
    $region57: #{tpu_custom_call.1} parent=1 // pred_fallthru
      _
    // Predicated region
    $region58: #{tpu_custom_call.1} parent=1 // pred_check
      _
    $region59: #{tpu_custom_call.1} parent=1 // pred_check_branch
      %148 = sbr.rel (0) target = $region61
    $region60: #{tpu_custom_call.1} parent=1 // pred_region
      %150 = dma.done [#allocation12], 32256
    $region61: #{tpu_custom_call.1} parent=1 // pred_fallthru
      _
    // Predicated region
    $region62: #{tpu_custom_call.1} parent=1 // pred_check
      _
    $region63: #{tpu_custom_call.1} parent=1 // pred_check_branch
      %152 = sbr.rel (0) target = $region65
    $region64: #{tpu_custom_call.1} parent=1 // pred_region
      %154 = dma.done [#allocation12], 64
    $region65: #{tpu_custom_call.1} parent=1 // pred_fallthru
      _
    // Predicated region
    $region66: #{tpu_custom_call.1} parent=1 // pred_check
      _
    $region67: #{tpu_custom_call.1} parent=1 // pred_check_branch
      %156 = sbr.rel (0) target = $region69
    $region68: #{tpu_custom_call.1} parent=1 // pred_region
      %158 = dma.done [#allocation15], 8064
    $region69: #{tpu_custom_call.1} parent=1 // pred_fallthru
      _
    // Predicated region
    $region70: #{tpu_custom_call.1} parent=1 // pred_check
      _
    $region71: #{tpu_custom_call.1} parent=1 // pred_check_branch
      %160 = sbr.rel (0) target = $region73
    $region72: #{tpu_custom_call.1} parent=1 // pred_region
      %162 = dma.done [#allocation15], 16
    $region73: #{tpu_custom_call.1} parent=1 // pred_fallthru
      _
    %v163 = vld [vmem:[#allocation2] sm:$0xff]
    %v164 = vld [vmem:[#allocation5] sm:$0xff]
    %v165 = vld [vmem:[#allocation5 + $0x8] sm:$0xff]
    %v166 = vld [vmem:[#allocation5 + $0x10] sm:$0xff]
    %v167 = vld [vmem:[#allocation5 + $0x18] sm:$0xff]
    %v168 = vld [vmem:[#allocation5 + $0x20] sm:$0xff]
    %v169 = vld [vmem:[#allocation5 + $0x28] sm:$0xff]
    %v170 = vld [vmem:[#allocation5 + $0x30] sm:$0xff]
    %v171 = vld [vmem:[#allocation5 + $0x38] sm:$0xff]
    %v172 = vld [vmem:[#allocation5 + $0x40] sm:$0xff]
    %v173 = vld [vmem:[#allocation5 + $0x48] sm:$0xff]
    %v174 = vld [vmem:[#allocation5 + $0x50] sm:$0xff]
    %v175 = vld [vmem:[#allocation5 + $0x58] sm:$0xff]
    %v176 = vld [vmem:[#allocation5 + $0x60] sm:$0xff]
    %v177 = vld [vmem:[#allocation5 + $0x68] sm:$0xff]
    %v178 = vld [vmem:[#allocation5 + $0x70] sm:$0xff]
    %v179 = vld [vmem:[#allocation5 + $0x78] sm:$0xff]
    %v180 = vld [vmem:[#allocation5 + $0x80] sm:$0xff]
    %v181 = vld [vmem:[#allocation5 + $0x88] sm:$0xff]
    %v182 = vld [vmem:[#allocation5 + $0x90] sm:$0xff]
    %v183 = vld [vmem:[#allocation5 + $0x98] sm:$0xff]
    %v184 = vld [vmem:[#allocation5 + $0xa0] sm:$0xff]
    %v185 = vld [vmem:[#allocation5 + $0xa8] sm:$0xff]
    %v186 = vld [vmem:[#allocation5 + $0xb0] sm:$0xff]
    %v187 = vld [vmem:[#allocation5 + $0xb8] sm:$0xff]
    %v188 = vld [vmem:[#allocation5 + $0xc0] sm:$0xff]
    %v189 = vld [vmem:[#allocation5 + $0xc8] sm:$0xff]
    %v190 = vld [vmem:[#allocation5 + $0xd0] sm:$0xff]
    %v191 = vld [vmem:[#allocation5 + $0xd8] sm:$0xff]
    %v192 = vld [vmem:[#allocation5 + $0xe0] sm:$0xff]
    %v193 = vld [vmem:[#allocation5 + $0xe8] sm:$0xff]
    %v194 = vld [vmem:[#allocation5 + $0xf0] sm:$0xff]
    %v195 = vld [vmem:[#allocation5 + $0xf8] sm:$0xff]
    %v196 = vld [vmem:[#allocation5 + $0x100] sm:$0xff]
    %v197 = vld [vmem:[#allocation5 + $0x108] sm:$0xff]
    %v198 = vld [vmem:[#allocation5 + $0x110] sm:$0xff]
    %v199 = vld [vmem:[#allocation5 + $0x118] sm:$0xff]
    %v200 = vld [vmem:[#allocation5 + $0x120] sm:$0xff]
    %v201 = vld [vmem:[#allocation5 + $0x128] sm:$0xff]
    %v202 = vld [vmem:[#allocation5 + $0x130] sm:$0xff]
    %v203 = vld [vmem:[#allocation5 + $0x138] sm:$0xff]
    %v204 = vld [vmem:[#allocation5 + $0x140] sm:$0xff]
    %v205 = vld [vmem:[#allocation5 + $0x148] sm:$0xff]
    %v206 = vld [vmem:[#allocation5 + $0x150] sm:$0xff]
    %v207 = vld [vmem:[#allocation5 + $0x158] sm:$0xff]
    %v208 = vld [vmem:[#allocation5 + $0x160] sm:$0xff]
    %v209 = vld [vmem:[#allocation5 + $0x168] sm:$0xff]
    %v210 = vld [vmem:[#allocation5 + $0x170] sm:$0xff]
    %v211 = vld [vmem:[#allocation5 + $0x178] sm:$0xff]
    %v212 = vld [vmem:[#allocation5 + $0x180] sm:$0xff]
    %v213 = vld [vmem:[#allocation5 + $0x188] sm:$0xff]
    %v214 = vld [vmem:[#allocation5 + $0x190] sm:$0xff]
    %v215 = vld [vmem:[#allocation5 + $0x198] sm:$0xff]
    %v216 = vld [vmem:[#allocation5 + $0x1a0] sm:$0xff]
    %v217 = vld [vmem:[#allocation5 + $0x1a8] sm:$0xff]
    %v218 = vld [vmem:[#allocation5 + $0x1b0] sm:$0xff]
    %v219 = vld [vmem:[#allocation5 + $0x1b8] sm:$0xff]
    %v220 = vld [vmem:[#allocation5 + $0x1c0] sm:$0xff]
    %v221 = vld [vmem:[#allocation5 + $0x1c8] sm:$0xff]
    %v222 = vld [vmem:[#allocation5 + $0x1d0] sm:$0xff]
    %v223 = vld [vmem:[#allocation5 + $0x1d8] sm:$0xff]
    %v224 = vld [vmem:[#allocation5 + $0x1e0] sm:$0xff]
    %v225 = vld [vmem:[#allocation5 + $0x1e8] sm:$0xff]
    %v226 = vld [vmem:[#allocation5 + $0x1f0] sm:$0xff]
    %v227 = vld [vmem:[#allocation5 + $0x1f8] sm:$0xff]
    %v228 = vld [vmem:[#allocation7] sm:$0xff]
    %v229 = vld [vmem:[#allocation7 + $0x8] sm:$0xff]
    %v232 = vperm.slane %v228, 0
    %v233 = vperm.slane %v228, 1
    %v234 = vperm.slane %v228, 2
    %v235 = vperm.slane %v228, 3
    %v236 = vperm.slane %v228, 4
    %v237 = vperm.slane %v228, 5
    %v238 = vperm.slane %v228, 6
    %v239 = vperm.slane %v228, 7
    %v240 = vperm.slane %v229, 0
    %v241 = vperm.slane %v229, 1
    %v242 = vperm.slane %v229, 2
    %v243 = vperm.slane %v229, 3
    %v244 = vperm.slane %v229, 4
    %v245 = vperm.slane %v229, 5
    %v246 = vperm.slane %v229, 6
    %v247 = vperm.slane %v229, 7
    %vm264 = vcmask 261120
    %v266 = vsel %vm264, %v163, 0
    %268 = vmatpush.msra.mxu0 0.0
    %269 = vmatpush.msra.mxu0 0.0
    %270 = vmatpush.msra.mxu0 0.0
    %271 = vmatpush.msra.mxu0 0.0
    %272 = vmatpush.msra.mxu0 0.0
    %273 = vmatpush.msra.mxu0 0.0
    %274 = vmatpush.msra.mxu0 0.0
    %275 = vmatpush.msra.mxu0 0.0
    %276 = vmatpush.msra.mxu0 0.0
    %277 = vmatpush.msra.mxu0 0.0
    %278 = vmatpush.msra.mxu0 0.0
    %279 = vmatpush.msra.mxu0 0.0
    %280 = vmatpush.msra.mxu0 %v212
    %281 = vmatpush.msra.mxu0 %v196
    %282 = vmatpush.msra.mxu0 %v180
    %283 = vmatpush.msra.mxu0 %v164
    %284 = vmatmul.f32.gmra.mxu0 %v266
    %v285 = vpop.f32.mrf.mxu0
    %v286 = vadd.f32 %v232, %v285
    %287 = vdwg.mxu0
    %288 = vmatpush.msra.mxu0 0.0
    %289 = vmatpush.msra.mxu0 0.0
    %290 = vmatpush.msra.mxu0 0.0
    %291 = vmatpush.msra.mxu0 0.0
    %292 = vmatpush.msra.mxu0 0.0
    %293 = vmatpush.msra.mxu0 0.0
    %294 = vmatpush.msra.mxu0 0.0
    %295 = vmatpush.msra.mxu0 0.0
    %296 = vmatpush.msra.mxu0 0.0
    %297 = vmatpush.msra.mxu0 0.0
    %298 = vmatpush.msra.mxu0 0.0
    %299 = vmatpush.msra.mxu0 0.0
    %300 = vmatpush.msra.mxu0 %v213
    %301 = vmatpush.msra.mxu0 %v197
    %302 = vmatpush.msra.mxu0 %v181
    %303 = vmatpush.msra.mxu0 %v165
    %304 = vmatmul.f32.gmra.mxu0 %v266
    %v305 = vpop.f32.mrf.mxu0
    %v306 = vadd.f32 %v233, %v305
    %307 = vdwg.mxu0
    %308 = vmatpush.msra.mxu0 0.0
    %309 = vmatpush.msra.mxu0 0.0
    %310 = vmatpush.msra.mxu0 0.0
    %311 = vmatpush.msra.mxu0 0.0
    %312 = vmatpush.msra.mxu0 0.0
    %313 = vmatpush.msra.mxu0 0.0
    %314 = vmatpush.msra.mxu0 0.0
    %315 = vmatpush.msra.mxu0 0.0
    %316 = vmatpush.msra.mxu0 0.0
    %317 = vmatpush.msra.mxu0 0.0
    %318 = vmatpush.msra.mxu0 0.0
    %319 = vmatpush.msra.mxu0 0.0
    %320 = vmatpush.msra.mxu0 %v214
    %321 = vmatpush.msra.mxu0 %v198
    %322 = vmatpush.msra.mxu0 %v182
    %323 = vmatpush.msra.mxu0 %v166
    %324 = vmatmul.f32.gmra.mxu0 %v266
    %v325 = vpop.f32.mrf.mxu0
    %v326 = vadd.f32 %v234, %v325
    %327 = vdwg.mxu0
    %328 = vmatpush.msra.mxu0 0.0
    %329 = vmatpush.msra.mxu0 0.0
    %330 = vmatpush.msra.mxu0 0.0
    %331 = vmatpush.msra.mxu0 0.0
    %332 = vmatpush.msra.mxu0 0.0
    %333 = vmatpush.msra.mxu0 0.0
    %334 = vmatpush.msra.mxu0 0.0
    %335 = vmatpush.msra.mxu0 0.0
    %336 = vmatpush.msra.mxu0 0.0
    %337 = vmatpush.msra.mxu0 0.0
    %338 = vmatpush.msra.mxu0 0.0
    %339 = vmatpush.msra.mxu0 0.0
    %340 = vmatpush.msra.mxu0 %v215
    %341 = vmatpush.msra.mxu0 %v199
    %342 = vmatpush.msra.mxu0 %v183
    %343 = vmatpush.msra.mxu0 %v167
    %344 = vmatmul.f32.gmra.mxu0 %v266
    %v345 = vpop.f32.mrf.mxu0
    %v346 = vadd.f32 %v235, %v345
    %347 = vdwg.mxu0
    %348 = vmatpush.msra.mxu0 0.0
    %349 = vmatpush.msra.mxu0 0.0
    %350 = vmatpush.msra.mxu0 0.0
    %351 = vmatpush.msra.mxu0 0.0
    %352 = vmatpush.msra.mxu0 0.0
    %353 = vmatpush.msra.mxu0 0.0
    %354 = vmatpush.msra.mxu0 0.0
    %355 = vmatpush.msra.mxu0 0.0
    %356 = vmatpush.msra.mxu0 0.0
    %357 = vmatpush.msra.mxu0 0.0
    %358 = vmatpush.msra.mxu0 0.0
    %359 = vmatpush.msra.mxu0 0.0
    %360 = vmatpush.msra.mxu0 %v216
    %361 = vmatpush.msra.mxu0 %v200
    %362 = vmatpush.msra.mxu0 %v184
    %363 = vmatpush.msra.mxu0 %v168
    %364 = vmatmul.f32.gmra.mxu0 %v266
    %v365 = vpop.f32.mrf.mxu0
    %v366 = vadd.f32 %v236, %v365
    %367 = vdwg.mxu0
    %368 = vmatpush.msra.mxu0 0.0
    %369 = vmatpush.msra.mxu0 0.0
    %370 = vmatpush.msra.mxu0 0.0
    %371 = vmatpush.msra.mxu0 0.0
    %372 = vmatpush.msra.mxu0 0.0
    %373 = vmatpush.msra.mxu0 0.0
    %374 = vmatpush.msra.mxu0 0.0
    %375 = vmatpush.msra.mxu0 0.0
    %376 = vmatpush.msra.mxu0 0.0
    %377 = vmatpush.msra.mxu0 0.0
    %378 = vmatpush.msra.mxu0 0.0
    %379 = vmatpush.msra.mxu0 0.0
    %380 = vmatpush.msra.mxu0 %v217
    %381 = vmatpush.msra.mxu0 %v201
    %382 = vmatpush.msra.mxu0 %v185
    %383 = vmatpush.msra.mxu0 %v169
    %384 = vmatmul.f32.gmra.mxu0 %v266
    %v385 = vpop.f32.mrf.mxu0
    %v386 = vadd.f32 %v237, %v385
    %387 = vdwg.mxu0
    %388 = vmatpush.msra.mxu0 0.0
    %389 = vmatpush.msra.mxu0 0.0
    %390 = vmatpush.msra.mxu0 0.0
    %391 = vmatpush.msra.mxu0 0.0
    %392 = vmatpush.msra.mxu0 0.0
    %393 = vmatpush.msra.mxu0 0.0
    %394 = vmatpush.msra.mxu0 0.0
    %395 = vmatpush.msra.mxu0 0.0
    %396 = vmatpush.msra.mxu0 0.0
    %397 = vmatpush.msra.mxu0 0.0
    %398 = vmatpush.msra.mxu0 0.0
    %399 = vmatpush.msra.mxu0 0.0
    %400 = vmatpush.msra.mxu0 %v218
    %401 = vmatpush.msra.mxu0 %v202
    %402 = vmatpush.msra.mxu0 %v186
    %403 = vmatpush.msra.mxu0 %v170
    %404 = vmatmul.f32.gmra.mxu0 %v266
    %v405 = vpop.f32.mrf.mxu0
    %v406 = vadd.f32 %v238, %v405
    %407 = vdwg.mxu0
    %408 = vmatpush.msra.mxu0 0.0
    %409 = vmatpush.msra.mxu0 0.0
    %410 = vmatpush.msra.mxu0 0.0
    %411 = vmatpush.msra.mxu0 0.0
    %412 = vmatpush.msra.mxu0 0.0
    %413 = vmatpush.msra.mxu0 0.0
    %414 = vmatpush.msra.mxu0 0.0
    %415 = vmatpush.msra.mxu0 0.0
    %416 = vmatpush.msra.mxu0 0.0
    %417 = vmatpush.msra.mxu0 0.0
    %418 = vmatpush.msra.mxu0 0.0
    %419 = vmatpush.msra.mxu0 0.0
    %420 = vmatpush.msra.mxu0 %v219
    %421 = vmatpush.msra.mxu0 %v203
    %422 = vmatpush.msra.mxu0 %v187
    %423 = vmatpush.msra.mxu0 %v171
    %424 = vmatmul.f32.gmra.mxu0 %v266
    %v425 = vpop.f32.mrf.mxu0
    %v426 = vadd.f32 %v239, %v425
    %427 = vdwg.mxu0
    %428 = vmatpush.msra.mxu0 0.0
    %429 = vmatpush.msra.mxu0 0.0
    %430 = vmatpush.msra.mxu0 0.0
    %431 = vmatpush.msra.mxu0 0.0
    %432 = vmatpush.msra.mxu0 0.0
    %433 = vmatpush.msra.mxu0 0.0
    %434 = vmatpush.msra.mxu0 0.0
    %435 = vmatpush.msra.mxu0 0.0
    %436 = vmatpush.msra.mxu0 0.0
    %437 = vmatpush.msra.mxu0 0.0
    %438 = vmatpush.msra.mxu0 0.0
    %439 = vmatpush.msra.mxu0 0.0
    %440 = vmatpush.msra.mxu0 %v220
    %441 = vmatpush.msra.mxu0 %v204
    %442 = vmatpush.msra.mxu0 %v188
    %443 = vmatpush.msra.mxu0 %v172
    %444 = vmatmul.f32.gmra.mxu0 %v266
    %v445 = vpop.f32.mrf.mxu0
    %v446 = vadd.f32 %v240, %v445
    %447 = vdwg.mxu0
    %448 = vmatpush.msra.mxu0 0.0
    %449 = vmatpush.msra.mxu0 0.0
    %450 = vmatpush.msra.mxu0 0.0
    %451 = vmatpush.msra.mxu0 0.0
    %452 = vmatpush.msra.mxu0 0.0
    %453 = vmatpush.msra.mxu0 0.0
    %454 = vmatpush.msra.mxu0 0.0
    %455 = vmatpush.msra.mxu0 0.0
    %456 = vmatpush.msra.mxu0 0.0
    %457 = vmatpush.msra.mxu0 0.0
    %458 = vmatpush.msra.mxu0 0.0
    %459 = vmatpush.msra.mxu0 0.0
    %460 = vmatpush.msra.mxu0 %v221
    %461 = vmatpush.msra.mxu0 %v205
    %462 = vmatpush.msra.mxu0 %v189
    %463 = vmatpush.msra.mxu0 %v173
    %464 = vmatmul.f32.gmra.mxu0 %v266
    %v465 = vpop.f32.mrf.mxu0
    %v466 = vadd.f32 %v241, %v465
    %467 = vdwg.mxu0
    %468 = vmatpush.msra.mxu0 0.0
    %469 = vmatpush.msra.mxu0 0.0
    %470 = vmatpush.msra.mxu0 0.0
    %471 = vmatpush.msra.mxu0 0.0
    %472 = vmatpush.msra.mxu0 0.0
    %473 = vmatpush.msra.mxu0 0.0
    %474 = vmatpush.msra.mxu0 0.0
    %475 = vmatpush.msra.mxu0 0.0
    %476 = vmatpush.msra.mxu0 0.0
    %477 = vmatpush.msra.mxu0 0.0
    %478 = vmatpush.msra.mxu0 0.0
    %479 = vmatpush.msra.mxu0 0.0
    %480 = vmatpush.msra.mxu0 %v222
    %481 = vmatpush.msra.mxu0 %v206
    %482 = vmatpush.msra.mxu0 %v190
    %483 = vmatpush.msra.mxu0 %v174
    %484 = vmatmul.f32.gmra.mxu0 %v266
    %v485 = vpop.f32.mrf.mxu0
    %v486 = vadd.f32 %v242, %v485
    %487 = vdwg.mxu0
    %488 = vmatpush.msra.mxu0 0.0
    %489 = vmatpush.msra.mxu0 0.0
    %490 = vmatpush.msra.mxu0 0.0
    %491 = vmatpush.msra.mxu0 0.0
    %492 = vmatpush.msra.mxu0 0.0
    %493 = vmatpush.msra.mxu0 0.0
    %494 = vmatpush.msra.mxu0 0.0
    %495 = vmatpush.msra.mxu0 0.0
    %496 = vmatpush.msra.mxu0 0.0
    %497 = vmatpush.msra.mxu0 0.0
    %498 = vmatpush.msra.mxu0 0.0
    %499 = vmatpush.msra.mxu0 0.0
    %500 = vmatpush.msra.mxu0 %v223
    %501 = vmatpush.msra.mxu0 %v207
    %502 = vmatpush.msra.mxu0 %v191
    %503 = vmatpush.msra.mxu0 %v175
    %504 = vmatmul.f32.gmra.mxu0 %v266
    %v505 = vpop.f32.mrf.mxu0
    %v506 = vadd.f32 %v243, %v505
    %507 = vdwg.mxu0
    %508 = vmatpush.msra.mxu0 0.0
    %509 = vmatpush.msra.mxu0 0.0
    %510 = vmatpush.msra.mxu0 0.0
    %511 = vmatpush.msra.mxu0 0.0
    %512 = vmatpush.msra.mxu0 0.0
    %513 = vmatpush.msra.mxu0 0.0
    %514 = vmatpush.msra.mxu0 0.0
    %515 = vmatpush.msra.mxu0 0.0
    %516 = vmatpush.msra.mxu0 0.0
    %517 = vmatpush.msra.mxu0 0.0
    %518 = vmatpush.msra.mxu0 0.0
    %519 = vmatpush.msra.mxu0 0.0
    %520 = vmatpush.msra.mxu0 %v224
    %521 = vmatpush.msra.mxu0 %v208
    %522 = vmatpush.msra.mxu0 %v192
    %523 = vmatpush.msra.mxu0 %v176
    %524 = vmatmul.f32.gmra.mxu0 %v266
    %v525 = vpop.f32.mrf.mxu0
    %v526 = vadd.f32 %v244, %v525
    %527 = vdwg.mxu0
    %528 = vmatpush.msra.mxu0 0.0
    %529 = vmatpush.msra.mxu0 0.0
    %530 = vmatpush.msra.mxu0 0.0
    %531 = vmatpush.msra.mxu0 0.0
    %532 = vmatpush.msra.mxu0 0.0
    %533 = vmatpush.msra.mxu0 0.0
    %534 = vmatpush.msra.mxu0 0.0
    %535 = vmatpush.msra.mxu0 0.0
    %536 = vmatpush.msra.mxu0 0.0
    %537 = vmatpush.msra.mxu0 0.0
    %538 = vmatpush.msra.mxu0 0.0
    %539 = vmatpush.msra.mxu0 0.0
    %540 = vmatpush.msra.mxu0 %v225
    %541 = vmatpush.msra.mxu0 %v209
    %542 = vmatpush.msra.mxu0 %v193
    %543 = vmatpush.msra.mxu0 %v177
    %544 = vmatmul.f32.gmra.mxu0 %v266
    %v545 = vpop.f32.mrf.mxu0
    %v546 = vadd.f32 %v245, %v545
    %547 = vdwg.mxu0
    %548 = vmatpush.msra.mxu0 0.0
    %549 = vmatpush.msra.mxu0 0.0
    %550 = vmatpush.msra.mxu0 0.0
    %551 = vmatpush.msra.mxu0 0.0
    %552 = vmatpush.msra.mxu0 0.0
    %553 = vmatpush.msra.mxu0 0.0
    %554 = vmatpush.msra.mxu0 0.0
    %555 = vmatpush.msra.mxu0 0.0
    %556 = vmatpush.msra.mxu0 0.0
    %557 = vmatpush.msra.mxu0 0.0
    %558 = vmatpush.msra.mxu0 0.0
    %559 = vmatpush.msra.mxu0 0.0
    %560 = vmatpush.msra.mxu0 %v226
    %561 = vmatpush.msra.mxu0 %v210
    %562 = vmatpush.msra.mxu0 %v194
    %563 = vmatpush.msra.mxu0 %v178
    %564 = vmatmul.f32.gmra.mxu0 %v266
    %v565 = vpop.f32.mrf.mxu0
    %v566 = vadd.f32 %v246, %v565
    %567 = vdwg.mxu0
    %568 = vmatpush.msra.mxu0 0.0
    %569 = vmatpush.msra.mxu0 0.0
    %570 = vmatpush.msra.mxu0 0.0
    %571 = vmatpush.msra.mxu0 0.0
    %572 = vmatpush.msra.mxu0 0.0
    %573 = vmatpush.msra.mxu0 0.0
    %574 = vmatpush.msra.mxu0 0.0
    %575 = vmatpush.msra.mxu0 0.0
    %576 = vmatpush.msra.mxu0 0.0
    %577 = vmatpush.msra.mxu0 0.0
    %578 = vmatpush.msra.mxu0 0.0
    %579 = vmatpush.msra.mxu0 0.0
    %580 = vmatpush.msra.mxu0 %v227
    %581 = vmatpush.msra.mxu0 %v211
    %582 = vmatpush.msra.mxu0 %v195
    %583 = vmatpush.msra.mxu0 %v179
    %584 = vmatmul.f32.gmra.mxu0 %v266
    %v585 = vpop.f32.mrf.mxu0
    %v586 = vadd.f32 %v247, %v585
    %587 = vdwg.mxu0
    %v588 = vmax.f32 %v286, 0.0
    %v589 = vmax.f32 %v306, 0.0
    %v590 = vmax.f32 %v326, 0.0
    %v591 = vmax.f32 %v346, 0.0
    %v592 = vmax.f32 %v366, 0.0
    %v593 = vmax.f32 %v386, 0.0
    %v594 = vmax.f32 %v406, 0.0
    %v595 = vmax.f32 %v426, 0.0
    %v596 = vmax.f32 %v446, 0.0
    %v597 = vmax.f32 %v466, 0.0
    %v598 = vmax.f32 %v486, 0.0
    %v599 = vmax.f32 %v506, 0.0
    %v600 = vmax.f32 %v526, 0.0
    %v601 = vmax.f32 %v546, 0.0
    %v602 = vmax.f32 %v566, 0.0
    %v603 = vmax.f32 %v586, 0.0
    %v604 = vld [vmem:[#allocation8] sm:$0xff]
    %v605 = vld [vmem:[#allocation8 + $0x8] sm:$0xff]
    %v606 = vld [vmem:[#allocation8 + $0x10] sm:$0xff]
    %v607 = vld [vmem:[#allocation8 + $0x18] sm:$0xff]
    %v608 = vld [vmem:[#allocation8 + $0x20] sm:$0xff]
    %v609 = vld [vmem:[#allocation8 + $0x28] sm:$0xff]
    %v610 = vld [vmem:[#allocation8 + $0x30] sm:$0xff]
    %v611 = vld [vmem:[#allocation8 + $0x38] sm:$0xff]
    %v612 = vld [vmem:[#allocation8 + $0x40] sm:$0xff]
    %v613 = vld [vmem:[#allocation8 + $0x48] sm:$0xff]
    %v614 = vld [vmem:[#allocation8 + $0x50] sm:$0xff]
    %v615 = vld [vmem:[#allocation8 + $0x58] sm:$0xff]
    %v616 = vld [vmem:[#allocation8 + $0x60] sm:$0xff]
    %v617 = vld [vmem:[#allocation8 + $0x68] sm:$0xff]
    %v618 = vld [vmem:[#allocation8 + $0x70] sm:$0xff]
    %v619 = vld [vmem:[#allocation8 + $0x78] sm:$0xff]
    %v620 = vld [vmem:[#allocation8 + $0x80] sm:$0xff]
    %v621 = vld [vmem:[#allocation8 + $0x88] sm:$0xff]
    %v622 = vld [vmem:[#allocation8 + $0x90] sm:$0xff]
    %v623 = vld [vmem:[#allocation8 + $0x98] sm:$0xff]
    %v624 = vld [vmem:[#allocation8 + $0xa0] sm:$0xff]
    %v625 = vld [vmem:[#allocation8 + $0xa8] sm:$0xff]
    %v626 = vld [vmem:[#allocation8 + $0xb0] sm:$0xff]
    %v627 = vld [vmem:[#allocation8 + $0xb8] sm:$0xff]
    %v628 = vld [vmem:[#allocation8 + $0xc0] sm:$0xff]
    %v629 = vld [vmem:[#allocation8 + $0xc8] sm:$0xff]
    %v630 = vld [vmem:[#allocation8 + $0xd0] sm:$0xff]
    %v631 = vld [vmem:[#allocation8 + $0xd8] sm:$0xff]
    %v632 = vld [vmem:[#allocation8 + $0xe0] sm:$0xff]
    %v633 = vld [vmem:[#allocation8 + $0xe8] sm:$0xff]
    %v634 = vld [vmem:[#allocation8 + $0xf0] sm:$0xff]
    %v635 = vld [vmem:[#allocation8 + $0xf8] sm:$0xff]
    %v636 = vld [vmem:[#allocation8 + $0x100] sm:$0xff]
    %v637 = vld [vmem:[#allocation8 + $0x108] sm:$0xff]
    %v638 = vld [vmem:[#allocation8 + $0x110] sm:$0xff]
    %v639 = vld [vmem:[#allocation8 + $0x118] sm:$0xff]
    %v640 = vld [vmem:[#allocation8 + $0x120] sm:$0xff]
    %v641 = vld [vmem:[#allocation8 + $0x128] sm:$0xff]
    %v642 = vld [vmem:[#allocation8 + $0x130] sm:$0xff]
    %v643 = vld [vmem:[#allocation8 + $0x138] sm:$0xff]
    %v644 = vld [vmem:[#allocation8 + $0x140] sm:$0xff]
    %v645 = vld [vmem:[#allocation8 + $0x148] sm:$0xff]
    %v646 = vld [vmem:[#allocation8 + $0x150] sm:$0xff]
    %v647 = vld [vmem:[#allocation8 + $0x158] sm:$0xff]
    %v648 = vld [vmem:[#allocation8 + $0x160] sm:$0xff]
    %v649 = vld [vmem:[#allocation8 + $0x168] sm:$0xff]
    %v650 = vld [vmem:[#allocation8 + $0x170] sm:$0xff]
    %v651 = vld [vmem:[#allocation8 + $0x178] sm:$0xff]
    %v652 = vld [vmem:[#allocation8 + $0x180] sm:$0xff]
    %v653 = vld [vmem:[#allocation8 + $0x188] sm:$0xff]
    %v654 = vld [vmem:[#allocation8 + $0x190] sm:$0xff]
    %v655 = vld [vmem:[#allocation8 + $0x198] sm:$0xff]
    %v656 = vld [vmem:[#allocation8 + $0x1a0] sm:$0xff]
    %v657 = vld [vmem:[#allocation8 + $0x1a8] sm:$0xff]
    %v658 = vld [vmem:[#allocation8 + $0x1b0] sm:$0xff]
    %v659 = vld [vmem:[#allocation8 + $0x1b8] sm:$0xff]
    %v660 = vld [vmem:[#allocation8 + $0x1c0] sm:$0xff]
    %v661 = vld [vmem:[#allocation8 + $0x1c8] sm:$0xff]
    %v662 = vld [vmem:[#allocation8 + $0x1d0] sm:$0xff]
    %v663 = vld [vmem:[#allocation8 + $0x1d8] sm:$0xff]
    %v664 = vld [vmem:[#allocation8 + $0x1e0] sm:$0xff]
    %v665 = vld [vmem:[#allocation8 + $0x1e8] sm:$0xff]
    %v666 = vld [vmem:[#allocation8 + $0x1f0] sm:$0xff]
    %v667 = vld [vmem:[#allocation8 + $0x1f8] sm:$0xff]
    %v668 = vld [vmem:[#allocation8 + $0x200] sm:$0xff]
    %v669 = vld [vmem:[#allocation8 + $0x208] sm:$0xff]
    %v670 = vld [vmem:[#allocation8 + $0x210] sm:$0xff]
    %v671 = vld [vmem:[#allocation8 + $0x218] sm:$0xff]
    %v672 = vld [vmem:[#allocation8 + $0x220] sm:$0xff]
    %v673 = vld [vmem:[#allocation8 + $0x228] sm:$0xff]
    %v674 = vld [vmem:[#allocation8 + $0x230] sm:$0xff]
    %v675 = vld [vmem:[#allocation8 + $0x238] sm:$0xff]
    %v676 = vld [vmem:[#allocation8 + $0x240] sm:$0xff]
    %v677 = vld [vmem:[#allocation8 + $0x248] sm:$0xff]
    %v678 = vld [vmem:[#allocation8 + $0x250] sm:$0xff]
    %v679 = vld [vmem:[#allocation8 + $0x258] sm:$0xff]
    %v680 = vld [vmem:[#allocation8 + $0x260] sm:$0xff]
    %v681 = vld [vmem:[#allocation8 + $0x268] sm:$0xff]
    %v682 = vld [vmem:[#allocation8 + $0x270] sm:$0xff]
    %v683 = vld [vmem:[#allocation8 + $0x278] sm:$0xff]
    %v684 = vld [vmem:[#allocation8 + $0x280] sm:$0xff]
    %v685 = vld [vmem:[#allocation8 + $0x288] sm:$0xff]
    %v686 = vld [vmem:[#allocation8 + $0x290] sm:$0xff]
    %v687 = vld [vmem:[#allocation8 + $0x298] sm:$0xff]
    %v688 = vld [vmem:[#allocation8 + $0x2a0] sm:$0xff]
    %v689 = vld [vmem:[#allocation8 + $0x2a8] sm:$0xff]
    %v690 = vld [vmem:[#allocation8 + $0x2b0] sm:$0xff]
    %v691 = vld [vmem:[#allocation8 + $0x2b8] sm:$0xff]
    %v692 = vld [vmem:[#allocation8 + $0x2c0] sm:$0xff]
    %v693 = vld [vmem:[#allocation8 + $0x2c8] sm:$0xff]
    %v694 = vld [vmem:[#allocation8 + $0x2d0] sm:$0xff]
    %v695 = vld [vmem:[#allocation8 + $0x2d8] sm:$0xff]
    %v696 = vld [vmem:[#allocation8 + $0x2e0] sm:$0xff]
    %v697 = vld [vmem:[#allocation8 + $0x2e8] sm:$0xff]
    %v698 = vld [vmem:[#allocation8 + $0x2f0] sm:$0xff]
    %v699 = vld [vmem:[#allocation8 + $0x2f8] sm:$0xff]
    %v700 = vld [vmem:[#allocation8 + $0x300] sm:$0xff]
    %v701 = vld [vmem:[#allocation8 + $0x308] sm:$0xff]
    %v702 = vld [vmem:[#allocation8 + $0x310] sm:$0xff]
    %v703 = vld [vmem:[#allocation8 + $0x318] sm:$0xff]
    %v704 = vld [vmem:[#allocation8 + $0x320] sm:$0xff]
    %v705 = vld [vmem:[#allocation8 + $0x328] sm:$0xff]
    %v706 = vld [vmem:[#allocation8 + $0x330] sm:$0xff]
    %v707 = vld [vmem:[#allocation8 + $0x338] sm:$0xff]
    %v708 = vld [vmem:[#allocation8 + $0x340] sm:$0xff]
    %v709 = vld [vmem:[#allocation8 + $0x348] sm:$0xff]
    %v710 = vld [vmem:[#allocation8 + $0x350] sm:$0xff]
    %v711 = vld [vmem:[#allocation8 + $0x358] sm:$0xff]
    %v712 = vld [vmem:[#allocation8 + $0x360] sm:$0xff]
    %v713 = vld [vmem:[#allocation8 + $0x368] sm:$0xff]
    %v714 = vld [vmem:[#allocation8 + $0x370] sm:$0xff]
    %v715 = vld [vmem:[#allocation8 + $0x378] sm:$0xff]
    %v716 = vld [vmem:[#allocation8 + $0x380] sm:$0xff]
    %v717 = vld [vmem:[#allocation8 + $0x388] sm:$0xff]
    %v718 = vld [vmem:[#allocation8 + $0x390] sm:$0xff]
    %v719 = vld [vmem:[#allocation8 + $0x398] sm:$0xff]
    %v720 = vld [vmem:[#allocation8 + $0x3a0] sm:$0xff]
    %v721 = vld [vmem:[#allocation8 + $0x3a8] sm:$0xff]
    %v722 = vld [vmem:[#allocation8 + $0x3b0] sm:$0xff]
    %v723 = vld [vmem:[#allocation8 + $0x3b8] sm:$0xff]
    %v724 = vld [vmem:[#allocation8 + $0x3c0] sm:$0xff]
    %v725 = vld [vmem:[#allocation8 + $0x3c8] sm:$0xff]
    %v726 = vld [vmem:[#allocation8 + $0x3d0] sm:$0xff]
    %v727 = vld [vmem:[#allocation8 + $0x3d8] sm:$0xff]
    %v728 = vld [vmem:[#allocation8 + $0x3e0] sm:$0xff]
    %v729 = vld [vmem:[#allocation8 + $0x3e8] sm:$0xff]
    %v730 = vld [vmem:[#allocation8 + $0x3f0] sm:$0xff]
    %v731 = vld [vmem:[#allocation8 + $0x3f8] sm:$0xff]
    %v732 = vld [vmem:[#allocation8 + $0x400] sm:$0xff]
    %v733 = vld [vmem:[#allocation8 + $0x408] sm:$0xff]
    %v734 = vld [vmem:[#allocation8 + $0x410] sm:$0xff]
    %v735 = vld [vmem:[#allocation8 + $0x418] sm:$0xff]
    %v736 = vld [vmem:[#allocation8 + $0x420] sm:$0xff]
    %v737 = vld [vmem:[#allocation8 + $0x428] sm:$0xff]
    %v738 = vld [vmem:[#allocation8 + $0x430] sm:$0xff]
    %v739 = vld [vmem:[#allocation8 + $0x438] sm:$0xff]
    %v740 = vld [vmem:[#allocation8 + $0x440] sm:$0xff]
    %v741 = vld [vmem:[#allocation8 + $0x448] sm:$0xff]
    %v742 = vld [vmem:[#allocation8 + $0x450] sm:$0xff]
    %v743 = vld [vmem:[#allocation8 + $0x458] sm:$0xff]
    %v744 = vld [vmem:[#allocation8 + $0x460] sm:$0xff]
    %v745 = vld [vmem:[#allocation8 + $0x468] sm:$0xff]
    %v746 = vld [vmem:[#allocation8 + $0x470] sm:$0xff]
    %v747 = vld [vmem:[#allocation8 + $0x478] sm:$0xff]
    %v748 = vld [vmem:[#allocation8 + $0x480] sm:$0xff]
    %v749 = vld [vmem:[#allocation8 + $0x488] sm:$0xff]
    %v750 = vld [vmem:[#allocation8 + $0x490] sm:$0xff]
    %v751 = vld [vmem:[#allocation8 + $0x498] sm:$0xff]
    %v752 = vld [vmem:[#allocation8 + $0x4a0] sm:$0xff]
    %v753 = vld [vmem:[#allocation8 + $0x4a8] sm:$0xff]
    %v754 = vld [vmem:[#allocation8 + $0x4b0] sm:$0xff]
    %v755 = vld [vmem:[#allocation8 + $0x4b8] sm:$0xff]
    %v756 = vld [vmem:[#allocation8 + $0x4c0] sm:$0xff]
    %v757 = vld [vmem:[#allocation8 + $0x4c8] sm:$0xff]
    %v758 = vld [vmem:[#allocation8 + $0x4d0] sm:$0xff]
    %v759 = vld [vmem:[#allocation8 + $0x4d8] sm:$0xff]
    %v760 = vld [vmem:[#allocation8 + $0x4e0] sm:$0xff]
    %v761 = vld [vmem:[#allocation8 + $0x4e8] sm:$0xff]
    %v762 = vld [vmem:[#allocation8 + $0x4f0] sm:$0xff]
    %v763 = vld [vmem:[#allocation8 + $0x4f8] sm:$0xff]
    %v764 = vld [vmem:[#allocation8 + $0x500] sm:$0xff]
    %v765 = vld [vmem:[#allocation8 + $0x508] sm:$0xff]
    %v766 = vld [vmem:[#allocation8 + $0x510] sm:$0xff]
    %v767 = vld [vmem:[#allocation8 + $0x518] sm:$0xff]
    %v768 = vld [vmem:[#allocation8 + $0x520] sm:$0xff]
    %v769 = vld [vmem:[#allocation8 + $0x528] sm:$0xff]
    %v770 = vld [vmem:[#allocation8 + $0x530] sm:$0xff]
    %v771 = vld [vmem:[#allocation8 + $0x538] sm:$0xff]
    %v772 = vld [vmem:[#allocation8 + $0x540] sm:$0xff]
    %v773 = vld [vmem:[#allocation8 + $0x548] sm:$0xff]
    %v774 = vld [vmem:[#allocation8 + $0x550] sm:$0xff]
    %v775 = vld [vmem:[#allocation8 + $0x558] sm:$0xff]
    %v776 = vld [vmem:[#allocation8 + $0x560] sm:$0xff]
    %v777 = vld [vmem:[#allocation8 + $0x568] sm:$0xff]
    %v778 = vld [vmem:[#allocation8 + $0x570] sm:$0xff]
    %v779 = vld [vmem:[#allocation8 + $0x578] sm:$0xff]
    %v780 = vld [vmem:[#allocation8 + $0x580] sm:$0xff]
    %v781 = vld [vmem:[#allocation8 + $0x588] sm:$0xff]
    %v782 = vld [vmem:[#allocation8 + $0x590] sm:$0xff]
    %v783 = vld [vmem:[#allocation8 + $0x598] sm:$0xff]
    %v784 = vld [vmem:[#allocation8 + $0x5a0] sm:$0xff]
    %v785 = vld [vmem:[#allocation8 + $0x5a8] sm:$0xff]
    %v786 = vld [vmem:[#allocation8 + $0x5b0] sm:$0xff]
    %v787 = vld [vmem:[#allocation8 + $0x5b8] sm:$0xff]
    %v788 = vld [vmem:[#allocation8 + $0x5c0] sm:$0xff]
    %v789 = vld [vmem:[#allocation8 + $0x5c8] sm:$0xff]
    %v790 = vld [vmem:[#allocation8 + $0x5d0] sm:$0xff]
    %v791 = vld [vmem:[#allocation8 + $0x5d8] sm:$0xff]
    %v792 = vld [vmem:[#allocation8 + $0x5e0] sm:$0xff]
    %v793 = vld [vmem:[#allocation8 + $0x5e8] sm:$0xff]
    %v794 = vld [vmem:[#allocation8 + $0x5f0] sm:$0xff]
    %v795 = vld [vmem:[#allocation8 + $0x5f8] sm:$0xff]
    %v796 = vld [vmem:[#allocation8 + $0x600] sm:$0xff]
    %v797 = vld [vmem:[#allocation8 + $0x608] sm:$0xff]
    %v798 = vld [vmem:[#allocation8 + $0x610] sm:$0xff]
    %v799 = vld [vmem:[#allocation8 + $0x618] sm:$0xff]
    %v800 = vld [vmem:[#allocation8 + $0x620] sm:$0xff]
    %v801 = vld [vmem:[#allocation8 + $0x628] sm:$0xff]
    %v802 = vld [vmem:[#allocation8 + $0x630] sm:$0xff]
    %v803 = vld [vmem:[#allocation8 + $0x638] sm:$0xff]
    %v804 = vld [vmem:[#allocation8 + $0x640] sm:$0xff]
    %v805 = vld [vmem:[#allocation8 + $0x648] sm:$0xff]
    %v806 = vld [vmem:[#allocation8 + $0x650] sm:$0xff]
    %v807 = vld [vmem:[#allocation8 + $0x658] sm:$0xff]
    %v808 = vld [vmem:[#allocation8 + $0x660] sm:$0xff]
    %v809 = vld [vmem:[#allocation8 + $0x668] sm:$0xff]
    %v810 = vld [vmem:[#allocation8 + $0x670] sm:$0xff]
    %v811 = vld [vmem:[#allocation8 + $0x678] sm:$0xff]
    %v812 = vld [vmem:[#allocation8 + $0x680] sm:$0xff]
    %v813 = vld [vmem:[#allocation8 + $0x688] sm:$0xff]
    %v814 = vld [vmem:[#allocation8 + $0x690] sm:$0xff]
    %v815 = vld [vmem:[#allocation8 + $0x698] sm:$0xff]
    %v816 = vld [vmem:[#allocation8 + $0x6a0] sm:$0xff]
    %v817 = vld [vmem:[#allocation8 + $0x6a8] sm:$0xff]
    %v818 = vld [vmem:[#allocation8 + $0x6b0] sm:$0xff]
    %v819 = vld [vmem:[#allocation8 + $0x6b8] sm:$0xff]
    %v820 = vld [vmem:[#allocation8 + $0x6c0] sm:$0xff]
    %v821 = vld [vmem:[#allocation8 + $0x6c8] sm:$0xff]
    %v822 = vld [vmem:[#allocation8 + $0x6d0] sm:$0xff]
    %v823 = vld [vmem:[#allocation8 + $0x6d8] sm:$0xff]
    %v824 = vld [vmem:[#allocation8 + $0x6e0] sm:$0xff]
    %v825 = vld [vmem:[#allocation8 + $0x6e8] sm:$0xff]
    %v826 = vld [vmem:[#allocation8 + $0x6f0] sm:$0xff]
    %v827 = vld [vmem:[#allocation8 + $0x6f8] sm:$0xff]
    %v828 = vld [vmem:[#allocation8 + $0x700] sm:$0xff]
    %v829 = vld [vmem:[#allocation8 + $0x708] sm:$0xff]
    %v830 = vld [vmem:[#allocation8 + $0x710] sm:$0xff]
    %v831 = vld [vmem:[#allocation8 + $0x718] sm:$0xff]
    %v832 = vld [vmem:[#allocation8 + $0x720] sm:$0xff]
    %v833 = vld [vmem:[#allocation8 + $0x728] sm:$0xff]
    %v834 = vld [vmem:[#allocation8 + $0x730] sm:$0xff]
    %v835 = vld [vmem:[#allocation8 + $0x738] sm:$0xff]
    %v836 = vld [vmem:[#allocation8 + $0x740] sm:$0xff]
    %v837 = vld [vmem:[#allocation8 + $0x748] sm:$0xff]
    %v838 = vld [vmem:[#allocation8 + $0x750] sm:$0xff]
    %v839 = vld [vmem:[#allocation8 + $0x758] sm:$0xff]
    %v840 = vld [vmem:[#allocation8 + $0x760] sm:$0xff]
    %v841 = vld [vmem:[#allocation8 + $0x768] sm:$0xff]
    %v842 = vld [vmem:[#allocation8 + $0x770] sm:$0xff]
    %v843 = vld [vmem:[#allocation8 + $0x778] sm:$0xff]
    %v844 = vld [vmem:[#allocation8 + $0x780] sm:$0xff]
    %v845 = vld [vmem:[#allocation8 + $0x788] sm:$0xff]
    %v846 = vld [vmem:[#allocation8 + $0x790] sm:$0xff]
    %v847 = vld [vmem:[#allocation8 + $0x798] sm:$0xff]
    %v848 = vld [vmem:[#allocation8 + $0x7a0] sm:$0xff]
    %v849 = vld [vmem:[#allocation8 + $0x7a8] sm:$0xff]
    %v850 = vld [vmem:[#allocation8 + $0x7b0] sm:$0xff]
    %v851 = vld [vmem:[#allocation8 + $0x7b8] sm:$0xff]
    %v852 = vld [vmem:[#allocation8 + $0x7c0] sm:$0xff]
    %v853 = vld [vmem:[#allocation8 + $0x7c8] sm:$0xff]
    %v854 = vld [vmem:[#allocation8 + $0x7d0] sm:$0xff]
    %v855 = vld [vmem:[#allocation8 + $0x7d8] sm:$0xff]
    %v856 = vld [vmem:[#allocation8 + $0x7e0] sm:$0xff]
    %v857 = vld [vmem:[#allocation8 + $0x7e8] sm:$0xff]
    %v858 = vld [vmem:[#allocation8 + $0x7f0] sm:$0xff]
    %v859 = vld [vmem:[#allocation8 + $0x7f8] sm:$0xff]
    %v860 = vld [vmem:[#allocation8 + $0x800] sm:$0xff]
    %v861 = vld [vmem:[#allocation8 + $0x808] sm:$0xff]
    %v862 = vld [vmem:[#allocation8 + $0x810] sm:$0xff]
    %v863 = vld [vmem:[#allocation8 + $0x818] sm:$0xff]
    %v864 = vld [vmem:[#allocation8 + $0x820] sm:$0xff]
    %v865 = vld [vmem:[#allocation8 + $0x828] sm:$0xff]
    %v866 = vld [vmem:[#allocation8 + $0x830] sm:$0xff]
    %v867 = vld [vmem:[#allocation8 + $0x838] sm:$0xff]
    %v868 = vld [vmem:[#allocation8 + $0x840] sm:$0xff]
    %v869 = vld [vmem:[#allocation8 + $0x848] sm:$0xff]
    %v870 = vld [vmem:[#allocation8 + $0x850] sm:$0xff]
    %v871 = vld [vmem:[#allocation8 + $0x858] sm:$0xff]
    %v872 = vld [vmem:[#allocation8 + $0x860] sm:$0xff]
    %v873 = vld [vmem:[#allocation8 + $0x868] sm:$0xff]
    %v874 = vld [vmem:[#allocation8 + $0x870] sm:$0xff]
    %v875 = vld [vmem:[#allocation8 + $0x878] sm:$0xff]
    %v876 = vld [vmem:[#allocation8 + $0x880] sm:$0xff]
    %v877 = vld [vmem:[#allocation8 + $0x888] sm:$0xff]
    %v878 = vld [vmem:[#allocation8 + $0x890] sm:$0xff]
    %v879 = vld [vmem:[#allocation8 + $0x898] sm:$0xff]
    %v880 = vld [vmem:[#allocation8 + $0x8a0] sm:$0xff]
    %v881 = vld [vmem:[#allocation8 + $0x8a8] sm:$0xff]
    %v882 = vld [vmem:[#allocation8 + $0x8b0] sm:$0xff]
    %v883 = vld [vmem:[#allocation8 + $0x8b8] sm:$0xff]
    %v884 = vld [vmem:[#allocation8 + $0x8c0] sm:$0xff]
    %v885 = vld [vmem:[#allocation8 + $0x8c8] sm:$0xff]
    %v886 = vld [vmem:[#allocation8 + $0x8d0] sm:$0xff]
    %v887 = vld [vmem:[#allocation8 + $0x8d8] sm:$0xff]
    %v888 = vld [vmem:[#allocation8 + $0x8e0] sm:$0xff]
    %v889 = vld [vmem:[#allocation8 + $0x8e8] sm:$0xff]
    %v890 = vld [vmem:[#allocation8 + $0x8f0] sm:$0xff]
    %v891 = vld [vmem:[#allocation8 + $0x8f8] sm:$0xff]
    %v892 = vld [vmem:[#allocation8 + $0x900] sm:$0xff]
    %v893 = vld [vmem:[#allocation8 + $0x908] sm:$0xff]
    %v894 = vld [vmem:[#allocation8 + $0x910] sm:$0xff]
    %v895 = vld [vmem:[#allocation8 + $0x918] sm:$0xff]
    %v896 = vld [vmem:[#allocation8 + $0x920] sm:$0xff]
    %v897 = vld [vmem:[#allocation8 + $0x928] sm:$0xff]
    %v898 = vld [vmem:[#allocation8 + $0x930] sm:$0xff]
    %v899 = vld [vmem:[#allocation8 + $0x938] sm:$0xff]
    %v900 = vld [vmem:[#allocation8 + $0x940] sm:$0xff]
    %v901 = vld [vmem:[#allocation8 + $0x948] sm:$0xff]
    %v902 = vld [vmem:[#allocation8 + $0x950] sm:$0xff]
    %v903 = vld [vmem:[#allocation8 + $0x958] sm:$0xff]
    %v904 = vld [vmem:[#allocation8 + $0x960] sm:$0xff]
    %v905 = vld [vmem:[#allocation8 + $0x968] sm:$0xff]
    %v906 = vld [vmem:[#allocation8 + $0x970] sm:$0xff]
    %v907 = vld [vmem:[#allocation8 + $0x978] sm:$0xff]
    %v908 = vld [vmem:[#allocation8 + $0x980] sm:$0xff]
    %v909 = vld [vmem:[#allocation8 + $0x988] sm:$0xff]
    %v910 = vld [vmem:[#allocation8 + $0x990] sm:$0xff]
    %v911 = vld [vmem:[#allocation8 + $0x998] sm:$0xff]
    %v912 = vld [vmem:[#allocation8 + $0x9a0] sm:$0xff]
    %v913 = vld [vmem:[#allocation8 + $0x9a8] sm:$0xff]
    %v914 = vld [vmem:[#allocation8 + $0x9b0] sm:$0xff]
    %v915 = vld [vmem:[#allocation8 + $0x9b8] sm:$0xff]
    %v916 = vld [vmem:[#allocation8 + $0x9c0] sm:$0xff]
    %v917 = vld [vmem:[#allocation8 + $0x9c8] sm:$0xff]
    %v918 = vld [vmem:[#allocation8 + $0x9d0] sm:$0xff]
    %v919 = vld [vmem:[#allocation8 + $0x9d8] sm:$0xff]
    %v920 = vld [vmem:[#allocation8 + $0x9e0] sm:$0xff]
    %v921 = vld [vmem:[#allocation8 + $0x9e8] sm:$0xff]
    %v922 = vld [vmem:[#allocation8 + $0x9f0] sm:$0xff]
    %v923 = vld [vmem:[#allocation8 + $0x9f8] sm:$0xff]
    %v924 = vld [vmem:[#allocation8 + $0xa00] sm:$0xff]
    %v925 = vld [vmem:[#allocation8 + $0xa08] sm:$0xff]
    %v926 = vld [vmem:[#allocation8 + $0xa10] sm:$0xff]
    %v927 = vld [vmem:[#allocation8 + $0xa18] sm:$0xff]
    %v928 = vld [vmem:[#allocation8 + $0xa20] sm:$0xff]
    %v929 = vld [vmem:[#allocation8 + $0xa28] sm:$0xff]
    %v930 = vld [vmem:[#allocation8 + $0xa30] sm:$0xff]
    %v931 = vld [vmem:[#allocation8 + $0xa38] sm:$0xff]
    %v932 = vld [vmem:[#allocation8 + $0xa40] sm:$0xff]
    %v933 = vld [vmem:[#allocation8 + $0xa48] sm:$0xff]
    %v934 = vld [vmem:[#allocation8 + $0xa50] sm:$0xff]
    %v935 = vld [vmem:[#allocation8 + $0xa58] sm:$0xff]
    %v936 = vld [vmem:[#allocation8 + $0xa60] sm:$0xff]
    %v937 = vld [vmem:[#allocation8 + $0xa68] sm:$0xff]
    %v938 = vld [vmem:[#allocation8 + $0xa70] sm:$0xff]
    %v939 = vld [vmem:[#allocation8 + $0xa78] sm:$0xff]
    %v940 = vld [vmem:[#allocation8 + $0xa80] sm:$0xff]
    %v941 = vld [vmem:[#allocation8 + $0xa88] sm:$0xff]
    %v942 = vld [vmem:[#allocation8 + $0xa90] sm:$0xff]
    %v943 = vld [vmem:[#allocation8 + $0xa98] sm:$0xff]
    %v944 = vld [vmem:[#allocation8 + $0xaa0] sm:$0xff]
    %v945 = vld [vmem:[#allocation8 + $0xaa8] sm:$0xff]
    %v946 = vld [vmem:[#allocation8 + $0xab0] sm:$0xff]
    %v947 = vld [vmem:[#allocation8 + $0xab8] sm:$0xff]
    %v948 = vld [vmem:[#allocation8 + $0xac0] sm:$0xff]
    %v949 = vld [vmem:[#allocation8 + $0xac8] sm:$0xff]
    %v950 = vld [vmem:[#allocation8 + $0xad0] sm:$0xff]
    %v951 = vld [vmem:[#allocation8 + $0xad8] sm:$0xff]
    %v952 = vld [vmem:[#allocation8 + $0xae0] sm:$0xff]
    %v953 = vld [vmem:[#allocation8 + $0xae8] sm:$0xff]
    %v954 = vld [vmem:[#allocation8 + $0xaf0] sm:$0xff]
    %v955 = vld [vmem:[#allocation8 + $0xaf8] sm:$0xff]
    %v956 = vld [vmem:[#allocation8 + $0xb00] sm:$0xff]
    %v957 = vld [vmem:[#allocation8 + $0xb08] sm:$0xff]
    %v958 = vld [vmem:[#allocation8 + $0xb10] sm:$0xff]
    %v959 = vld [vmem:[#allocation8 + $0xb18] sm:$0xff]
    %v960 = vld [vmem:[#allocation8 + $0xb20] sm:$0xff]
    %v961 = vld [vmem:[#allocation8 + $0xb28] sm:$0xff]
    %v962 = vld [vmem:[#allocation8 + $0xb30] sm:$0xff]
    %v963 = vld [vmem:[#allocation8 + $0xb38] sm:$0xff]
    %v964 = vld [vmem:[#allocation8 + $0xb40] sm:$0xff]
    %v965 = vld [vmem:[#allocation8 + $0xb48] sm:$0xff]
    %v966 = vld [vmem:[#allocation8 + $0xb50] sm:$0xff]
    %v967 = vld [vmem:[#allocation8 + $0xb58] sm:$0xff]
    %v968 = vld [vmem:[#allocation8 + $0xb60] sm:$0xff]
    %v969 = vld [vmem:[#allocation8 + $0xb68] sm:$0xff]
    %v970 = vld [vmem:[#allocation8 + $0xb70] sm:$0xff]
    %v971 = vld [vmem:[#allocation8 + $0xb78] sm:$0xff]
    %v972 = vld [vmem:[#allocation8 + $0xb80] sm:$0xff]
    %v973 = vld [vmem:[#allocation8 + $0xb88] sm:$0xff]
    %v974 = vld [vmem:[#allocation8 + $0xb90] sm:$0xff]
    %v975 = vld [vmem:[#allocation8 + $0xb98] sm:$0xff]
    %v976 = vld [vmem:[#allocation8 + $0xba0] sm:$0xff]
    %v977 = vld [vmem:[#allocation8 + $0xba8] sm:$0xff]
    %v978 = vld [vmem:[#allocation8 + $0xbb0] sm:$0xff]
    %v979 = vld [vmem:[#allocation8 + $0xbb8] sm:$0xff]
    %v980 = vld [vmem:[#allocation8 + $0xbc0] sm:$0xff]
    %v981 = vld [vmem:[#allocation8 + $0xbc8] sm:$0xff]
    %v982 = vld [vmem:[#allocation8 + $0xbd0] sm:$0xff]
    %v983 = vld [vmem:[#allocation8 + $0xbd8] sm:$0xff]
    %v984 = vld [vmem:[#allocation8 + $0xbe0] sm:$0xff]
    %v985 = vld [vmem:[#allocation8 + $0xbe8] sm:$0xff]
    %v986 = vld [vmem:[#allocation8 + $0xbf0] sm:$0xff]
    %v987 = vld [vmem:[#allocation8 + $0xbf8] sm:$0xff]
    %v988 = vld [vmem:[#allocation8 + $0xc00] sm:$0xff]
    %v989 = vld [vmem:[#allocation8 + $0xc08] sm:$0xff]
    %v990 = vld [vmem:[#allocation8 + $0xc10] sm:$0xff]
    %v991 = vld [vmem:[#allocation8 + $0xc18] sm:$0xff]
    %v992 = vld [vmem:[#allocation8 + $0xc20] sm:$0xff]
    %v993 = vld [vmem:[#allocation8 + $0xc28] sm:$0xff]
    %v994 = vld [vmem:[#allocation8 + $0xc30] sm:$0xff]
    %v995 = vld [vmem:[#allocation8 + $0xc38] sm:$0xff]
    %v996 = vld [vmem:[#allocation8 + $0xc40] sm:$0xff]
    %v997 = vld [vmem:[#allocation8 + $0xc48] sm:$0xff]
    %v998 = vld [vmem:[#allocation8 + $0xc50] sm:$0xff]
    %v999 = vld [vmem:[#allocation8 + $0xc58] sm:$0xff]
    %v1000 = vld [vmem:[#allocation8 + $0xc60] sm:$0xff]
    %v1001 = vld [vmem:[#allocation8 + $0xc68] sm:$0xff]
    %v1002 = vld [vmem:[#allocation8 + $0xc70] sm:$0xff]
    %v1003 = vld [vmem:[#allocation8 + $0xc78] sm:$0xff]
    %v1004 = vld [vmem:[#allocation8 + $0xc80] sm:$0xff]
    %v1005 = vld [vmem:[#allocation8 + $0xc88] sm:$0xff]
    %v1006 = vld [vmem:[#allocation8 + $0xc90] sm:$0xff]
    %v1007 = vld [vmem:[#allocation8 + $0xc98] sm:$0xff]
    %v1008 = vld [vmem:[#allocation8 + $0xca0] sm:$0xff]
    %v1009 = vld [vmem:[#allocation8 + $0xca8] sm:$0xff]
    %v1010 = vld [vmem:[#allocation8 + $0xcb0] sm:$0xff]
    %v1011 = vld [vmem:[#allocation8 + $0xcb8] sm:$0xff]
    %v1012 = vld [vmem:[#allocation8 + $0xcc0] sm:$0xff]
    %v1013 = vld [vmem:[#allocation8 + $0xcc8] sm:$0xff]
    %v1014 = vld [vmem:[#allocation8 + $0xcd0] sm:$0xff]
    %v1015 = vld [vmem:[#allocation8 + $0xcd8] sm:$0xff]
    %v1016 = vld [vmem:[#allocation8 + $0xce0] sm:$0xff]
    %v1017 = vld [vmem:[#allocation8 + $0xce8] sm:$0xff]
    %v1018 = vld [vmem:[#allocation8 + $0xcf0] sm:$0xff]
    %v1019 = vld [vmem:[#allocation8 + $0xcf8] sm:$0xff]
    %v1020 = vld [vmem:[#allocation8 + $0xd00] sm:$0xff]
    %v1021 = vld [vmem:[#allocation8 + $0xd08] sm:$0xff]
    %v1022 = vld [vmem:[#allocation8 + $0xd10] sm:$0xff]
    %v1023 = vld [vmem:[#allocation8 + $0xd18] sm:$0xff]
    %v1024 = vld [vmem:[#allocation8 + $0xd20] sm:$0xff]
    %v1025 = vld [vmem:[#allocation8 + $0xd28] sm:$0xff]
    %v1026 = vld [vmem:[#allocation8 + $0xd30] sm:$0xff]
    %v1027 = vld [vmem:[#allocation8 + $0xd38] sm:$0xff]
    %v1028 = vld [vmem:[#allocation8 + $0xd40] sm:$0xff]
    %v1029 = vld [vmem:[#allocation8 + $0xd48] sm:$0xff]
    %v1030 = vld [vmem:[#allocation8 + $0xd50] sm:$0xff]
    %v1031 = vld [vmem:[#allocation8 + $0xd58] sm:$0xff]
    %v1032 = vld [vmem:[#allocation8 + $0xd60] sm:$0xff]
    %v1033 = vld [vmem:[#allocation8 + $0xd68] sm:$0xff]
    %v1034 = vld [vmem:[#allocation8 + $0xd70] sm:$0xff]
    %v1035 = vld [vmem:[#allocation8 + $0xd78] sm:$0xff]
    %v1036 = vld [vmem:[#allocation8 + $0xd80] sm:$0xff]
    %v1037 = vld [vmem:[#allocation8 + $0xd88] sm:$0xff]
    %v1038 = vld [vmem:[#allocation8 + $0xd90] sm:$0xff]
    %v1039 = vld [vmem:[#allocation8 + $0xd98] sm:$0xff]
    %v1040 = vld [vmem:[#allocation8 + $0xda0] sm:$0xff]
    %v1041 = vld [vmem:[#allocation8 + $0xda8] sm:$0xff]
    %v1042 = vld [vmem:[#allocation8 + $0xdb0] sm:$0xff]
    %v1043 = vld [vmem:[#allocation8 + $0xdb8] sm:$0xff]
    %v1044 = vld [vmem:[#allocation8 + $0xdc0] sm:$0xff]
    %v1045 = vld [vmem:[#allocation8 + $0xdc8] sm:$0xff]
    %v1046 = vld [vmem:[#allocation8 + $0xdd0] sm:$0xff]
    %v1047 = vld [vmem:[#allocation8 + $0xdd8] sm:$0xff]
    %v1048 = vld [vmem:[#allocation8 + $0xde0] sm:$0xff]
    %v1049 = vld [vmem:[#allocation8 + $0xde8] sm:$0xff]
    %v1050 = vld [vmem:[#allocation8 + $0xdf0] sm:$0xff]
    %v1051 = vld [vmem:[#allocation8 + $0xdf8] sm:$0xff]
    %v1052 = vld [vmem:[#allocation8 + $0xe00] sm:$0xff]
    %v1053 = vld [vmem:[#allocation8 + $0xe08] sm:$0xff]
    %v1054 = vld [vmem:[#allocation8 + $0xe10] sm:$0xff]
    %v1055 = vld [vmem:[#allocation8 + $0xe18] sm:$0xff]
    %v1056 = vld [vmem:[#allocation8 + $0xe20] sm:$0xff]
    %v1057 = vld [vmem:[#allocation8 + $0xe28] sm:$0xff]
    %v1058 = vld [vmem:[#allocation8 + $0xe30] sm:$0xff]
    %v1059 = vld [vmem:[#allocation8 + $0xe38] sm:$0xff]
    %v1060 = vld [vmem:[#allocation8 + $0xe40] sm:$0xff]
    %v1061 = vld [vmem:[#allocation8 + $0xe48] sm:$0xff]
    %v1062 = vld [vmem:[#allocation8 + $0xe50] sm:$0xff]
    %v1063 = vld [vmem:[#allocation8 + $0xe58] sm:$0xff]
    %v1064 = vld [vmem:[#allocation8 + $0xe60] sm:$0xff]
    %v1065 = vld [vmem:[#allocation8 + $0xe68] sm:$0xff]
    %v1066 = vld [vmem:[#allocation8 + $0xe70] sm:$0xff]
    %v1067 = vld [vmem:[#allocation8 + $0xe78] sm:$0xff]
    %v1068 = vld [vmem:[#allocation8 + $0xe80] sm:$0xff]
    %v1069 = vld [vmem:[#allocation8 + $0xe88] sm:$0xff]
    %v1070 = vld [vmem:[#allocation8 + $0xe90] sm:$0xff]
    %v1071 = vld [vmem:[#allocation8 + $0xe98] sm:$0xff]
    %v1072 = vld [vmem:[#allocation8 + $0xea0] sm:$0xff]
    %v1073 = vld [vmem:[#allocation8 + $0xea8] sm:$0xff]
    %v1074 = vld [vmem:[#allocation8 + $0xeb0] sm:$0xff]
    %v1075 = vld [vmem:[#allocation8 + $0xeb8] sm:$0xff]
    %v1076 = vld [vmem:[#allocation8 + $0xec0] sm:$0xff]
    %v1077 = vld [vmem:[#allocation8 + $0xec8] sm:$0xff]
    %v1078 = vld [vmem:[#allocation8 + $0xed0] sm:$0xff]
    %v1079 = vld [vmem:[#allocation8 + $0xed8] sm:$0xff]
    %v1080 = vld [vmem:[#allocation8 + $0xee0] sm:$0xff]
    %v1081 = vld [vmem:[#allocation8 + $0xee8] sm:$0xff]
    %v1082 = vld [vmem:[#allocation8 + $0xef0] sm:$0xff]
    %v1083 = vld [vmem:[#allocation8 + $0xef8] sm:$0xff]
    %v1084 = vld [vmem:[#allocation8 + $0xf00] sm:$0xff]
    %v1085 = vld [vmem:[#allocation8 + $0xf08] sm:$0xff]
    %v1086 = vld [vmem:[#allocation8 + $0xf10] sm:$0xff]
    %v1087 = vld [vmem:[#allocation8 + $0xf18] sm:$0xff]
    %v1088 = vld [vmem:[#allocation8 + $0xf20] sm:$0xff]
    %v1089 = vld [vmem:[#allocation8 + $0xf28] sm:$0xff]
    %v1090 = vld [vmem:[#allocation8 + $0xf30] sm:$0xff]
    %v1091 = vld [vmem:[#allocation8 + $0xf38] sm:$0xff]
    %v1092 = vld [vmem:[#allocation8 + $0xf40] sm:$0xff]
    %v1093 = vld [vmem:[#allocation8 + $0xf48] sm:$0xff]
    %v1094 = vld [vmem:[#allocation8 + $0xf50] sm:$0xff]
    %v1095 = vld [vmem:[#allocation8 + $0xf58] sm:$0xff]
    %v1096 = vld [vmem:[#allocation8 + $0xf60] sm:$0xff]
    %v1097 = vld [vmem:[#allocation8 + $0xf68] sm:$0xff]
    %v1098 = vld [vmem:[#allocation8 + $0xf70] sm:$0xff]
    %v1099 = vld [vmem:[#allocation8 + $0xf78] sm:$0xff]
    %v1100 = vld [vmem:[#allocation8 + $0xf80] sm:$0xff]
    %v1101 = vld [vmem:[#allocation8 + $0xf88] sm:$0xff]
    %v1102 = vld [vmem:[#allocation8 + $0xf90] sm:$0xff]
    %v1103 = vld [vmem:[#allocation8 + $0xf98] sm:$0xff]
    %v1104 = vld [vmem:[#allocation8 + $0xfa0] sm:$0xff]
    %v1105 = vld [vmem:[#allocation8 + $0xfa8] sm:$0xff]
    %v1106 = vld [vmem:[#allocation8 + $0xfb0] sm:$0xff]
    %v1107 = vld [vmem:[#allocation8 + $0xfb8] sm:$0xff]
    %v1108 = vld [vmem:[#allocation8 + $0xfc0] sm:$0xff]
    %v1109 = vld [vmem:[#allocation8 + $0xfc8] sm:$0xff]
    %v1110 = vld [vmem:[#allocation8 + $0xfd0] sm:$0xff]
    %v1111 = vld [vmem:[#allocation8 + $0xfd8] sm:$0xff]
    %v1112 = vld [vmem:[#allocation8 + $0xfe0] sm:$0xff]
    %v1113 = vld [vmem:[#allocation8 + $0xfe8] sm:$0xff]
    %v1114 = vld [vmem:[#allocation8 + $0xff0] sm:$0xff]
    %v1115 = vld [vmem:[#allocation8 + $0xff8] sm:$0xff]
    %v1116 = vld [vmem:[#allocation8 + $0x1000] sm:$0xff]
    %v1117 = vld [vmem:[#allocation8 + $0x1008] sm:$0xff]
    %v1118 = vld [vmem:[#allocation8 + $0x1010] sm:$0xff]
    %v1119 = vld [vmem:[#allocation8 + $0x1018] sm:$0xff]
    %v1120 = vld [vmem:[#allocation8 + $0x1020] sm:$0xff]
    %v1121 = vld [vmem:[#allocation8 + $0x1028] sm:$0xff]
    %v1122 = vld [vmem:[#allocation8 + $0x1030] sm:$0xff]
    %v1123 = vld [vmem:[#allocation8 + $0x1038] sm:$0xff]
    %v1124 = vld [vmem:[#allocation8 + $0x1040] sm:$0xff]
    %v1125 = vld [vmem:[#allocation8 + $0x1048] sm:$0xff]
    %v1126 = vld [vmem:[#allocation8 + $0x1050] sm:$0xff]
    %v1127 = vld [vmem:[#allocation8 + $0x1058] sm:$0xff]
    %v1128 = vld [vmem:[#allocation8 + $0x1060] sm:$0xff]
    %v1129 = vld [vmem:[#allocation8 + $0x1068] sm:$0xff]
    %v1130 = vld [vmem:[#allocation8 + $0x1070] sm:$0xff]
    %v1131 = vld [vmem:[#allocation8 + $0x1078] sm:$0xff]
    %v1132 = vld [vmem:[#allocation8 + $0x1080] sm:$0xff]
    %v1133 = vld [vmem:[#allocation8 + $0x1088] sm:$0xff]
    %v1134 = vld [vmem:[#allocation8 + $0x1090] sm:$0xff]
    %v1135 = vld [vmem:[#allocation8 + $0x1098] sm:$0xff]
    %v1136 = vld [vmem:[#allocation8 + $0x10a0] sm:$0xff]
    %v1137 = vld [vmem:[#allocation8 + $0x10a8] sm:$0xff]
    %v1138 = vld [vmem:[#allocation8 + $0x10b0] sm:$0xff]
    %v1139 = vld [vmem:[#allocation8 + $0x10b8] sm:$0xff]
    %v1140 = vld [vmem:[#allocation8 + $0x10c0] sm:$0xff]
    %v1141 = vld [vmem:[#allocation8 + $0x10c8] sm:$0xff]
    %v1142 = vld [vmem:[#allocation8 + $0x10d0] sm:$0xff]
    %v1143 = vld [vmem:[#allocation8 + $0x10d8] sm:$0xff]
    %v1144 = vld [vmem:[#allocation8 + $0x10e0] sm:$0xff]
    %v1145 = vld [vmem:[#allocation8 + $0x10e8] sm:$0xff]
    %v1146 = vld [vmem:[#allocation8 + $0x10f0] sm:$0xff]
    %v1147 = vld [vmem:[#allocation8 + $0x10f8] sm:$0xff]
    %v1148 = vld [vmem:[#allocation8 + $0x1100] sm:$0xff]
    %v1149 = vld [vmem:[#allocation8 + $0x1108] sm:$0xff]
    %v1150 = vld [vmem:[#allocation8 + $0x1110] sm:$0xff]
    %v1151 = vld [vmem:[#allocation8 + $0x1118] sm:$0xff]
    %v1152 = vld [vmem:[#allocation8 + $0x1120] sm:$0xff]
    %v1153 = vld [vmem:[#allocation8 + $0x1128] sm:$0xff]
    %v1154 = vld [vmem:[#allocation8 + $0x1130] sm:$0xff]
    %v1155 = vld [vmem:[#allocation8 + $0x1138] sm:$0xff]
    %v1156 = vld [vmem:[#allocation8 + $0x1140] sm:$0xff]
    %v1157 = vld [vmem:[#allocation8 + $0x1148] sm:$0xff]
    %v1158 = vld [vmem:[#allocation8 + $0x1150] sm:$0xff]
    %v1159 = vld [vmem:[#allocation8 + $0x1158] sm:$0xff]
    %v1160 = vld [vmem:[#allocation8 + $0x1160] sm:$0xff]
    %v1161 = vld [vmem:[#allocation8 + $0x1168] sm:$0xff]
    %v1162 = vld [vmem:[#allocation8 + $0x1170] sm:$0xff]
    %v1163 = vld [vmem:[#allocation8 + $0x1178] sm:$0xff]
    %v1164 = vld [vmem:[#allocation8 + $0x1180] sm:$0xff]
    %v1165 = vld [vmem:[#allocation8 + $0x1188] sm:$0xff]
    %v1166 = vld [vmem:[#allocation8 + $0x1190] sm:$0xff]
    %v1167 = vld [vmem:[#allocation8 + $0x1198] sm:$0xff]
    %v1168 = vld [vmem:[#allocation8 + $0x11a0] sm:$0xff]
    %v1169 = vld [vmem:[#allocation8 + $0x11a8] sm:$0xff]
    %v1170 = vld [vmem:[#allocation8 + $0x11b0] sm:$0xff]
    %v1171 = vld [vmem:[#allocation8 + $0x11b8] sm:$0xff]
    %v1172 = vld [vmem:[#allocation8 + $0x11c0] sm:$0xff]
    %v1173 = vld [vmem:[#allocation8 + $0x11c8] sm:$0xff]
    %v1174 = vld [vmem:[#allocation8 + $0x11d0] sm:$0xff]
    %v1175 = vld [vmem:[#allocation8 + $0x11d8] sm:$0xff]
    %v1176 = vld [vmem:[#allocation8 + $0x11e0] sm:$0xff]
    %v1177 = vld [vmem:[#allocation8 + $0x11e8] sm:$0xff]
    %v1178 = vld [vmem:[#allocation8 + $0x11f0] sm:$0xff]
    %v1179 = vld [vmem:[#allocation8 + $0x11f8] sm:$0xff]
    %v1180 = vld [vmem:[#allocation8 + $0x1200] sm:$0xff]
    %v1181 = vld [vmem:[#allocation8 + $0x1208] sm:$0xff]
    %v1182 = vld [vmem:[#allocation8 + $0x1210] sm:$0xff]
    %v1183 = vld [vmem:[#allocation8 + $0x1218] sm:$0xff]
    %v1184 = vld [vmem:[#allocation8 + $0x1220] sm:$0xff]
    %v1185 = vld [vmem:[#allocation8 + $0x1228] sm:$0xff]
    %v1186 = vld [vmem:[#allocation8 + $0x1230] sm:$0xff]
    %v1187 = vld [vmem:[#allocation8 + $0x1238] sm:$0xff]
    %v1188 = vld [vmem:[#allocation8 + $0x1240] sm:$0xff]
    %v1189 = vld [vmem:[#allocation8 + $0x1248] sm:$0xff]
    %v1190 = vld [vmem:[#allocation8 + $0x1250] sm:$0xff]
    %v1191 = vld [vmem:[#allocation8 + $0x1258] sm:$0xff]
    %v1192 = vld [vmem:[#allocation8 + $0x1260] sm:$0xff]
    %v1193 = vld [vmem:[#allocation8 + $0x1268] sm:$0xff]
    %v1194 = vld [vmem:[#allocation8 + $0x1270] sm:$0xff]
    %v1195 = vld [vmem:[#allocation8 + $0x1278] sm:$0xff]
    %v1196 = vld [vmem:[#allocation8 + $0x1280] sm:$0xff]
    %v1197 = vld [vmem:[#allocation8 + $0x1288] sm:$0xff]
    %v1198 = vld [vmem:[#allocation8 + $0x1290] sm:$0xff]
    %v1199 = vld [vmem:[#allocation8 + $0x1298] sm:$0xff]
    %v1200 = vld [vmem:[#allocation8 + $0x12a0] sm:$0xff]
    %v1201 = vld [vmem:[#allocation8 + $0x12a8] sm:$0xff]
    %v1202 = vld [vmem:[#allocation8 + $0x12b0] sm:$0xff]
    %v1203 = vld [vmem:[#allocation8 + $0x12b8] sm:$0xff]
    %v1204 = vld [vmem:[#allocation8 + $0x12c0] sm:$0xff]
    %v1205 = vld [vmem:[#allocation8 + $0x12c8] sm:$0xff]
    %v1206 = vld [vmem:[#allocation8 + $0x12d0] sm:$0xff]
    %v1207 = vld [vmem:[#allocation8 + $0x12d8] sm:$0xff]
    %v1208 = vld [vmem:[#allocation8 + $0x12e0] sm:$0xff]
    %v1209 = vld [vmem:[#allocation8 + $0x12e8] sm:$0xff]
    %v1210 = vld [vmem:[#allocation8 + $0x12f0] sm:$0xff]
    %v1211 = vld [vmem:[#allocation8 + $0x12f8] sm:$0xff]
    %v1212 = vld [vmem:[#allocation8 + $0x1300] sm:$0xff]
    %v1213 = vld [vmem:[#allocation8 + $0x1308] sm:$0xff]
    %v1214 = vld [vmem:[#allocation8 + $0x1310] sm:$0xff]
    %v1215 = vld [vmem:[#allocation8 + $0x1318] sm:$0xff]
    %v1216 = vld [vmem:[#allocation8 + $0x1320] sm:$0xff]
    %v1217 = vld [vmem:[#allocation8 + $0x1328] sm:$0xff]
    %v1218 = vld [vmem:[#allocation8 + $0x1330] sm:$0xff]
    %v1219 = vld [vmem:[#allocation8 + $0x1338] sm:$0xff]
    %v1220 = vld [vmem:[#allocation8 + $0x1340] sm:$0xff]
    %v1221 = vld [vmem:[#allocation8 + $0x1348] sm:$0xff]
    %v1222 = vld [vmem:[#allocation8 + $0x1350] sm:$0xff]
    %v1223 = vld [vmem:[#allocation8 + $0x1358] sm:$0xff]
    %v1224 = vld [vmem:[#allocation8 + $0x1360] sm:$0xff]
    %v1225 = vld [vmem:[#allocation8 + $0x1368] sm:$0xff]
    %v1226 = vld [vmem:[#allocation8 + $0x1370] sm:$0xff]
    %v1227 = vld [vmem:[#allocation8 + $0x1378] sm:$0xff]
    %v1228 = vld [vmem:[#allocation8 + $0x1380] sm:$0xff]
    %v1229 = vld [vmem:[#allocation8 + $0x1388] sm:$0xff]
    %v1230 = vld [vmem:[#allocation8 + $0x1390] sm:$0xff]
    %v1231 = vld [vmem:[#allocation8 + $0x1398] sm:$0xff]
    %v1232 = vld [vmem:[#allocation8 + $0x13a0] sm:$0xff]
    %v1233 = vld [vmem:[#allocation8 + $0x13a8] sm:$0xff]
    %v1234 = vld [vmem:[#allocation8 + $0x13b0] sm:$0xff]
    %v1235 = vld [vmem:[#allocation8 + $0x13b8] sm:$0xff]
    %v1236 = vld [vmem:[#allocation8 + $0x13c0] sm:$0xff]
    %v1237 = vld [vmem:[#allocation8 + $0x13c8] sm:$0xff]
    %v1238 = vld [vmem:[#allocation8 + $0x13d0] sm:$0xff]
    %v1239 = vld [vmem:[#allocation8 + $0x13d8] sm:$0xff]
    %v1240 = vld [vmem:[#allocation8 + $0x13e0] sm:$0xff]
    %v1241 = vld [vmem:[#allocation8 + $0x13e8] sm:$0xff]
    %v1242 = vld [vmem:[#allocation8 + $0x13f0] sm:$0xff]
    %v1243 = vld [vmem:[#allocation8 + $0x13f8] sm:$0xff]
    %v1244 = vld [vmem:[#allocation8 + $0x1400] sm:$0xff]
    %v1245 = vld [vmem:[#allocation8 + $0x1408] sm:$0xff]
    %v1246 = vld [vmem:[#allocation8 + $0x1410] sm:$0xff]
    %v1247 = vld [vmem:[#allocation8 + $0x1418] sm:$0xff]
    %v1248 = vld [vmem:[#allocation8 + $0x1420] sm:$0xff]
    %v1249 = vld [vmem:[#allocation8 + $0x1428] sm:$0xff]
    %v1250 = vld [vmem:[#allocation8 + $0x1430] sm:$0xff]
    %v1251 = vld [vmem:[#allocation8 + $0x1438] sm:$0xff]
    %v1252 = vld [vmem:[#allocation8 + $0x1440] sm:$0xff]
    %v1253 = vld [vmem:[#allocation8 + $0x1448] sm:$0xff]
    %v1254 = vld [vmem:[#allocation8 + $0x1450] sm:$0xff]
    %v1255 = vld [vmem:[#allocation8 + $0x1458] sm:$0xff]
    %v1256 = vld [vmem:[#allocation8 + $0x1460] sm:$0xff]
    %v1257 = vld [vmem:[#allocation8 + $0x1468] sm:$0xff]
    %v1258 = vld [vmem:[#allocation8 + $0x1470] sm:$0xff]
    %v1259 = vld [vmem:[#allocation8 + $0x1478] sm:$0xff]
    %v1260 = vld [vmem:[#allocation8 + $0x1480] sm:$0xff]
    %v1261 = vld [vmem:[#allocation8 + $0x1488] sm:$0xff]
    %v1262 = vld [vmem:[#allocation8 + $0x1490] sm:$0xff]
    %v1263 = vld [vmem:[#allocation8 + $0x1498] sm:$0xff]
    %v1264 = vld [vmem:[#allocation8 + $0x14a0] sm:$0xff]
    %v1265 = vld [vmem:[#allocation8 + $0x14a8] sm:$0xff]
    %v1266 = vld [vmem:[#allocation8 + $0x14b0] sm:$0xff]
    %v1267 = vld [vmem:[#allocation8 + $0x14b8] sm:$0xff]
    %v1268 = vld [vmem:[#allocation8 + $0x14c0] sm:$0xff]
    %v1269 = vld [vmem:[#allocation8 + $0x14c8] sm:$0xff]
    %v1270 = vld [vmem:[#allocation8 + $0x14d0] sm:$0xff]
    %v1271 = vld [vmem:[#allocation8 + $0x14d8] sm:$0xff]
    %v1272 = vld [vmem:[#allocation8 + $0x14e0] sm:$0xff]
    %v1273 = vld [vmem:[#allocation8 + $0x14e8] sm:$0xff]
    %v1274 = vld [vmem:[#allocation8 + $0x14f0] sm:$0xff]
    %v1275 = vld [vmem:[#allocation8 + $0x14f8] sm:$0xff]
    %v1276 = vld [vmem:[#allocation8 + $0x1500] sm:$0xff]
    %v1277 = vld [vmem:[#allocation8 + $0x1508] sm:$0xff]
    %v1278 = vld [vmem:[#allocation8 + $0x1510] sm:$0xff]
    %v1279 = vld [vmem:[#allocation8 + $0x1518] sm:$0xff]
    %v1280 = vld [vmem:[#allocation8 + $0x1520] sm:$0xff]
    %v1281 = vld [vmem:[#allocation8 + $0x1528] sm:$0xff]
    %v1282 = vld [vmem:[#allocation8 + $0x1530] sm:$0xff]
    %v1283 = vld [vmem:[#allocation8 + $0x1538] sm:$0xff]
    %v1284 = vld [vmem:[#allocation8 + $0x1540] sm:$0xff]
    %v1285 = vld [vmem:[#allocation8 + $0x1548] sm:$0xff]
    %v1286 = vld [vmem:[#allocation8 + $0x1550] sm:$0xff]
    %v1287 = vld [vmem:[#allocation8 + $0x1558] sm:$0xff]
    %v1288 = vld [vmem:[#allocation8 + $0x1560] sm:$0xff]
    %v1289 = vld [vmem:[#allocation8 + $0x1568] sm:$0xff]
    %v1290 = vld [vmem:[#allocation8 + $0x1570] sm:$0xff]
    %v1291 = vld [vmem:[#allocation8 + $0x1578] sm:$0xff]
    %v1292 = vld [vmem:[#allocation8 + $0x1580] sm:$0xff]
    %v1293 = vld [vmem:[#allocation8 + $0x1588] sm:$0xff]
    %v1294 = vld [vmem:[#allocation8 + $0x1590] sm:$0xff]
    %v1295 = vld [vmem:[#allocation8 + $0x1598] sm:$0xff]
    %v1296 = vld [vmem:[#allocation8 + $0x15a0] sm:$0xff]
    %v1297 = vld [vmem:[#allocation8 + $0x15a8] sm:$0xff]
    %v1298 = vld [vmem:[#allocation8 + $0x15b0] sm:$0xff]
    %v1299 = vld [vmem:[#allocation8 + $0x15b8] sm:$0xff]
    %v1300 = vld [vmem:[#allocation8 + $0x15c0] sm:$0xff]
    %v1301 = vld [vmem:[#allocation8 + $0x15c8] sm:$0xff]
    %v1302 = vld [vmem:[#allocation8 + $0x15d0] sm:$0xff]
    %v1303 = vld [vmem:[#allocation8 + $0x15d8] sm:$0xff]
    %v1304 = vld [vmem:[#allocation8 + $0x15e0] sm:$0xff]
    %v1305 = vld [vmem:[#allocation8 + $0x15e8] sm:$0xff]
    %v1306 = vld [vmem:[#allocation8 + $0x15f0] sm:$0xff]
    %v1307 = vld [vmem:[#allocation8 + $0x15f8] sm:$0xff]
    %v1308 = vld [vmem:[#allocation8 + $0x1600] sm:$0xff]
    %v1309 = vld [vmem:[#allocation8 + $0x1608] sm:$0xff]
    %v1310 = vld [vmem:[#allocation8 + $0x1610] sm:$0xff]
    %v1311 = vld [vmem:[#allocation8 + $0x1618] sm:$0xff]
    %v1312 = vld [vmem:[#allocation8 + $0x1620] sm:$0xff]
    %v1313 = vld [vmem:[#allocation8 + $0x1628] sm:$0xff]
    %v1314 = vld [vmem:[#allocation8 + $0x1630] sm:$0xff]
    %v1315 = vld [vmem:[#allocation8 + $0x1638] sm:$0xff]
    %v1316 = vld [vmem:[#allocation8 + $0x1640] sm:$0xff]
    %v1317 = vld [vmem:[#allocation8 + $0x1648] sm:$0xff]
    %v1318 = vld [vmem:[#allocation8 + $0x1650] sm:$0xff]
    %v1319 = vld [vmem:[#allocation8 + $0x1658] sm:$0xff]
    %v1320 = vld [vmem:[#allocation8 + $0x1660] sm:$0xff]
    %v1321 = vld [vmem:[#allocation8 + $0x1668] sm:$0xff]
    %v1322 = vld [vmem:[#allocation8 + $0x1670] sm:$0xff]
    %v1323 = vld [vmem:[#allocation8 + $0x1678] sm:$0xff]
    %v1324 = vld [vmem:[#allocation8 + $0x1680] sm:$0xff]
    %v1325 = vld [vmem:[#allocation8 + $0x1688] sm:$0xff]
    %v1326 = vld [vmem:[#allocation8 + $0x1690] sm:$0xff]
    %v1327 = vld [vmem:[#allocation8 + $0x1698] sm:$0xff]
    %v1328 = vld [vmem:[#allocation8 + $0x16a0] sm:$0xff]
    %v1329 = vld [vmem:[#allocation8 + $0x16a8] sm:$0xff]
    %v1330 = vld [vmem:[#allocation8 + $0x16b0] sm:$0xff]
    %v1331 = vld [vmem:[#allocation8 + $0x16b8] sm:$0xff]
    %v1332 = vld [vmem:[#allocation8 + $0x16c0] sm:$0xff]
    %v1333 = vld [vmem:[#allocation8 + $0x16c8] sm:$0xff]
    %v1334 = vld [vmem:[#allocation8 + $0x16d0] sm:$0xff]
    %v1335 = vld [vmem:[#allocation8 + $0x16d8] sm:$0xff]
    %v1336 = vld [vmem:[#allocation8 + $0x16e0] sm:$0xff]
    %v1337 = vld [vmem:[#allocation8 + $0x16e8] sm:$0xff]
    %v1338 = vld [vmem:[#allocation8 + $0x16f0] sm:$0xff]
    %v1339 = vld [vmem:[#allocation8 + $0x16f8] sm:$0xff]
    %v1340 = vld [vmem:[#allocation8 + $0x1700] sm:$0xff]
    %v1341 = vld [vmem:[#allocation8 + $0x1708] sm:$0xff]
    %v1342 = vld [vmem:[#allocation8 + $0x1710] sm:$0xff]
    %v1343 = vld [vmem:[#allocation8 + $0x1718] sm:$0xff]
    %v1344 = vld [vmem:[#allocation8 + $0x1720] sm:$0xff]
    %v1345 = vld [vmem:[#allocation8 + $0x1728] sm:$0xff]
    %v1346 = vld [vmem:[#allocation8 + $0x1730] sm:$0xff]
    %v1347 = vld [vmem:[#allocation8 + $0x1738] sm:$0xff]
    %v1348 = vld [vmem:[#allocation8 + $0x1740] sm:$0xff]
    %v1349 = vld [vmem:[#allocation8 + $0x1748] sm:$0xff]
    %v1350 = vld [vmem:[#allocation8 + $0x1750] sm:$0xff]
    %v1351 = vld [vmem:[#allocation8 + $0x1758] sm:$0xff]
    %v1352 = vld [vmem:[#allocation8 + $0x1760] sm:$0xff]
    %v1353 = vld [vmem:[#allocation8 + $0x1768] sm:$0xff]
    %v1354 = vld [vmem:[#allocation8 + $0x1770] sm:$0xff]
    %v1355 = vld [vmem:[#allocation8 + $0x1778] sm:$0xff]
    %v1356 = vld [vmem:[#allocation8 + $0x1780] sm:$0xff]
    %v1357 = vld [vmem:[#allocation8 + $0x1788] sm:$0xff]
    %v1358 = vld [vmem:[#allocation8 + $0x1790] sm:$0xff]
    %v1359 = vld [vmem:[#allocation8 + $0x1798] sm:$0xff]
    %v1360 = vld [vmem:[#allocation8 + $0x17a0] sm:$0xff]
    %v1361 = vld [vmem:[#allocation8 + $0x17a8] sm:$0xff]
    %v1362 = vld [vmem:[#allocation8 + $0x17b0] sm:$0xff]
    %v1363 = vld [vmem:[#allocation8 + $0x17b8] sm:$0xff]
    %v1364 = vld [vmem:[#allocation8 + $0x17c0] sm:$0xff]
    %v1365 = vld [vmem:[#allocation8 + $0x17c8] sm:$0xff]
    %v1366 = vld [vmem:[#allocation8 + $0x17d0] sm:$0xff]
    %v1367 = vld [vmem:[#allocation8 + $0x17d8] sm:$0xff]
    %v1368 = vld [vmem:[#allocation8 + $0x17e0] sm:$0xff]
    %v1369 = vld [vmem:[#allocation8 + $0x17e8] sm:$0xff]
    %v1370 = vld [vmem:[#allocation8 + $0x17f0] sm:$0xff]
    %v1371 = vld [vmem:[#allocation8 + $0x17f8] sm:$0xff]
    %v1372 = vld [vmem:[#allocation8 + $0x1800] sm:$0xff]
    %v1373 = vld [vmem:[#allocation8 + $0x1808] sm:$0xff]
    %v1374 = vld [vmem:[#allocation8 + $0x1810] sm:$0xff]
    %v1375 = vld [vmem:[#allocation8 + $0x1818] sm:$0xff]
    %v1376 = vld [vmem:[#allocation8 + $0x1820] sm:$0xff]
    %v1377 = vld [vmem:[#allocation8 + $0x1828] sm:$0xff]
    %v1378 = vld [vmem:[#allocation8 + $0x1830] sm:$0xff]
    %v1379 = vld [vmem:[#allocation8 + $0x1838] sm:$0xff]
    %v1380 = vld [vmem:[#allocation8 + $0x1840] sm:$0xff]
    %v1381 = vld [vmem:[#allocation8 + $0x1848] sm:$0xff]
    %v1382 = vld [vmem:[#allocation8 + $0x1850] sm:$0xff]
    %v1383 = vld [vmem:[#allocation8 + $0x1858] sm:$0xff]
    %v1384 = vld [vmem:[#allocation8 + $0x1860] sm:$0xff]
    %v1385 = vld [vmem:[#allocation8 + $0x1868] sm:$0xff]
    %v1386 = vld [vmem:[#allocation8 + $0x1870] sm:$0xff]
    %v1387 = vld [vmem:[#allocation8 + $0x1878] sm:$0xff]
    %v1388 = vld [vmem:[#allocation8 + $0x1880] sm:$0xff]
    %v1389 = vld [vmem:[#allocation8 + $0x1888] sm:$0xff]
    %v1390 = vld [vmem:[#allocation8 + $0x1890] sm:$0xff]
    %v1391 = vld [vmem:[#allocation8 + $0x1898] sm:$0xff]
    %v1392 = vld [vmem:[#allocation8 + $0x18a0] sm:$0xff]
    %v1393 = vld [vmem:[#allocation8 + $0x18a8] sm:$0xff]
    %v1394 = vld [vmem:[#allocation8 + $0x18b0] sm:$0xff]
    %v1395 = vld [vmem:[#allocation8 + $0x18b8] sm:$0xff]
    %v1396 = vld [vmem:[#allocation8 + $0x18c0] sm:$0xff]
    %v1397 = vld [vmem:[#allocation8 + $0x18c8] sm:$0xff]
    %v1398 = vld [vmem:[#allocation8 + $0x18d0] sm:$0xff]
    %v1399 = vld [vmem:[#allocation8 + $0x18d8] sm:$0xff]
    %v1400 = vld [vmem:[#allocation8 + $0x18e0] sm:$0xff]
    %v1401 = vld [vmem:[#allocation8 + $0x18e8] sm:$0xff]
    %v1402 = vld [vmem:[#allocation8 + $0x18f0] sm:$0xff]
    %v1403 = vld [vmem:[#allocation8 + $0x18f8] sm:$0xff]
    %v1404 = vld [vmem:[#allocation8 + $0x1900] sm:$0xff]
    %v1405 = vld [vmem:[#allocation8 + $0x1908] sm:$0xff]
    %v1406 = vld [vmem:[#allocation8 + $0x1910] sm:$0xff]
    %v1407 = vld [vmem:[#allocation8 + $0x1918] sm:$0xff]
    %v1408 = vld [vmem:[#allocation8 + $0x1920] sm:$0xff]
    %v1409 = vld [vmem:[#allocation8 + $0x1928] sm:$0xff]
    %v1410 = vld [vmem:[#allocation8 + $0x1930] sm:$0xff]
    %v1411 = vld [vmem:[#allocation8 + $0x1938] sm:$0xff]
    %v1412 = vld [vmem:[#allocation8 + $0x1940] sm:$0xff]
    %v1413 = vld [vmem:[#allocation8 + $0x1948] sm:$0xff]
    %v1414 = vld [vmem:[#allocation8 + $0x1950] sm:$0xff]
    %v1415 = vld [vmem:[#allocation8 + $0x1958] sm:$0xff]
    %v1416 = vld [vmem:[#allocation8 + $0x1960] sm:$0xff]
    %v1417 = vld [vmem:[#allocation8 + $0x1968] sm:$0xff]
    %v1418 = vld [vmem:[#allocation8 + $0x1970] sm:$0xff]
    %v1419 = vld [vmem:[#allocation8 + $0x1978] sm:$0xff]
    %v1420 = vld [vmem:[#allocation8 + $0x1980] sm:$0xff]
    %v1421 = vld [vmem:[#allocation8 + $0x1988] sm:$0xff]
    %v1422 = vld [vmem:[#allocation8 + $0x1990] sm:$0xff]
    %v1423 = vld [vmem:[#allocation8 + $0x1998] sm:$0xff]
    %v1424 = vld [vmem:[#allocation8 + $0x19a0] sm:$0xff]
    %v1425 = vld [vmem:[#allocation8 + $0x19a8] sm:$0xff]
    %v1426 = vld [vmem:[#allocation8 + $0x19b0] sm:$0xff]
    %v1427 = vld [vmem:[#allocation8 + $0x19b8] sm:$0xff]
    %v1428 = vld [vmem:[#allocation8 + $0x19c0] sm:$0xff]
    %v1429 = vld [vmem:[#allocation8 + $0x19c8] sm:$0xff]
    %v1430 = vld [vmem:[#allocation8 + $0x19d0] sm:$0xff]
    %v1431 = vld [vmem:[#allocation8 + $0x19d8] sm:$0xff]
    %v1432 = vld [vmem:[#allocation8 + $0x19e0] sm:$0xff]
    %v1433 = vld [vmem:[#allocation8 + $0x19e8] sm:$0xff]
    %v1434 = vld [vmem:[#allocation8 + $0x19f0] sm:$0xff]
    %v1435 = vld [vmem:[#allocation8 + $0x19f8] sm:$0xff]
    %v1436 = vld [vmem:[#allocation8 + $0x1a00] sm:$0xff]
    %v1437 = vld [vmem:[#allocation8 + $0x1a08] sm:$0xff]
    %v1438 = vld [vmem:[#allocation8 + $0x1a10] sm:$0xff]
    %v1439 = vld [vmem:[#allocation8 + $0x1a18] sm:$0xff]
    %v1440 = vld [vmem:[#allocation8 + $0x1a20] sm:$0xff]
    %v1441 = vld [vmem:[#allocation8 + $0x1a28] sm:$0xff]
    %v1442 = vld [vmem:[#allocation8 + $0x1a30] sm:$0xff]
    %v1443 = vld [vmem:[#allocation8 + $0x1a38] sm:$0xff]
    %v1444 = vld [vmem:[#allocation8 + $0x1a40] sm:$0xff]
    %v1445 = vld [vmem:[#allocation8 + $0x1a48] sm:$0xff]
    %v1446 = vld [vmem:[#allocation8 + $0x1a50] sm:$0xff]
    %v1447 = vld [vmem:[#allocation8 + $0x1a58] sm:$0xff]
    %v1448 = vld [vmem:[#allocation8 + $0x1a60] sm:$0xff]
    %v1449 = vld [vmem:[#allocation8 + $0x1a68] sm:$0xff]
    %v1450 = vld [vmem:[#allocation8 + $0x1a70] sm:$0xff]
    %v1451 = vld [vmem:[#allocation8 + $0x1a78] sm:$0xff]
    %v1452 = vld [vmem:[#allocation8 + $0x1a80] sm:$0xff]
    %v1453 = vld [vmem:[#allocation8 + $0x1a88] sm:$0xff]
    %v1454 = vld [vmem:[#allocation8 + $0x1a90] sm:$0xff]
    %v1455 = vld [vmem:[#allocation8 + $0x1a98] sm:$0xff]
    %v1456 = vld [vmem:[#allocation8 + $0x1aa0] sm:$0xff]
    %v1457 = vld [vmem:[#allocation8 + $0x1aa8] sm:$0xff]
    %v1458 = vld [vmem:[#allocation8 + $0x1ab0] sm:$0xff]
    %v1459 = vld [vmem:[#allocation8 + $0x1ab8] sm:$0xff]
    %v1460 = vld [vmem:[#allocation8 + $0x1ac0] sm:$0xff]
    %v1461 = vld [vmem:[#allocation8 + $0x1ac8] sm:$0xff]
    %v1462 = vld [vmem:[#allocation8 + $0x1ad0] sm:$0xff]
    %v1463 = vld [vmem:[#allocation8 + $0x1ad8] sm:$0xff]
    %v1464 = vld [vmem:[#allocation8 + $0x1ae0] sm:$0xff]
    %v1465 = vld [vmem:[#allocation8 + $0x1ae8] sm:$0xff]
    %v1466 = vld [vmem:[#allocation8 + $0x1af0] sm:$0xff]
    %v1467 = vld [vmem:[#allocation8 + $0x1af8] sm:$0xff]
    %v1468 = vld [vmem:[#allocation8 + $0x1b00] sm:$0xff]
    %v1469 = vld [vmem:[#allocation8 + $0x1b08] sm:$0xff]
    %v1470 = vld [vmem:[#allocation8 + $0x1b10] sm:$0xff]
    %v1471 = vld [vmem:[#allocation8 + $0x1b18] sm:$0xff]
    %v1472 = vld [vmem:[#allocation8 + $0x1b20] sm:$0xff]
    %v1473 = vld [vmem:[#allocation8 + $0x1b28] sm:$0xff]
    %v1474 = vld [vmem:[#allocation8 + $0x1b30] sm:$0xff]
    %v1475 = vld [vmem:[#allocation8 + $0x1b38] sm:$0xff]
    %v1476 = vld [vmem:[#allocation8 + $0x1b40] sm:$0xff]
    %v1477 = vld [vmem:[#allocation8 + $0x1b48] sm:$0xff]
    %v1478 = vld [vmem:[#allocation8 + $0x1b50] sm:$0xff]
    %v1479 = vld [vmem:[#allocation8 + $0x1b58] sm:$0xff]
    %v1480 = vld [vmem:[#allocation8 + $0x1b60] sm:$0xff]
    %v1481 = vld [vmem:[#allocation8 + $0x1b68] sm:$0xff]
    %v1482 = vld [vmem:[#allocation8 + $0x1b70] sm:$0xff]
    %v1483 = vld [vmem:[#allocation8 + $0x1b78] sm:$0xff]
    %v1484 = vld [vmem:[#allocation8 + $0x1b80] sm:$0xff]
    %v1485 = vld [vmem:[#allocation8 + $0x1b88] sm:$0xff]
    %v1486 = vld [vmem:[#allocation8 + $0x1b90] sm:$0xff]
    %v1487 = vld [vmem:[#allocation8 + $0x1b98] sm:$0xff]
    %v1488 = vld [vmem:[#allocation8 + $0x1ba0] sm:$0xff]
    %v1489 = vld [vmem:[#allocation8 + $0x1ba8] sm:$0xff]
    %v1490 = vld [vmem:[#allocation8 + $0x1bb0] sm:$0xff]
    %v1491 = vld [vmem:[#allocation8 + $0x1bb8] sm:$0xff]
    %v1492 = vld [vmem:[#allocation8 + $0x1bc0] sm:$0xff]
    %v1493 = vld [vmem:[#allocation8 + $0x1bc8] sm:$0xff]
    %v1494 = vld [vmem:[#allocation8 + $0x1bd0] sm:$0xff]
    %v1495 = vld [vmem:[#allocation8 + $0x1bd8] sm:$0xff]
    %v1496 = vld [vmem:[#allocation8 + $0x1be0] sm:$0xff]
    %v1497 = vld [vmem:[#allocation8 + $0x1be8] sm:$0xff]
    %v1498 = vld [vmem:[#allocation8 + $0x1bf0] sm:$0xff]
    %v1499 = vld [vmem:[#allocation8 + $0x1bf8] sm:$0xff]
    %v1500 = vld [vmem:[#allocation8 + $0x1c00] sm:$0xff]
    %v1501 = vld [vmem:[#allocation8 + $0x1c08] sm:$0xff]
    %v1502 = vld [vmem:[#allocation8 + $0x1c10] sm:$0xff]
    %v1503 = vld [vmem:[#allocation8 + $0x1c18] sm:$0xff]
    %v1504 = vld [vmem:[#allocation8 + $0x1c20] sm:$0xff]
    %v1505 = vld [vmem:[#allocation8 + $0x1c28] sm:$0xff]
    %v1506 = vld [vmem:[#allocation8 + $0x1c30] sm:$0xff]
    %v1507 = vld [vmem:[#allocation8 + $0x1c38] sm:$0xff]
    %v1508 = vld [vmem:[#allocation8 + $0x1c40] sm:$0xff]
    %v1509 = vld [vmem:[#allocation8 + $0x1c48] sm:$0xff]
    %v1510 = vld [vmem:[#allocation8 + $0x1c50] sm:$0xff]
    %v1511 = vld [vmem:[#allocation8 + $0x1c58] sm:$0xff]
    %v1512 = vld [vmem:[#allocation8 + $0x1c60] sm:$0xff]
    %v1513 = vld [vmem:[#allocation8 + $0x1c68] sm:$0xff]
    %v1514 = vld [vmem:[#allocation8 + $0x1c70] sm:$0xff]
    %v1515 = vld [vmem:[#allocation8 + $0x1c78] sm:$0xff]
    %v1516 = vld [vmem:[#allocation8 + $0x1c80] sm:$0xff]
    %v1517 = vld [vmem:[#allocation8 + $0x1c88] sm:$0xff]
    %v1518 = vld [vmem:[#allocation8 + $0x1c90] sm:$0xff]
    %v1519 = vld [vmem:[#allocation8 + $0x1c98] sm:$0xff]
    %v1520 = vld [vmem:[#allocation8 + $0x1ca0] sm:$0xff]
    %v1521 = vld [vmem:[#allocation8 + $0x1ca8] sm:$0xff]
    %v1522 = vld [vmem:[#allocation8 + $0x1cb0] sm:$0xff]
    %v1523 = vld [vmem:[#allocation8 + $0x1cb8] sm:$0xff]
    %v1524 = vld [vmem:[#allocation8 + $0x1cc0] sm:$0xff]
    %v1525 = vld [vmem:[#allocation8 + $0x1cc8] sm:$0xff]
    %v1526 = vld [vmem:[#allocation8 + $0x1cd0] sm:$0xff]
    %v1527 = vld [vmem:[#allocation8 + $0x1cd8] sm:$0xff]
    %v1528 = vld [vmem:[#allocation8 + $0x1ce0] sm:$0xff]
    %v1529 = vld [vmem:[#allocation8 + $0x1ce8] sm:$0xff]
    %v1530 = vld [vmem:[#allocation8 + $0x1cf0] sm:$0xff]
    %v1531 = vld [vmem:[#allocation8 + $0x1cf8] sm:$0xff]
    %v1532 = vld [vmem:[#allocation8 + $0x1d00] sm:$0xff]
    %v1533 = vld [vmem:[#allocation8 + $0x1d08] sm:$0xff]
    %v1534 = vld [vmem:[#allocation8 + $0x1d10] sm:$0xff]
    %v1535 = vld [vmem:[#allocation8 + $0x1d18] sm:$0xff]
    %v1536 = vld [vmem:[#allocation8 + $0x1d20] sm:$0xff]
    %v1537 = vld [vmem:[#allocation8 + $0x1d28] sm:$0xff]
    %v1538 = vld [vmem:[#allocation8 + $0x1d30] sm:$0xff]
    %v1539 = vld [vmem:[#allocation8 + $0x1d38] sm:$0xff]
    %v1540 = vld [vmem:[#allocation8 + $0x1d40] sm:$0xff]
    %v1541 = vld [vmem:[#allocation8 + $0x1d48] sm:$0xff]
    %v1542 = vld [vmem:[#allocation8 + $0x1d50] sm:$0xff]
    %v1543 = vld [vmem:[#allocation8 + $0x1d58] sm:$0xff]
    %v1544 = vld [vmem:[#allocation8 + $0x1d60] sm:$0xff]
    %v1545 = vld [vmem:[#allocation8 + $0x1d68] sm:$0xff]
    %v1546 = vld [vmem:[#allocation8 + $0x1d70] sm:$0xff]
    %v1547 = vld [vmem:[#allocation8 + $0x1d78] sm:$0xff]
    %v1548 = vld [vmem:[#allocation8 + $0x1d80] sm:$0xff]
    %v1549 = vld [vmem:[#allocation8 + $0x1d88] sm:$0xff]
    %v1550 = vld [vmem:[#allocation8 + $0x1d90] sm:$0xff]
    %v1551 = vld [vmem:[#allocation8 + $0x1d98] sm:$0xff]
    %v1552 = vld [vmem:[#allocation8 + $0x1da0] sm:$0xff]
    %v1553 = vld [vmem:[#allocation8 + $0x1da8] sm:$0xff]
    %v1554 = vld [vmem:[#allocation8 + $0x1db0] sm:$0xff]
    %v1555 = vld [vmem:[#allocation8 + $0x1db8] sm:$0xff]
    %v1556 = vld [vmem:[#allocation8 + $0x1dc0] sm:$0xff]
    %v1557 = vld [vmem:[#allocation8 + $0x1dc8] sm:$0xff]
    %v1558 = vld [vmem:[#allocation8 + $0x1dd0] sm:$0xff]
    %v1559 = vld [vmem:[#allocation8 + $0x1dd8] sm:$0xff]
    %v1560 = vld [vmem:[#allocation8 + $0x1de0] sm:$0xff]
    %v1561 = vld [vmem:[#allocation8 + $0x1de8] sm:$0xff]
    %v1562 = vld [vmem:[#allocation8 + $0x1df0] sm:$0xff]
    %v1563 = vld [vmem:[#allocation8 + $0x1df8] sm:$0xff]
    %v1564 = vld [vmem:[#allocation8 + $0x1e00] sm:$0xff]
    %v1565 = vld [vmem:[#allocation8 + $0x1e08] sm:$0xff]
    %v1566 = vld [vmem:[#allocation8 + $0x1e10] sm:$0xff]
    %v1567 = vld [vmem:[#allocation8 + $0x1e18] sm:$0xff]
    %v1568 = vld [vmem:[#allocation8 + $0x1e20] sm:$0xff]
    %v1569 = vld [vmem:[#allocation8 + $0x1e28] sm:$0xff]
    %v1570 = vld [vmem:[#allocation8 + $0x1e30] sm:$0xff]
    %v1571 = vld [vmem:[#allocation8 + $0x1e38] sm:$0xff]
    %v1572 = vld [vmem:[#allocation8 + $0x1e40] sm:$0xff]
    %v1573 = vld [vmem:[#allocation8 + $0x1e48] sm:$0xff]
    %v1574 = vld [vmem:[#allocation8 + $0x1e50] sm:$0xff]
    %v1575 = vld [vmem:[#allocation8 + $0x1e58] sm:$0xff]
    %v1576 = vld [vmem:[#allocation8 + $0x1e60] sm:$0xff]
    %v1577 = vld [vmem:[#allocation8 + $0x1e68] sm:$0xff]
    %v1578 = vld [vmem:[#allocation8 + $0x1e70] sm:$0xff]
    %v1579 = vld [vmem:[#allocation8 + $0x1e78] sm:$0xff]
    %v1580 = vld [vmem:[#allocation8 + $0x1e80] sm:$0xff]
    %v1581 = vld [vmem:[#allocation8 + $0x1e88] sm:$0xff]
    %v1582 = vld [vmem:[#allocation8 + $0x1e90] sm:$0xff]
    %v1583 = vld [vmem:[#allocation8 + $0x1e98] sm:$0xff]
    %v1584 = vld [vmem:[#allocation8 + $0x1ea0] sm:$0xff]
    %v1585 = vld [vmem:[#allocation8 + $0x1ea8] sm:$0xff]
    %v1586 = vld [vmem:[#allocation8 + $0x1eb0] sm:$0xff]
    %v1587 = vld [vmem:[#allocation8 + $0x1eb8] sm:$0xff]
    %v1588 = vld [vmem:[#allocation8 + $0x1ec0] sm:$0xff]
    %v1589 = vld [vmem:[#allocation8 + $0x1ec8] sm:$0xff]
    %v1590 = vld [vmem:[#allocation8 + $0x1ed0] sm:$0xff]
    %v1591 = vld [vmem:[#allocation8 + $0x1ed8] sm:$0xff]
    %v1592 = vld [vmem:[#allocation8 + $0x1ee0] sm:$0xff]
    %v1593 = vld [vmem:[#allocation8 + $0x1ee8] sm:$0xff]
    %v1594 = vld [vmem:[#allocation8 + $0x1ef0] sm:$0xff]
    %v1595 = vld [vmem:[#allocation8 + $0x1ef8] sm:$0xff]
    %v1596 = vld [vmem:[#allocation8 + $0x1f00] sm:$0xff]
    %v1597 = vld [vmem:[#allocation8 + $0x1f08] sm:$0xff]
    %v1598 = vld [vmem:[#allocation8 + $0x1f10] sm:$0xff]
    %v1599 = vld [vmem:[#allocation8 + $0x1f18] sm:$0xff]
    %v1600 = vld [vmem:[#allocation8 + $0x1f20] sm:$0xff]
    %v1601 = vld [vmem:[#allocation8 + $0x1f28] sm:$0xff]
    %v1602 = vld [vmem:[#allocation8 + $0x1f30] sm:$0xff]
    %v1603 = vld [vmem:[#allocation8 + $0x1f38] sm:$0xff]
    %v1604 = vld [vmem:[#allocation10] sm:$0xf]
    %v1606 = vperm.slane %v1604, 0
    %v1607 = vperm.slane %v1604, 1
    %v1608 = vperm.slane %v1604, 2
    %v1609 = vperm.slane %v1604, 3
    %vm1614 = vcmask 654336
    %v1616 = vsel %vm1614, %v603, 0
    %1618 = vmatpush.msra.mxu0 %v664
    %1619 = vmatpush.msra.mxu0 %v660
    %1620 = vmatpush.msra.mxu0 %v656
    %1621 = vmatpush.msra.mxu0 %v652
    %1622 = vmatpush.msra.mxu0 %v648
    %1623 = vmatpush.msra.mxu0 %v644
    %1624 = vmatpush.msra.mxu0 %v640
    %1625 = vmatpush.msra.mxu0 %v636
    %1626 = vmatpush.msra.mxu0 %v632
    %1627 = vmatpush.msra.mxu0 %v628
    %1628 = vmatpush.msra.mxu0 %v624
    %1629 = vmatpush.msra.mxu0 %v620
    %1630 = vmatpush.msra.mxu0 %v616
    %1631 = vmatpush.msra.mxu0 %v612
    %1632 = vmatpush.msra.mxu0 %v608
    %1633 = vmatpush.msra.mxu0 %v604
    %1634 = vmatmul.f32.gmra.mxu0 %v588
    %v1635 = vpop.f32.mrf.mxu0
    %v1636 = vadd.f32 %v1606, %v1635
    %1637 = vdwg.mxu0
    %1638 = vmatpush.msra.mxu0 %v728
    %1639 = vmatpush.msra.mxu0 %v724
    %1640 = vmatpush.msra.mxu0 %v720
    %1641 = vmatpush.msra.mxu0 %v716
    %1642 = vmatpush.msra.mxu0 %v712
    %1643 = vmatpush.msra.mxu0 %v708
    %1644 = vmatpush.msra.mxu0 %v704
    %1645 = vmatpush.msra.mxu0 %v700
    %1646 = vmatpush.msra.mxu0 %v696
    %1647 = vmatpush.msra.mxu0 %v692
    %1648 = vmatpush.msra.mxu0 %v688
    %1649 = vmatpush.msra.mxu0 %v684
    %1650 = vmatpush.msra.mxu0 %v680
    %1651 = vmatpush.msra.mxu0 %v676
    %1652 = vmatpush.msra.mxu0 %v672
    %1653 = vmatpush.msra.mxu0 %v668
    %1654 = vmatmul.f32.gmra.mxu0 %v589
    %v1655 = vpop.f32.mrf.mxu0
    %v1656 = vadd.f32 %v1636, %v1655
    %1657 = vdwg.mxu0
    %1658 = vmatpush.msra.mxu0 %v792
    %1659 = vmatpush.msra.mxu0 %v788
    %1660 = vmatpush.msra.mxu0 %v784
    %1661 = vmatpush.msra.mxu0 %v780
    %1662 = vmatpush.msra.mxu0 %v776
    %1663 = vmatpush.msra.mxu0 %v772
    %1664 = vmatpush.msra.mxu0 %v768
    %1665 = vmatpush.msra.mxu0 %v764
    %1666 = vmatpush.msra.mxu0 %v760
    %1667 = vmatpush.msra.mxu0 %v756
    %1668 = vmatpush.msra.mxu0 %v752
    %1669 = vmatpush.msra.mxu0 %v748
    %1670 = vmatpush.msra.mxu0 %v744
    %1671 = vmatpush.msra.mxu0 %v740
    %1672 = vmatpush.msra.mxu0 %v736
    %1673 = vmatpush.msra.mxu0 %v732
    %1674 = vmatmul.f32.gmra.mxu0 %v590
    %v1675 = vpop.f32.mrf.mxu0
    %v1676 = vadd.f32 %v1656, %v1675
    %1677 = vdwg.mxu0
    %1678 = vmatpush.msra.mxu0 %v856
    %1679 = vmatpush.msra.mxu0 %v852
    %1680 = vmatpush.msra.mxu0 %v848
    %1681 = vmatpush.msra.mxu0 %v844
    %1682 = vmatpush.msra.mxu0 %v840
    %1683 = vmatpush.msra.mxu0 %v836
    %1684 = vmatpush.msra.mxu0 %v832
    %1685 = vmatpush.msra.mxu0 %v828
    %1686 = vmatpush.msra.mxu0 %v824
    %1687 = vmatpush.msra.mxu0 %v820
    %1688 = vmatpush.msra.mxu0 %v816
    %1689 = vmatpush.msra.mxu0 %v812
    %1690 = vmatpush.msra.mxu0 %v808
    %1691 = vmatpush.msra.mxu0 %v804
    %1692 = vmatpush.msra.mxu0 %v800
    %1693 = vmatpush.msra.mxu0 %v796
    %1694 = vmatmul.f32.gmra.mxu0 %v591
    %v1695 = vpop.f32.mrf.mxu0
    %v1696 = vadd.f32 %v1676, %v1695
    %1697 = vdwg.mxu0
    %1698 = vmatpush.msra.mxu0 %v920
    %1699 = vmatpush.msra.mxu0 %v916
    %1700 = vmatpush.msra.mxu0 %v912
    %1701 = vmatpush.msra.mxu0 %v908
    %1702 = vmatpush.msra.mxu0 %v904
    %1703 = vmatpush.msra.mxu0 %v900
    %1704 = vmatpush.msra.mxu0 %v896
    %1705 = vmatpush.msra.mxu0 %v892
    %1706 = vmatpush.msra.mxu0 %v888
    %1707 = vmatpush.msra.mxu0 %v884
    %1708 = vmatpush.msra.mxu0 %v880
    %1709 = vmatpush.msra.mxu0 %v876
    %1710 = vmatpush.msra.mxu0 %v872
    %1711 = vmatpush.msra.mxu0 %v868
    %1712 = vmatpush.msra.mxu0 %v864
    %1713 = vmatpush.msra.mxu0 %v860
    %1714 = vmatmul.f32.gmra.mxu0 %v592
    %v1715 = vpop.f32.mrf.mxu0
    %v1716 = vadd.f32 %v1696, %v1715
    %1717 = vdwg.mxu0
    %1718 = vmatpush.msra.mxu0 %v984
    %1719 = vmatpush.msra.mxu0 %v980
    %1720 = vmatpush.msra.mxu0 %v976
    %1721 = vmatpush.msra.mxu0 %v972
    %1722 = vmatpush.msra.mxu0 %v968
    %1723 = vmatpush.msra.mxu0 %v964
    %1724 = vmatpush.msra.mxu0 %v960
    %1725 = vmatpush.msra.mxu0 %v956
    %1726 = vmatpush.msra.mxu0 %v952
    %1727 = vmatpush.msra.mxu0 %v948
    %1728 = vmatpush.msra.mxu0 %v944
    %1729 = vmatpush.msra.mxu0 %v940
    %1730 = vmatpush.msra.mxu0 %v936
    %1731 = vmatpush.msra.mxu0 %v932
    %1732 = vmatpush.msra.mxu0 %v928
    %1733 = vmatpush.msra.mxu0 %v924
    %1734 = vmatmul.f32.gmra.mxu0 %v593
    %v1735 = vpop.f32.mrf.mxu0
    %v1736 = vadd.f32 %v1716, %v1735
    %1737 = vdwg.mxu0
    %1738 = vmatpush.msra.mxu0 %v1048
    %1739 = vmatpush.msra.mxu0 %v1044
    %1740 = vmatpush.msra.mxu0 %v1040
    %1741 = vmatpush.msra.mxu0 %v1036
    %1742 = vmatpush.msra.mxu0 %v1032
    %1743 = vmatpush.msra.mxu0 %v1028
    %1744 = vmatpush.msra.mxu0 %v1024
    %1745 = vmatpush.msra.mxu0 %v1020
    %1746 = vmatpush.msra.mxu0 %v1016
    %1747 = vmatpush.msra.mxu0 %v1012
    %1748 = vmatpush.msra.mxu0 %v1008
    %1749 = vmatpush.msra.mxu0 %v1004
    %1750 = vmatpush.msra.mxu0 %v1000
    %1751 = vmatpush.msra.mxu0 %v996
    %1752 = vmatpush.msra.mxu0 %v992
    %1753 = vmatpush.msra.mxu0 %v988
    %1754 = vmatmul.f32.gmra.mxu0 %v594
    %v1755 = vpop.f32.mrf.mxu0
    %v1756 = vadd.f32 %v1736, %v1755
    %1757 = vdwg.mxu0
    %1758 = vmatpush.msra.mxu0 %v1112
    %1759 = vmatpush.msra.mxu0 %v1108
    %1760 = vmatpush.msra.mxu0 %v1104
    %1761 = vmatpush.msra.mxu0 %v1100
    %1762 = vmatpush.msra.mxu0 %v1096
    %1763 = vmatpush.msra.mxu0 %v1092
    %1764 = vmatpush.msra.mxu0 %v1088
    %1765 = vmatpush.msra.mxu0 %v1084
    %1766 = vmatpush.msra.mxu0 %v1080
    %1767 = vmatpush.msra.mxu0 %v1076
    %1768 = vmatpush.msra.mxu0 %v1072
    %1769 = vmatpush.msra.mxu0 %v1068
    %1770 = vmatpush.msra.mxu0 %v1064
    %1771 = vmatpush.msra.mxu0 %v1060
    %1772 = vmatpush.msra.mxu0 %v1056
    %1773 = vmatpush.msra.mxu0 %v1052
    %1774 = vmatmul.f32.gmra.mxu0 %v595
    %v1775 = vpop.f32.mrf.mxu0
    %v1776 = vadd.f32 %v1756, %v1775
    %1777 = vdwg.mxu0
    %1778 = vmatpush.msra.mxu0 %v1176
    %1779 = vmatpush.msra.mxu0 %v1172
    %1780 = vmatpush.msra.mxu0 %v1168
    %1781 = vmatpush.msra.mxu0 %v1164
    %1782 = vmatpush.msra.mxu0 %v1160
    %1783 = vmatpush.msra.mxu0 %v1156
    %1784 = vmatpush.msra.mxu0 %v1152
    %1785 = vmatpush.msra.mxu0 %v1148
    %1786 = vmatpush.msra.mxu0 %v1144
    %1787 = vmatpush.msra.mxu0 %v1140
    %1788 = vmatpush.msra.mxu0 %v1136
    %1789 = vmatpush.msra.mxu0 %v1132
    %1790 = vmatpush.msra.mxu0 %v1128
    %1791 = vmatpush.msra.mxu0 %v1124
    %1792 = vmatpush.msra.mxu0 %v1120
    %1793 = vmatpush.msra.mxu0 %v1116
    %1794 = vmatmul.f32.gmra.mxu0 %v596
    %v1795 = vpop.f32.mrf.mxu0
    %v1796 = vadd.f32 %v1776, %v1795
    %1797 = vdwg.mxu0
    %1798 = vmatpush.msra.mxu0 %v1240
    %1799 = vmatpush.msra.mxu0 %v1236
    %1800 = vmatpush.msra.mxu0 %v1232
    %1801 = vmatpush.msra.mxu0 %v1228
    %1802 = vmatpush.msra.mxu0 %v1224
    %1803 = vmatpush.msra.mxu0 %v1220
    %1804 = vmatpush.msra.mxu0 %v1216
    %1805 = vmatpush.msra.mxu0 %v1212
    %1806 = vmatpush.msra.mxu0 %v1208
    %1807 = vmatpush.msra.mxu0 %v1204
    %1808 = vmatpush.msra.mxu0 %v1200
    %1809 = vmatpush.msra.mxu0 %v1196
    %1810 = vmatpush.msra.mxu0 %v1192
    %1811 = vmatpush.msra.mxu0 %v1188
    %1812 = vmatpush.msra.mxu0 %v1184
    %1813 = vmatpush.msra.mxu0 %v1180
    %1814 = vmatmul.f32.gmra.mxu0 %v597
    %v1815 = vpop.f32.mrf.mxu0
    %v1816 = vadd.f32 %v1796, %v1815
    %1817 = vdwg.mxu0
    %1818 = vmatpush.msra.mxu0 %v1304
    %1819 = vmatpush.msra.mxu0 %v1300
    %1820 = vmatpush.msra.mxu0 %v1296
    %1821 = vmatpush.msra.mxu0 %v1292
    %1822 = vmatpush.msra.mxu0 %v1288
    %1823 = vmatpush.msra.mxu0 %v1284
    %1824 = vmatpush.msra.mxu0 %v1280
    %1825 = vmatpush.msra.mxu0 %v1276
    %1826 = vmatpush.msra.mxu0 %v1272
    %1827 = vmatpush.msra.mxu0 %v1268
    %1828 = vmatpush.msra.mxu0 %v1264
    %1829 = vmatpush.msra.mxu0 %v1260
    %1830 = vmatpush.msra.mxu0 %v1256
    %1831 = vmatpush.msra.mxu0 %v1252
    %1832 = vmatpush.msra.mxu0 %v1248
    %1833 = vmatpush.msra.mxu0 %v1244
    %1834 = vmatmul.f32.gmra.mxu0 %v598
    %v1835 = vpop.f32.mrf.mxu0
    %v1836 = vadd.f32 %v1816, %v1835
    %1837 = vdwg.mxu0
    %1838 = vmatpush.msra.mxu0 %v1368
    %1839 = vmatpush.msra.mxu0 %v1364
    %1840 = vmatpush.msra.mxu0 %v1360
    %1841 = vmatpush.msra.mxu0 %v1356
    %1842 = vmatpush.msra.mxu0 %v1352
    %1843 = vmatpush.msra.mxu0 %v1348
    %1844 = vmatpush.msra.mxu0 %v1344
    %1845 = vmatpush.msra.mxu0 %v1340
    %1846 = vmatpush.msra.mxu0 %v1336
    %1847 = vmatpush.msra.mxu0 %v1332
    %1848 = vmatpush.msra.mxu0 %v1328
    %1849 = vmatpush.msra.mxu0 %v1324
    %1850 = vmatpush.msra.mxu0 %v1320
    %1851 = vmatpush.msra.mxu0 %v1316
    %1852 = vmatpush.msra.mxu0 %v1312
    %1853 = vmatpush.msra.mxu0 %v1308
    %1854 = vmatmul.f32.gmra.mxu0 %v599
    %v1855 = vpop.f32.mrf.mxu0
    %v1856 = vadd.f32 %v1836, %v1855
    %1857 = vdwg.mxu0
    %1858 = vmatpush.msra.mxu0 %v1432
    %1859 = vmatpush.msra.mxu0 %v1428
    %1860 = vmatpush.msra.mxu0 %v1424
    %1861 = vmatpush.msra.mxu0 %v1420
    %1862 = vmatpush.msra.mxu0 %v1416
    %1863 = vmatpush.msra.mxu0 %v1412
    %1864 = vmatpush.msra.mxu0 %v1408
    %1865 = vmatpush.msra.mxu0 %v1404
    %1866 = vmatpush.msra.mxu0 %v1400
    %1867 = vmatpush.msra.mxu0 %v1396
    %1868 = vmatpush.msra.mxu0 %v1392
    %1869 = vmatpush.msra.mxu0 %v1388
    %1870 = vmatpush.msra.mxu0 %v1384
    %1871 = vmatpush.msra.mxu0 %v1380
    %1872 = vmatpush.msra.mxu0 %v1376
    %1873 = vmatpush.msra.mxu0 %v1372
    %1874 = vmatmul.f32.gmra.mxu0 %v600
    %v1875 = vpop.f32.mrf.mxu0
    %v1876 = vadd.f32 %v1856, %v1875
    %1877 = vdwg.mxu0
    %1878 = vmatpush.msra.mxu0 %v1496
    %1879 = vmatpush.msra.mxu0 %v1492
    %1880 = vmatpush.msra.mxu0 %v1488
    %1881 = vmatpush.msra.mxu0 %v1484
    %1882 = vmatpush.msra.mxu0 %v1480
    %1883 = vmatpush.msra.mxu0 %v1476
    %1884 = vmatpush.msra.mxu0 %v1472
    %1885 = vmatpush.msra.mxu0 %v1468
    %1886 = vmatpush.msra.mxu0 %v1464
    %1887 = vmatpush.msra.mxu0 %v1460
    %1888 = vmatpush.msra.mxu0 %v1456
    %1889 = vmatpush.msra.mxu0 %v1452
    %1890 = vmatpush.msra.mxu0 %v1448
    %1891 = vmatpush.msra.mxu0 %v1444
    %1892 = vmatpush.msra.mxu0 %v1440
    %1893 = vmatpush.msra.mxu0 %v1436
    %1894 = vmatmul.f32.gmra.mxu0 %v601
    %v1895 = vpop.f32.mrf.mxu0
    %v1896 = vadd.f32 %v1876, %v1895
    %1897 = vdwg.mxu0
    %1898 = vmatpush.msra.mxu0 %v1560
    %1899 = vmatpush.msra.mxu0 %v1556
    %1900 = vmatpush.msra.mxu0 %v1552
    %1901 = vmatpush.msra.mxu0 %v1548
    %1902 = vmatpush.msra.mxu0 %v1544
    %1903 = vmatpush.msra.mxu0 %v1540
    %1904 = vmatpush.msra.mxu0 %v1536
    %1905 = vmatpush.msra.mxu0 %v1532
    %1906 = vmatpush.msra.mxu0 %v1528
    %1907 = vmatpush.msra.mxu0 %v1524
    %1908 = vmatpush.msra.mxu0 %v1520
    %1909 = vmatpush.msra.mxu0 %v1516
    %1910 = vmatpush.msra.mxu0 %v1512
    %1911 = vmatpush.msra.mxu0 %v1508
    %1912 = vmatpush.msra.mxu0 %v1504
    %1913 = vmatpush.msra.mxu0 %v1500
    %1914 = vmatmul.f32.gmra.mxu0 %v602
    %v1915 = vpop.f32.mrf.mxu0
    %v1916 = vadd.f32 %v1896, %v1915
    %1917 = vdwg.mxu0
    %1918 = vmatpush.msra.mxu0 0.0
    %1919 = vmatpush.msra.mxu0 0.0
    %1920 = vmatpush.msra.mxu0 0.0
    %1921 = vmatpush.msra.mxu0 0.0
    %1922 = vmatpush.msra.mxu0 0.0
    %1923 = vmatpush.msra.mxu0 0.0
    %1924 = vmatpush.msra.mxu0 %v1600
    %1925 = vmatpush.msra.mxu0 %v1596
    %1926 = vmatpush.msra.mxu0 %v1592
    %1927 = vmatpush.msra.mxu0 %v1588
    %1928 = vmatpush.msra.mxu0 %v1584
    %1929 = vmatpush.msra.mxu0 %v1580
    %1930 = vmatpush.msra.mxu0 %v1576
    %1931 = vmatpush.msra.mxu0 %v1572
    %1932 = vmatpush.msra.mxu0 %v1568
    %1933 = vmatpush.msra.mxu0 %v1564
    %1934 = vmatmul.f32.gmra.mxu0 %v1616
    %v1935 = vpop.f32.mrf.mxu0
    %v1936 = vadd.f32 %v1916, %v1935
    %1937 = vdwg.mxu0
    %1938 = vmatpush.msra.mxu0 %v665
    %1939 = vmatpush.msra.mxu0 %v661
    %1940 = vmatpush.msra.mxu0 %v657
    %1941 = vmatpush.msra.mxu0 %v653
    %1942 = vmatpush.msra.mxu0 %v649
    %1943 = vmatpush.msra.mxu0 %v645
    %1944 = vmatpush.msra.mxu0 %v641
    %1945 = vmatpush.msra.mxu0 %v637
    %1946 = vmatpush.msra.mxu0 %v633
    %1947 = vmatpush.msra.mxu0 %v629
    %1948 = vmatpush.msra.mxu0 %v625
    %1949 = vmatpush.msra.mxu0 %v621
    %1950 = vmatpush.msra.mxu0 %v617
    %1951 = vmatpush.msra.mxu0 %v613
    %1952 = vmatpush.msra.mxu0 %v609
    %1953 = vmatpush.msra.mxu0 %v605
    %1954 = vmatmul.f32.gmra.mxu0 %v588
    %v1955 = vpop.f32.mrf.mxu0
    %v1956 = vadd.f32 %v1607, %v1955
    %1957 = vdwg.mxu0
    %1958 = vmatpush.msra.mxu0 %v729
    %1959 = vmatpush.msra.mxu0 %v725
    %1960 = vmatpush.msra.mxu0 %v721
    %1961 = vmatpush.msra.mxu0 %v717
    %1962 = vmatpush.msra.mxu0 %v713
    %1963 = vmatpush.msra.mxu0 %v709
    %1964 = vmatpush.msra.mxu0 %v705
    %1965 = vmatpush.msra.mxu0 %v701
    %1966 = vmatpush.msra.mxu0 %v697
    %1967 = vmatpush.msra.mxu0 %v693
    %1968 = vmatpush.msra.mxu0 %v689
    %1969 = vmatpush.msra.mxu0 %v685
    %1970 = vmatpush.msra.mxu0 %v681
    %1971 = vmatpush.msra.mxu0 %v677
    %1972 = vmatpush.msra.mxu0 %v673
    %1973 = vmatpush.msra.mxu0 %v669
    %1974 = vmatmul.f32.gmra.mxu0 %v589
    %v1975 = vpop.f32.mrf.mxu0
    %v1976 = vadd.f32 %v1956, %v1975
    %1977 = vdwg.mxu0
    %1978 = vmatpush.msra.mxu0 %v793
    %1979 = vmatpush.msra.mxu0 %v789
    %1980 = vmatpush.msra.mxu0 %v785
    %1981 = vmatpush.msra.mxu0 %v781
    %1982 = vmatpush.msra.mxu0 %v777
    %1983 = vmatpush.msra.mxu0 %v773
    %1984 = vmatpush.msra.mxu0 %v769
    %1985 = vmatpush.msra.mxu0 %v765
    %1986 = vmatpush.msra.mxu0 %v761
    %1987 = vmatpush.msra.mxu0 %v757
    %1988 = vmatpush.msra.mxu0 %v753
    %1989 = vmatpush.msra.mxu0 %v749
    %1990 = vmatpush.msra.mxu0 %v745
    %1991 = vmatpush.msra.mxu0 %v741
    %1992 = vmatpush.msra.mxu0 %v737
    %1993 = vmatpush.msra.mxu0 %v733
    %1994 = vmatmul.f32.gmra.mxu0 %v590
    %v1995 = vpop.f32.mrf.mxu0
    %v1996 = vadd.f32 %v1976, %v1995
    %1997 = vdwg.mxu0
    %1998 = vmatpush.msra.mxu0 %v857
    %1999 = vmatpush.msra.mxu0 %v853
    %2000 = vmatpush.msra.mxu0 %v849
    %2001 = vmatpush.msra.mxu0 %v845
    %2002 = vmatpush.msra.mxu0 %v841
    %2003 = vmatpush.msra.mxu0 %v837
    %2004 = vmatpush.msra.mxu0 %v833
    %2005 = vmatpush.msra.mxu0 %v829
    %2006 = vmatpush.msra.mxu0 %v825
    %2007 = vmatpush.msra.mxu0 %v821
    %2008 = vmatpush.msra.mxu0 %v817
    %2009 = vmatpush.msra.mxu0 %v813
    %2010 = vmatpush.msra.mxu0 %v809
    %2011 = vmatpush.msra.mxu0 %v805
    %2012 = vmatpush.msra.mxu0 %v801
    %2013 = vmatpush.msra.mxu0 %v797
    %2014 = vmatmul.f32.gmra.mxu0 %v591
    %v2015 = vpop.f32.mrf.mxu0
    %v2016 = vadd.f32 %v1996, %v2015
    %2017 = vdwg.mxu0
    %2018 = vmatpush.msra.mxu0 %v921
    %2019 = vmatpush.msra.mxu0 %v917
    %2020 = vmatpush.msra.mxu0 %v913
    %2021 = vmatpush.msra.mxu0 %v909
    %2022 = vmatpush.msra.mxu0 %v905
    %2023 = vmatpush.msra.mxu0 %v901
    %2024 = vmatpush.msra.mxu0 %v897
    %2025 = vmatpush.msra.mxu0 %v893
    %2026 = vmatpush.msra.mxu0 %v889
    %2027 = vmatpush.msra.mxu0 %v885
    %2028 = vmatpush.msra.mxu0 %v881
    %2029 = vmatpush.msra.mxu0 %v877
    %2030 = vmatpush.msra.mxu0 %v873
    %2031 = vmatpush.msra.mxu0 %v869
    %2032 = vmatpush.msra.mxu0 %v865
    %2033 = vmatpush.msra.mxu0 %v861
    %2034 = vmatmul.f32.gmra.mxu0 %v592
    %v2035 = vpop.f32.mrf.mxu0
    %v2036 = vadd.f32 %v2016, %v2035
    %2037 = vdwg.mxu0
    %2038 = vmatpush.msra.mxu0 %v985
    %2039 = vmatpush.msra.mxu0 %v981
    %2040 = vmatpush.msra.mxu0 %v977
    %2041 = vmatpush.msra.mxu0 %v973
    %2042 = vmatpush.msra.mxu0 %v969
    %2043 = vmatpush.msra.mxu0 %v965
    %2044 = vmatpush.msra.mxu0 %v961
    %2045 = vmatpush.msra.mxu0 %v957
    %2046 = vmatpush.msra.mxu0 %v953
    %2047 = vmatpush.msra.mxu0 %v949
    %2048 = vmatpush.msra.mxu0 %v945
    %2049 = vmatpush.msra.mxu0 %v941
    %2050 = vmatpush.msra.mxu0 %v937
    %2051 = vmatpush.msra.mxu0 %v933
    %2052 = vmatpush.msra.mxu0 %v929
    %2053 = vmatpush.msra.mxu0 %v925
    %2054 = vmatmul.f32.gmra.mxu0 %v593
    %v2055 = vpop.f32.mrf.mxu0
    %v2056 = vadd.f32 %v2036, %v2055
    %2057 = vdwg.mxu0
    %2058 = vmatpush.msra.mxu0 %v1049
    %2059 = vmatpush.msra.mxu0 %v1045
    %2060 = vmatpush.msra.mxu0 %v1041
    %2061 = vmatpush.msra.mxu0 %v1037
    %2062 = vmatpush.msra.mxu0 %v1033
    %2063 = vmatpush.msra.mxu0 %v1029
    %2064 = vmatpush.msra.mxu0 %v1025
    %2065 = vmatpush.msra.mxu0 %v1021
    %2066 = vmatpush.msra.mxu0 %v1017
    %2067 = vmatpush.msra.mxu0 %v1013
    %2068 = vmatpush.msra.mxu0 %v1009
    %2069 = vmatpush.msra.mxu0 %v1005
    %2070 = vmatpush.msra.mxu0 %v1001
    %2071 = vmatpush.msra.mxu0 %v997
    %2072 = vmatpush.msra.mxu0 %v993
    %2073 = vmatpush.msra.mxu0 %v989
    %2074 = vmatmul.f32.gmra.mxu0 %v594
    %v2075 = vpop.f32.mrf.mxu0
    %v2076 = vadd.f32 %v2056, %v2075
    %2077 = vdwg.mxu0
    %2078 = vmatpush.msra.mxu0 %v1113
    %2079 = vmatpush.msra.mxu0 %v1109
    %2080 = vmatpush.msra.mxu0 %v1105
    %2081 = vmatpush.msra.mxu0 %v1101
    %2082 = vmatpush.msra.mxu0 %v1097
    %2083 = vmatpush.msra.mxu0 %v1093
    %2084 = vmatpush.msra.mxu0 %v1089
    %2085 = vmatpush.msra.mxu0 %v1085
    %2086 = vmatpush.msra.mxu0 %v1081
    %2087 = vmatpush.msra.mxu0 %v1077
    %2088 = vmatpush.msra.mxu0 %v1073
    %2089 = vmatpush.msra.mxu0 %v1069
    %2090 = vmatpush.msra.mxu0 %v1065
    %2091 = vmatpush.msra.mxu0 %v1061
    %2092 = vmatpush.msra.mxu0 %v1057
    %2093 = vmatpush.msra.mxu0 %v1053
    %2094 = vmatmul.f32.gmra.mxu0 %v595
    %v2095 = vpop.f32.mrf.mxu0
    %v2096 = vadd.f32 %v2076, %v2095
    %2097 = vdwg.mxu0
    %2098 = vmatpush.msra.mxu0 %v1177
    %2099 = vmatpush.msra.mxu0 %v1173
    %2100 = vmatpush.msra.mxu0 %v1169
    %2101 = vmatpush.msra.mxu0 %v1165
    %2102 = vmatpush.msra.mxu0 %v1161
    %2103 = vmatpush.msra.mxu0 %v1157
    %2104 = vmatpush.msra.mxu0 %v1153
    %2105 = vmatpush.msra.mxu0 %v1149
    %2106 = vmatpush.msra.mxu0 %v1145
    %2107 = vmatpush.msra.mxu0 %v1141
    %2108 = vmatpush.msra.mxu0 %v1137
    %2109 = vmatpush.msra.mxu0 %v1133
    %2110 = vmatpush.msra.mxu0 %v1129
    %2111 = vmatpush.msra.mxu0 %v1125
    %2112 = vmatpush.msra.mxu0 %v1121
    %2113 = vmatpush.msra.mxu0 %v1117
    %2114 = vmatmul.f32.gmra.mxu0 %v596
    %v2115 = vpop.f32.mrf.mxu0
    %v2116 = vadd.f32 %v2096, %v2115
    %2117 = vdwg.mxu0
    %2118 = vmatpush.msra.mxu0 %v1241
    %2119 = vmatpush.msra.mxu0 %v1237
    %2120 = vmatpush.msra.mxu0 %v1233
    %2121 = vmatpush.msra.mxu0 %v1229
    %2122 = vmatpush.msra.mxu0 %v1225
    %2123 = vmatpush.msra.mxu0 %v1221
    %2124 = vmatpush.msra.mxu0 %v1217
    %2125 = vmatpush.msra.mxu0 %v1213
    %2126 = vmatpush.msra.mxu0 %v1209
    %2127 = vmatpush.msra.mxu0 %v1205
    %2128 = vmatpush.msra.mxu0 %v1201
    %2129 = vmatpush.msra.mxu0 %v1197
    %2130 = vmatpush.msra.mxu0 %v1193
    %2131 = vmatpush.msra.mxu0 %v1189
    %2132 = vmatpush.msra.mxu0 %v1185
    %2133 = vmatpush.msra.mxu0 %v1181
    %2134 = vmatmul.f32.gmra.mxu0 %v597
    %v2135 = vpop.f32.mrf.mxu0
    %v2136 = vadd.f32 %v2116, %v2135
    %2137 = vdwg.mxu0
    %2138 = vmatpush.msra.mxu0 %v1305
    %2139 = vmatpush.msra.mxu0 %v1301
    %2140 = vmatpush.msra.mxu0 %v1297
    %2141 = vmatpush.msra.mxu0 %v1293
    %2142 = vmatpush.msra.mxu0 %v1289
    %2143 = vmatpush.msra.mxu0 %v1285
    %2144 = vmatpush.msra.mxu0 %v1281
    %2145 = vmatpush.msra.mxu0 %v1277
    %2146 = vmatpush.msra.mxu0 %v1273
    %2147 = vmatpush.msra.mxu0 %v1269
    %2148 = vmatpush.msra.mxu0 %v1265
    %2149 = vmatpush.msra.mxu0 %v1261
    %2150 = vmatpush.msra.mxu0 %v1257
    %2151 = vmatpush.msra.mxu0 %v1253
    %2152 = vmatpush.msra.mxu0 %v1249
    %2153 = vmatpush.msra.mxu0 %v1245
    %2154 = vmatmul.f32.gmra.mxu0 %v598
    %v2155 = vpop.f32.mrf.mxu0
    %v2156 = vadd.f32 %v2136, %v2155
    %2157 = vdwg.mxu0
    %2158 = vmatpush.msra.mxu0 %v1369
    %2159 = vmatpush.msra.mxu0 %v1365
    %2160 = vmatpush.msra.mxu0 %v1361
    %2161 = vmatpush.msra.mxu0 %v1357
    %2162 = vmatpush.msra.mxu0 %v1353
    %2163 = vmatpush.msra.mxu0 %v1349
    %2164 = vmatpush.msra.mxu0 %v1345
    %2165 = vmatpush.msra.mxu0 %v1341
    %2166 = vmatpush.msra.mxu0 %v1337
    %2167 = vmatpush.msra.mxu0 %v1333
    %2168 = vmatpush.msra.mxu0 %v1329
    %2169 = vmatpush.msra.mxu0 %v1325
    %2170 = vmatpush.msra.mxu0 %v1321
    %2171 = vmatpush.msra.mxu0 %v1317
    %2172 = vmatpush.msra.mxu0 %v1313
    %2173 = vmatpush.msra.mxu0 %v1309
    %2174 = vmatmul.f32.gmra.mxu0 %v599
    %v2175 = vpop.f32.mrf.mxu0
    %v2176 = vadd.f32 %v2156, %v2175
    %2177 = vdwg.mxu0
    %2178 = vmatpush.msra.mxu0 %v1433
    %2179 = vmatpush.msra.mxu0 %v1429
    %2180 = vmatpush.msra.mxu0 %v1425
    %2181 = vmatpush.msra.mxu0 %v1421
    %2182 = vmatpush.msra.mxu0 %v1417
    %2183 = vmatpush.msra.mxu0 %v1413
    %2184 = vmatpush.msra.mxu0 %v1409
    %2185 = vmatpush.msra.mxu0 %v1405
    %2186 = vmatpush.msra.mxu0 %v1401
    %2187 = vmatpush.msra.mxu0 %v1397
    %2188 = vmatpush.msra.mxu0 %v1393
    %2189 = vmatpush.msra.mxu0 %v1389
    %2190 = vmatpush.msra.mxu0 %v1385
    %2191 = vmatpush.msra.mxu0 %v1381
    %2192 = vmatpush.msra.mxu0 %v1377
    %2193 = vmatpush.msra.mxu0 %v1373
    %2194 = vmatmul.f32.gmra.mxu0 %v600
    %v2195 = vpop.f32.mrf.mxu0
    %v2196 = vadd.f32 %v2176, %v2195
    %2197 = vdwg.mxu0
    %2198 = vmatpush.msra.mxu0 %v1497
    %2199 = vmatpush.msra.mxu0 %v1493
    %2200 = vmatpush.msra.mxu0 %v1489
    %2201 = vmatpush.msra.mxu0 %v1485
    %2202 = vmatpush.msra.mxu0 %v1481
    %2203 = vmatpush.msra.mxu0 %v1477
    %2204 = vmatpush.msra.mxu0 %v1473
    %2205 = vmatpush.msra.mxu0 %v1469
    %2206 = vmatpush.msra.mxu0 %v1465
    %2207 = vmatpush.msra.mxu0 %v1461
    %2208 = vmatpush.msra.mxu0 %v1457
    %2209 = vmatpush.msra.mxu0 %v1453
    %2210 = vmatpush.msra.mxu0 %v1449
    %2211 = vmatpush.msra.mxu0 %v1445
    %2212 = vmatpush.msra.mxu0 %v1441
    %2213 = vmatpush.msra.mxu0 %v1437
    %2214 = vmatmul.f32.gmra.mxu0 %v601
    %v2215 = vpop.f32.mrf.mxu0
    %v2216 = vadd.f32 %v2196, %v2215
    %2217 = vdwg.mxu0
    %2218 = vmatpush.msra.mxu0 %v1561
    %2219 = vmatpush.msra.mxu0 %v1557
    %2220 = vmatpush.msra.mxu0 %v1553
    %2221 = vmatpush.msra.mxu0 %v1549
    %2222 = vmatpush.msra.mxu0 %v1545
    %2223 = vmatpush.msra.mxu0 %v1541
    %2224 = vmatpush.msra.mxu0 %v1537
    %2225 = vmatpush.msra.mxu0 %v1533
    %2226 = vmatpush.msra.mxu0 %v1529
    %2227 = vmatpush.msra.mxu0 %v1525
    %2228 = vmatpush.msra.mxu0 %v1521
    %2229 = vmatpush.msra.mxu0 %v1517
    %2230 = vmatpush.msra.mxu0 %v1513
    %2231 = vmatpush.msra.mxu0 %v1509
    %2232 = vmatpush.msra.mxu0 %v1505
    %2233 = vmatpush.msra.mxu0 %v1501
    %2234 = vmatmul.f32.gmra.mxu0 %v602
    %v2235 = vpop.f32.mrf.mxu0
    %v2236 = vadd.f32 %v2216, %v2235
    %2237 = vdwg.mxu0
    %2238 = vmatpush.msra.mxu0 0.0
    %2239 = vmatpush.msra.mxu0 0.0
    %2240 = vmatpush.msra.mxu0 0.0
    %2241 = vmatpush.msra.mxu0 0.0
    %2242 = vmatpush.msra.mxu0 0.0
    %2243 = vmatpush.msra.mxu0 0.0
    %2244 = vmatpush.msra.mxu0 %v1601
    %2245 = vmatpush.msra.mxu0 %v1597
    %2246 = vmatpush.msra.mxu0 %v1593
    %2247 = vmatpush.msra.mxu0 %v1589
    %2248 = vmatpush.msra.mxu0 %v1585
    %2249 = vmatpush.msra.mxu0 %v1581
    %2250 = vmatpush.msra.mxu0 %v1577
    %2251 = vmatpush.msra.mxu0 %v1573
    %2252 = vmatpush.msra.mxu0 %v1569
    %2253 = vmatpush.msra.mxu0 %v1565
    %2254 = vmatmul.f32.gmra.mxu0 %v1616
    %v2255 = vpop.f32.mrf.mxu0
    %v2256 = vadd.f32 %v2236, %v2255
    %2257 = vdwg.mxu0
    %2258 = vmatpush.msra.mxu0 %v666
    %2259 = vmatpush.msra.mxu0 %v662
    %2260 = vmatpush.msra.mxu0 %v658
    %2261 = vmatpush.msra.mxu0 %v654
    %2262 = vmatpush.msra.mxu0 %v650
    %2263 = vmatpush.msra.mxu0 %v646
    %2264 = vmatpush.msra.mxu0 %v642
    %2265 = vmatpush.msra.mxu0 %v638
    %2266 = vmatpush.msra.mxu0 %v634
    %2267 = vmatpush.msra.mxu0 %v630
    %2268 = vmatpush.msra.mxu0 %v626
    %2269 = vmatpush.msra.mxu0 %v622
    %2270 = vmatpush.msra.mxu0 %v618
    %2271 = vmatpush.msra.mxu0 %v614
    %2272 = vmatpush.msra.mxu0 %v610
    %2273 = vmatpush.msra.mxu0 %v606
    %2274 = vmatmul.f32.gmra.mxu0 %v588
    %v2275 = vpop.f32.mrf.mxu0
    %v2276 = vadd.f32 %v1608, %v2275
    %2277 = vdwg.mxu0
    %2278 = vmatpush.msra.mxu0 %v730
    %2279 = vmatpush.msra.mxu0 %v726
    %2280 = vmatpush.msra.mxu0 %v722
    %2281 = vmatpush.msra.mxu0 %v718
    %2282 = vmatpush.msra.mxu0 %v714
    %2283 = vmatpush.msra.mxu0 %v710
    %2284 = vmatpush.msra.mxu0 %v706
    %2285 = vmatpush.msra.mxu0 %v702
    %2286 = vmatpush.msra.mxu0 %v698
    %2287 = vmatpush.msra.mxu0 %v694
    %2288 = vmatpush.msra.mxu0 %v690
    %2289 = vmatpush.msra.mxu0 %v686
    %2290 = vmatpush.msra.mxu0 %v682
    %2291 = vmatpush.msra.mxu0 %v678
    %2292 = vmatpush.msra.mxu0 %v674
    %2293 = vmatpush.msra.mxu0 %v670
    %2294 = vmatmul.f32.gmra.mxu0 %v589
    %v2295 = vpop.f32.mrf.mxu0
    %v2296 = vadd.f32 %v2276, %v2295
    %2297 = vdwg.mxu0
    %2298 = vmatpush.msra.mxu0 %v794
    %2299 = vmatpush.msra.mxu0 %v790
    %2300 = vmatpush.msra.mxu0 %v786
    %2301 = vmatpush.msra.mxu0 %v782
    %2302 = vmatpush.msra.mxu0 %v778
    %2303 = vmatpush.msra.mxu0 %v774
    %2304 = vmatpush.msra.mxu0 %v770
    %2305 = vmatpush.msra.mxu0 %v766
    %2306 = vmatpush.msra.mxu0 %v762
    %2307 = vmatpush.msra.mxu0 %v758
    %2308 = vmatpush.msra.mxu0 %v754
    %2309 = vmatpush.msra.mxu0 %v750
    %2310 = vmatpush.msra.mxu0 %v746
    %2311 = vmatpush.msra.mxu0 %v742
    %2312 = vmatpush.msra.mxu0 %v738
    %2313 = vmatpush.msra.mxu0 %v734
    %2314 = vmatmul.f32.gmra.mxu0 %v590
    %v2315 = vpop.f32.mrf.mxu0
    %v2316 = vadd.f32 %v2296, %v2315
    %2317 = vdwg.mxu0
    %2318 = vmatpush.msra.mxu0 %v858
    %2319 = vmatpush.msra.mxu0 %v854
    %2320 = vmatpush.msra.mxu0 %v850
    %2321 = vmatpush.msra.mxu0 %v846
    %2322 = vmatpush.msra.mxu0 %v842
    %2323 = vmatpush.msra.mxu0 %v838
    %2324 = vmatpush.msra.mxu0 %v834
    %2325 = vmatpush.msra.mxu0 %v830
    %2326 = vmatpush.msra.mxu0 %v826
    %2327 = vmatpush.msra.mxu0 %v822
    %2328 = vmatpush.msra.mxu0 %v818
    %2329 = vmatpush.msra.mxu0 %v814
    %2330 = vmatpush.msra.mxu0 %v810
    %2331 = vmatpush.msra.mxu0 %v806
    %2332 = vmatpush.msra.mxu0 %v802
    %2333 = vmatpush.msra.mxu0 %v798
    %2334 = vmatmul.f32.gmra.mxu0 %v591
    %v2335 = vpop.f32.mrf.mxu0
    %v2336 = vadd.f32 %v2316, %v2335
    %2337 = vdwg.mxu0
    %2338 = vmatpush.msra.mxu0 %v922
    %2339 = vmatpush.msra.mxu0 %v918
    %2340 = vmatpush.msra.mxu0 %v914
    %2341 = vmatpush.msra.mxu0 %v910
    %2342 = vmatpush.msra.mxu0 %v906
    %2343 = vmatpush.msra.mxu0 %v902
    %2344 = vmatpush.msra.mxu0 %v898
    %2345 = vmatpush.msra.mxu0 %v894
    %2346 = vmatpush.msra.mxu0 %v890
    %2347 = vmatpush.msra.mxu0 %v886
    %2348 = vmatpush.msra.mxu0 %v882
    %2349 = vmatpush.msra.mxu0 %v878
    %2350 = vmatpush.msra.mxu0 %v874
    %2351 = vmatpush.msra.mxu0 %v870
    %2352 = vmatpush.msra.mxu0 %v866
    %2353 = vmatpush.msra.mxu0 %v862
    %2354 = vmatmul.f32.gmra.mxu0 %v592
    %v2355 = vpop.f32.mrf.mxu0
    %v2356 = vadd.f32 %v2336, %v2355
    %2357 = vdwg.mxu0
    %2358 = vmatpush.msra.mxu0 %v986
    %2359 = vmatpush.msra.mxu0 %v982
    %2360 = vmatpush.msra.mxu0 %v978
    %2361 = vmatpush.msra.mxu0 %v974
    %2362 = vmatpush.msra.mxu0 %v970
    %2363 = vmatpush.msra.mxu0 %v966
    %2364 = vmatpush.msra.mxu0 %v962
    %2365 = vmatpush.msra.mxu0 %v958
    %2366 = vmatpush.msra.mxu0 %v954
    %2367 = vmatpush.msra.mxu0 %v950
    %2368 = vmatpush.msra.mxu0 %v946
    %2369 = vmatpush.msra.mxu0 %v942
    %2370 = vmatpush.msra.mxu0 %v938
    %2371 = vmatpush.msra.mxu0 %v934
    %2372 = vmatpush.msra.mxu0 %v930
    %2373 = vmatpush.msra.mxu0 %v926
    %2374 = vmatmul.f32.gmra.mxu0 %v593
    %v2375 = vpop.f32.mrf.mxu0
    %v2376 = vadd.f32 %v2356, %v2375
    %2377 = vdwg.mxu0
    %2378 = vmatpush.msra.mxu0 %v1050
    %2379 = vmatpush.msra.mxu0 %v1046
    %2380 = vmatpush.msra.mxu0 %v1042
    %2381 = vmatpush.msra.mxu0 %v1038
    %2382 = vmatpush.msra.mxu0 %v1034
    %2383 = vmatpush.msra.mxu0 %v1030
    %2384 = vmatpush.msra.mxu0 %v1026
    %2385 = vmatpush.msra.mxu0 %v1022
    %2386 = vmatpush.msra.mxu0 %v1018
    %2387 = vmatpush.msra.mxu0 %v1014
    %2388 = vmatpush.msra.mxu0 %v1010
    %2389 = vmatpush.msra.mxu0 %v1006
    %2390 = vmatpush.msra.mxu0 %v1002
    %2391 = vmatpush.msra.mxu0 %v998
    %2392 = vmatpush.msra.mxu0 %v994
    %2393 = vmatpush.msra.mxu0 %v990
    %2394 = vmatmul.f32.gmra.mxu0 %v594
    %v2395 = vpop.f32.mrf.mxu0
    %v2396 = vadd.f32 %v2376, %v2395
    %2397 = vdwg.mxu0
    %2398 = vmatpush.msra.mxu0 %v1114
    %2399 = vmatpush.msra.mxu0 %v1110
    %2400 = vmatpush.msra.mxu0 %v1106
    %2401 = vmatpush.msra.mxu0 %v1102
    %2402 = vmatpush.msra.mxu0 %v1098
    %2403 = vmatpush.msra.mxu0 %v1094
    %2404 = vmatpush.msra.mxu0 %v1090
    %2405 = vmatpush.msra.mxu0 %v1086
    %2406 = vmatpush.msra.mxu0 %v1082
    %2407 = vmatpush.msra.mxu0 %v1078
    %2408 = vmatpush.msra.mxu0 %v1074
    %2409 = vmatpush.msra.mxu0 %v1070
    %2410 = vmatpush.msra.mxu0 %v1066
    %2411 = vmatpush.msra.mxu0 %v1062
    %2412 = vmatpush.msra.mxu0 %v1058
    %2413 = vmatpush.msra.mxu0 %v1054
    %2414 = vmatmul.f32.gmra.mxu0 %v595
    %v2415 = vpop.f32.mrf.mxu0
    %v2416 = vadd.f32 %v2396, %v2415
    %2417 = vdwg.mxu0
    %2418 = vmatpush.msra.mxu0 %v1178
    %2419 = vmatpush.msra.mxu0 %v1174
    %2420 = vmatpush.msra.mxu0 %v1170
    %2421 = vmatpush.msra.mxu0 %v1166
    %2422 = vmatpush.msra.mxu0 %v1162
    %2423 = vmatpush.msra.mxu0 %v1158
    %2424 = vmatpush.msra.mxu0 %v1154
    %2425 = vmatpush.msra.mxu0 %v1150
    %2426 = vmatpush.msra.mxu0 %v1146
    %2427 = vmatpush.msra.mxu0 %v1142
    %2428 = vmatpush.msra.mxu0 %v1138
    %2429 = vmatpush.msra.mxu0 %v1134
    %2430 = vmatpush.msra.mxu0 %v1130
    %2431 = vmatpush.msra.mxu0 %v1126
    %2432 = vmatpush.msra.mxu0 %v1122
    %2433 = vmatpush.msra.mxu0 %v1118
    %2434 = vmatmul.f32.gmra.mxu0 %v596
    %v2435 = vpop.f32.mrf.mxu0
    %v2436 = vadd.f32 %v2416, %v2435
    %2437 = vdwg.mxu0
    %2438 = vmatpush.msra.mxu0 %v1242
    %2439 = vmatpush.msra.mxu0 %v1238
    %2440 = vmatpush.msra.mxu0 %v1234
    %2441 = vmatpush.msra.mxu0 %v1230
    %2442 = vmatpush.msra.mxu0 %v1226
    %2443 = vmatpush.msra.mxu0 %v1222
    %2444 = vmatpush.msra.mxu0 %v1218
    %2445 = vmatpush.msra.mxu0 %v1214
    %2446 = vmatpush.msra.mxu0 %v1210
    %2447 = vmatpush.msra.mxu0 %v1206
    %2448 = vmatpush.msra.mxu0 %v1202
    %2449 = vmatpush.msra.mxu0 %v1198
    %2450 = vmatpush.msra.mxu0 %v1194
    %2451 = vmatpush.msra.mxu0 %v1190
    %2452 = vmatpush.msra.mxu0 %v1186
    %2453 = vmatpush.msra.mxu0 %v1182
    %2454 = vmatmul.f32.gmra.mxu0 %v597
    %v2455 = vpop.f32.mrf.mxu0
    %v2456 = vadd.f32 %v2436, %v2455
    %2457 = vdwg.mxu0
    %2458 = vmatpush.msra.mxu0 %v1306
    %2459 = vmatpush.msra.mxu0 %v1302
    %2460 = vmatpush.msra.mxu0 %v1298
    %2461 = vmatpush.msra.mxu0 %v1294
    %2462 = vmatpush.msra.mxu0 %v1290
    %2463 = vmatpush.msra.mxu0 %v1286
    %2464 = vmatpush.msra.mxu0 %v1282
    %2465 = vmatpush.msra.mxu0 %v1278
    %2466 = vmatpush.msra.mxu0 %v1274
    %2467 = vmatpush.msra.mxu0 %v1270
    %2468 = vmatpush.msra.mxu0 %v1266
    %2469 = vmatpush.msra.mxu0 %v1262
    %2470 = vmatpush.msra.mxu0 %v1258
    %2471 = vmatpush.msra.mxu0 %v1254
    %2472 = vmatpush.msra.mxu0 %v1250
    %2473 = vmatpush.msra.mxu0 %v1246
    %2474 = vmatmul.f32.gmra.mxu0 %v598
    %v2475 = vpop.f32.mrf.mxu0
    %v2476 = vadd.f32 %v2456, %v2475
    %2477 = vdwg.mxu0
    %2478 = vmatpush.msra.mxu0 %v1370
    %2479 = vmatpush.msra.mxu0 %v1366
    %2480 = vmatpush.msra.mxu0 %v1362
    %2481 = vmatpush.msra.mxu0 %v1358
    %2482 = vmatpush.msra.mxu0 %v1354
    %2483 = vmatpush.msra.mxu0 %v1350
    %2484 = vmatpush.msra.mxu0 %v1346
    %2485 = vmatpush.msra.mxu0 %v1342
    %2486 = vmatpush.msra.mxu0 %v1338
    %2487 = vmatpush.msra.mxu0 %v1334
    %2488 = vmatpush.msra.mxu0 %v1330
    %2489 = vmatpush.msra.mxu0 %v1326
    %2490 = vmatpush.msra.mxu0 %v1322
    %2491 = vmatpush.msra.mxu0 %v1318
    %2492 = vmatpush.msra.mxu0 %v1314
    %2493 = vmatpush.msra.mxu0 %v1310
    %2494 = vmatmul.f32.gmra.mxu0 %v599
    %v2495 = vpop.f32.mrf.mxu0
    %v2496 = vadd.f32 %v2476, %v2495
    %2497 = vdwg.mxu0
    %2498 = vmatpush.msra.mxu0 %v1434
    %2499 = vmatpush.msra.mxu0 %v1430
    %2500 = vmatpush.msra.mxu0 %v1426
    %2501 = vmatpush.msra.mxu0 %v1422
    %2502 = vmatpush.msra.mxu0 %v1418
    %2503 = vmatpush.msra.mxu0 %v1414
    %2504 = vmatpush.msra.mxu0 %v1410
    %2505 = vmatpush.msra.mxu0 %v1406
    %2506 = vmatpush.msra.mxu0 %v1402
    %2507 = vmatpush.msra.mxu0 %v1398
    %2508 = vmatpush.msra.mxu0 %v1394
    %2509 = vmatpush.msra.mxu0 %v1390
    %2510 = vmatpush.msra.mxu0 %v1386
    %2511 = vmatpush.msra.mxu0 %v1382
    %2512 = vmatpush.msra.mxu0 %v1378
    %2513 = vmatpush.msra.mxu0 %v1374
    %2514 = vmatmul.f32.gmra.mxu0 %v600
    %v2515 = vpop.f32.mrf.mxu0
    %v2516 = vadd.f32 %v2496, %v2515
    %2517 = vdwg.mxu0
    %2518 = vmatpush.msra.mxu0 %v1498
    %2519 = vmatpush.msra.mxu0 %v1494
    %2520 = vmatpush.msra.mxu0 %v1490
    %2521 = vmatpush.msra.mxu0 %v1486
    %2522 = vmatpush.msra.mxu0 %v1482
    %2523 = vmatpush.msra.mxu0 %v1478
    %2524 = vmatpush.msra.mxu0 %v1474
    %2525 = vmatpush.msra.mxu0 %v1470
    %2526 = vmatpush.msra.mxu0 %v1466
    %2527 = vmatpush.msra.mxu0 %v1462
    %2528 = vmatpush.msra.mxu0 %v1458
    %2529 = vmatpush.msra.mxu0 %v1454
    %2530 = vmatpush.msra.mxu0 %v1450
    %2531 = vmatpush.msra.mxu0 %v1446
    %2532 = vmatpush.msra.mxu0 %v1442
    %2533 = vmatpush.msra.mxu0 %v1438
    %2534 = vmatmul.f32.gmra.mxu0 %v601
    %v2535 = vpop.f32.mrf.mxu0
    %v2536 = vadd.f32 %v2516, %v2535
    %2537 = vdwg.mxu0
    %2538 = vmatpush.msra.mxu0 %v1562
    %2539 = vmatpush.msra.mxu0 %v1558
    %2540 = vmatpush.msra.mxu0 %v1554
    %2541 = vmatpush.msra.mxu0 %v1550
    %2542 = vmatpush.msra.mxu0 %v1546
    %2543 = vmatpush.msra.mxu0 %v1542
    %2544 = vmatpush.msra.mxu0 %v1538
    %2545 = vmatpush.msra.mxu0 %v1534
    %2546 = vmatpush.msra.mxu0 %v1530
    %2547 = vmatpush.msra.mxu0 %v1526
    %2548 = vmatpush.msra.mxu0 %v1522
    %2549 = vmatpush.msra.mxu0 %v1518
    %2550 = vmatpush.msra.mxu0 %v1514
    %2551 = vmatpush.msra.mxu0 %v1510
    %2552 = vmatpush.msra.mxu0 %v1506
    %2553 = vmatpush.msra.mxu0 %v1502
    %2554 = vmatmul.f32.gmra.mxu0 %v602
    %v2555 = vpop.f32.mrf.mxu0
    %v2556 = vadd.f32 %v2536, %v2555
    %2557 = vdwg.mxu0
    %2558 = vmatpush.msra.mxu0 0.0
    %2559 = vmatpush.msra.mxu0 0.0
    %2560 = vmatpush.msra.mxu0 0.0
    %2561 = vmatpush.msra.mxu0 0.0
    %2562 = vmatpush.msra.mxu0 0.0
    %2563 = vmatpush.msra.mxu0 0.0
    %2564 = vmatpush.msra.mxu0 %v1602
    %2565 = vmatpush.msra.mxu0 %v1598
    %2566 = vmatpush.msra.mxu0 %v1594
    %2567 = vmatpush.msra.mxu0 %v1590
    %2568 = vmatpush.msra.mxu0 %v1586
    %2569 = vmatpush.msra.mxu0 %v1582
    %2570 = vmatpush.msra.mxu0 %v1578
    %2571 = vmatpush.msra.mxu0 %v1574
    %2572 = vmatpush.msra.mxu0 %v1570
    %2573 = vmatpush.msra.mxu0 %v1566
    %2574 = vmatmul.f32.gmra.mxu0 %v1616
    %v2575 = vpop.f32.mrf.mxu0
    %v2576 = vadd.f32 %v2556, %v2575
    %2577 = vdwg.mxu0
    %2578 = vmatpush.msra.mxu0 %v667
    %2579 = vmatpush.msra.mxu0 %v663
    %2580 = vmatpush.msra.mxu0 %v659
    %2581 = vmatpush.msra.mxu0 %v655
    %2582 = vmatpush.msra.mxu0 %v651
    %2583 = vmatpush.msra.mxu0 %v647
    %2584 = vmatpush.msra.mxu0 %v643
    %2585 = vmatpush.msra.mxu0 %v639
    %2586 = vmatpush.msra.mxu0 %v635
    %2587 = vmatpush.msra.mxu0 %v631
    %2588 = vmatpush.msra.mxu0 %v627
    %2589 = vmatpush.msra.mxu0 %v623
    %2590 = vmatpush.msra.mxu0 %v619
    %2591 = vmatpush.msra.mxu0 %v615
    %2592 = vmatpush.msra.mxu0 %v611
    %2593 = vmatpush.msra.mxu0 %v607
    %2594 = vmatmul.f32.gmra.mxu0 %v588
    %v2595 = vpop.f32.mrf.mxu0
    %v2596 = vadd.f32 %v1609, %v2595
    %2597 = vdwg.mxu0
    %2598 = vmatpush.msra.mxu0 %v731
    %2599 = vmatpush.msra.mxu0 %v727
    %2600 = vmatpush.msra.mxu0 %v723
    %2601 = vmatpush.msra.mxu0 %v719
    %2602 = vmatpush.msra.mxu0 %v715
    %2603 = vmatpush.msra.mxu0 %v711
    %2604 = vmatpush.msra.mxu0 %v707
    %2605 = vmatpush.msra.mxu0 %v703
    %2606 = vmatpush.msra.mxu0 %v699
    %2607 = vmatpush.msra.mxu0 %v695
    %2608 = vmatpush.msra.mxu0 %v691
    %2609 = vmatpush.msra.mxu0 %v687
    %2610 = vmatpush.msra.mxu0 %v683
    %2611 = vmatpush.msra.mxu0 %v679
    %2612 = vmatpush.msra.mxu0 %v675
    %2613 = vmatpush.msra.mxu0 %v671
    %2614 = vmatmul.f32.gmra.mxu0 %v589
    %v2615 = vpop.f32.mrf.mxu0
    %v2616 = vadd.f32 %v2596, %v2615
    %2617 = vdwg.mxu0
    %2618 = vmatpush.msra.mxu0 %v795
    %2619 = vmatpush.msra.mxu0 %v791
    %2620 = vmatpush.msra.mxu0 %v787
    %2621 = vmatpush.msra.mxu0 %v783
    %2622 = vmatpush.msra.mxu0 %v779
    %2623 = vmatpush.msra.mxu0 %v775
    %2624 = vmatpush.msra.mxu0 %v771
    %2625 = vmatpush.msra.mxu0 %v767
    %2626 = vmatpush.msra.mxu0 %v763
    %2627 = vmatpush.msra.mxu0 %v759
    %2628 = vmatpush.msra.mxu0 %v755
    %2629 = vmatpush.msra.mxu0 %v751
    %2630 = vmatpush.msra.mxu0 %v747
    %2631 = vmatpush.msra.mxu0 %v743
    %2632 = vmatpush.msra.mxu0 %v739
    %2633 = vmatpush.msra.mxu0 %v735
    %2634 = vmatmul.f32.gmra.mxu0 %v590
    %v2635 = vpop.f32.mrf.mxu0
    %v2636 = vadd.f32 %v2616, %v2635
    %2637 = vdwg.mxu0
    %2638 = vmatpush.msra.mxu0 %v859
    %2639 = vmatpush.msra.mxu0 %v855
    %2640 = vmatpush.msra.mxu0 %v851
    %2641 = vmatpush.msra.mxu0 %v847
    %2642 = vmatpush.msra.mxu0 %v843
    %2643 = vmatpush.msra.mxu0 %v839
    %2644 = vmatpush.msra.mxu0 %v835
    %2645 = vmatpush.msra.mxu0 %v831
    %2646 = vmatpush.msra.mxu0 %v827
    %2647 = vmatpush.msra.mxu0 %v823
    %2648 = vmatpush.msra.mxu0 %v819
    %2649 = vmatpush.msra.mxu0 %v815
    %2650 = vmatpush.msra.mxu0 %v811
    %2651 = vmatpush.msra.mxu0 %v807
    %2652 = vmatpush.msra.mxu0 %v803
    %2653 = vmatpush.msra.mxu0 %v799
    %2654 = vmatmul.f32.gmra.mxu0 %v591
    %v2655 = vpop.f32.mrf.mxu0
    %v2656 = vadd.f32 %v2636, %v2655
    %2657 = vdwg.mxu0
    %2658 = vmatpush.msra.mxu0 %v923
    %2659 = vmatpush.msra.mxu0 %v919
    %2660 = vmatpush.msra.mxu0 %v915
    %2661 = vmatpush.msra.mxu0 %v911
    %2662 = vmatpush.msra.mxu0 %v907
    %2663 = vmatpush.msra.mxu0 %v903
    %2664 = vmatpush.msra.mxu0 %v899
    %2665 = vmatpush.msra.mxu0 %v895
    %2666 = vmatpush.msra.mxu0 %v891
    %2667 = vmatpush.msra.mxu0 %v887
    %2668 = vmatpush.msra.mxu0 %v883
    %2669 = vmatpush.msra.mxu0 %v879
    %2670 = vmatpush.msra.mxu0 %v875
    %2671 = vmatpush.msra.mxu0 %v871
    %2672 = vmatpush.msra.mxu0 %v867
    %2673 = vmatpush.msra.mxu0 %v863
    %2674 = vmatmul.f32.gmra.mxu0 %v592
    %v2675 = vpop.f32.mrf.mxu0
    %v2676 = vadd.f32 %v2656, %v2675
    %2677 = vdwg.mxu0
    %2678 = vmatpush.msra.mxu0 %v987
    %2679 = vmatpush.msra.mxu0 %v983
    %2680 = vmatpush.msra.mxu0 %v979
    %2681 = vmatpush.msra.mxu0 %v975
    %2682 = vmatpush.msra.mxu0 %v971
    %2683 = vmatpush.msra.mxu0 %v967
    %2684 = vmatpush.msra.mxu0 %v963
    %2685 = vmatpush.msra.mxu0 %v959
    %2686 = vmatpush.msra.mxu0 %v955
    %2687 = vmatpush.msra.mxu0 %v951
    %2688 = vmatpush.msra.mxu0 %v947
    %2689 = vmatpush.msra.mxu0 %v943
    %2690 = vmatpush.msra.mxu0 %v939
    %2691 = vmatpush.msra.mxu0 %v935
    %2692 = vmatpush.msra.mxu0 %v931
    %2693 = vmatpush.msra.mxu0 %v927
    %2694 = vmatmul.f32.gmra.mxu0 %v593
    %v2695 = vpop.f32.mrf.mxu0
    %v2696 = vadd.f32 %v2676, %v2695
    %2697 = vdwg.mxu0
    %2698 = vmatpush.msra.mxu0 %v1051
    %2699 = vmatpush.msra.mxu0 %v1047
    %2700 = vmatpush.msra.mxu0 %v1043
    %2701 = vmatpush.msra.mxu0 %v1039
    %2702 = vmatpush.msra.mxu0 %v1035
    %2703 = vmatpush.msra.mxu0 %v1031
    %2704 = vmatpush.msra.mxu0 %v1027
    %2705 = vmatpush.msra.mxu0 %v1023
    %2706 = vmatpush.msra.mxu0 %v1019
    %2707 = vmatpush.msra.mxu0 %v1015
    %2708 = vmatpush.msra.mxu0 %v1011
    %2709 = vmatpush.msra.mxu0 %v1007
    %2710 = vmatpush.msra.mxu0 %v1003
    %2711 = vmatpush.msra.mxu0 %v999
    %2712 = vmatpush.msra.mxu0 %v995
    %2713 = vmatpush.msra.mxu0 %v991
    %2714 = vmatmul.f32.gmra.mxu0 %v594
    %v2715 = vpop.f32.mrf.mxu0
    %v2716 = vadd.f32 %v2696, %v2715
    %2717 = vdwg.mxu0
    %2718 = vmatpush.msra.mxu0 %v1115
    %2719 = vmatpush.msra.mxu0 %v1111
    %2720 = vmatpush.msra.mxu0 %v1107
    %2721 = vmatpush.msra.mxu0 %v1103
    %2722 = vmatpush.msra.mxu0 %v1099
    %2723 = vmatpush.msra.mxu0 %v1095
    %2724 = vmatpush.msra.mxu0 %v1091
    %2725 = vmatpush.msra.mxu0 %v1087
    %2726 = vmatpush.msra.mxu0 %v1083
    %2727 = vmatpush.msra.mxu0 %v1079
    %2728 = vmatpush.msra.mxu0 %v1075
    %2729 = vmatpush.msra.mxu0 %v1071
    %2730 = vmatpush.msra.mxu0 %v1067
    %2731 = vmatpush.msra.mxu0 %v1063
    %2732 = vmatpush.msra.mxu0 %v1059
    %2733 = vmatpush.msra.mxu0 %v1055
    %2734 = vmatmul.f32.gmra.mxu0 %v595
    %v2735 = vpop.f32.mrf.mxu0
    %v2736 = vadd.f32 %v2716, %v2735
    %2737 = vdwg.mxu0
    %2738 = vmatpush.msra.mxu0 %v1179
    %2739 = vmatpush.msra.mxu0 %v1175
    %2740 = vmatpush.msra.mxu0 %v1171
    %2741 = vmatpush.msra.mxu0 %v1167
    %2742 = vmatpush.msra.mxu0 %v1163
    %2743 = vmatpush.msra.mxu0 %v1159
    %2744 = vmatpush.msra.mxu0 %v1155
    %2745 = vmatpush.msra.mxu0 %v1151
    %2746 = vmatpush.msra.mxu0 %v1147
    %2747 = vmatpush.msra.mxu0 %v1143
    %2748 = vmatpush.msra.mxu0 %v1139
    %2749 = vmatpush.msra.mxu0 %v1135
    %2750 = vmatpush.msra.mxu0 %v1131
    %2751 = vmatpush.msra.mxu0 %v1127
    %2752 = vmatpush.msra.mxu0 %v1123
    %2753 = vmatpush.msra.mxu0 %v1119
    %2754 = vmatmul.f32.gmra.mxu0 %v596
    %v2755 = vpop.f32.mrf.mxu0
    %v2756 = vadd.f32 %v2736, %v2755
    %2757 = vdwg.mxu0
    %2758 = vmatpush.msra.mxu0 %v1243
    %2759 = vmatpush.msra.mxu0 %v1239
    %2760 = vmatpush.msra.mxu0 %v1235
    %2761 = vmatpush.msra.mxu0 %v1231
    %2762 = vmatpush.msra.mxu0 %v1227
    %2763 = vmatpush.msra.mxu0 %v1223
    %2764 = vmatpush.msra.mxu0 %v1219
    %2765 = vmatpush.msra.mxu0 %v1215
    %2766 = vmatpush.msra.mxu0 %v1211
    %2767 = vmatpush.msra.mxu0 %v1207
    %2768 = vmatpush.msra.mxu0 %v1203
    %2769 = vmatpush.msra.mxu0 %v1199
    %2770 = vmatpush.msra.mxu0 %v1195
    %2771 = vmatpush.msra.mxu0 %v1191
    %2772 = vmatpush.msra.mxu0 %v1187
    %2773 = vmatpush.msra.mxu0 %v1183
    %2774 = vmatmul.f32.gmra.mxu0 %v597
    %v2775 = vpop.f32.mrf.mxu0
    %v2776 = vadd.f32 %v2756, %v2775
    %2777 = vdwg.mxu0
    %2778 = vmatpush.msra.mxu0 %v1307
    %2779 = vmatpush.msra.mxu0 %v1303
    %2780 = vmatpush.msra.mxu0 %v1299
    %2781 = vmatpush.msra.mxu0 %v1295
    %2782 = vmatpush.msra.mxu0 %v1291
    %2783 = vmatpush.msra.mxu0 %v1287
    %2784 = vmatpush.msra.mxu0 %v1283
    %2785 = vmatpush.msra.mxu0 %v1279
    %2786 = vmatpush.msra.mxu0 %v1275
    %2787 = vmatpush.msra.mxu0 %v1271
    %2788 = vmatpush.msra.mxu0 %v1267
    %2789 = vmatpush.msra.mxu0 %v1263
    %2790 = vmatpush.msra.mxu0 %v1259
    %2791 = vmatpush.msra.mxu0 %v1255
    %2792 = vmatpush.msra.mxu0 %v1251
    %2793 = vmatpush.msra.mxu0 %v1247
    %2794 = vmatmul.f32.gmra.mxu0 %v598
    %v2795 = vpop.f32.mrf.mxu0
    %v2796 = vadd.f32 %v2776, %v2795
    %2797 = vdwg.mxu0
    %2798 = vmatpush.msra.mxu0 %v1371
    %2799 = vmatpush.msra.mxu0 %v1367
    %2800 = vmatpush.msra.mxu0 %v1363
    %2801 = vmatpush.msra.mxu0 %v1359
    %2802 = vmatpush.msra.mxu0 %v1355
    %2803 = vmatpush.msra.mxu0 %v1351
    %2804 = vmatpush.msra.mxu0 %v1347
    %2805 = vmatpush.msra.mxu0 %v1343
    %2806 = vmatpush.msra.mxu0 %v1339
    %2807 = vmatpush.msra.mxu0 %v1335
    %2808 = vmatpush.msra.mxu0 %v1331
    %2809 = vmatpush.msra.mxu0 %v1327
    %2810 = vmatpush.msra.mxu0 %v1323
    %2811 = vmatpush.msra.mxu0 %v1319
    %2812 = vmatpush.msra.mxu0 %v1315
    %2813 = vmatpush.msra.mxu0 %v1311
    %2814 = vmatmul.f32.gmra.mxu0 %v599
    %v2815 = vpop.f32.mrf.mxu0
    %v2816 = vadd.f32 %v2796, %v2815
    %2817 = vdwg.mxu0
    %2818 = vmatpush.msra.mxu0 %v1435
    %2819 = vmatpush.msra.mxu0 %v1431
    %2820 = vmatpush.msra.mxu0 %v1427
    %2821 = vmatpush.msra.mxu0 %v1423
    %2822 = vmatpush.msra.mxu0 %v1419
    %2823 = vmatpush.msra.mxu0 %v1415
    %2824 = vmatpush.msra.mxu0 %v1411
    %2825 = vmatpush.msra.mxu0 %v1407
    %2826 = vmatpush.msra.mxu0 %v1403
    %2827 = vmatpush.msra.mxu0 %v1399
    %2828 = vmatpush.msra.mxu0 %v1395
    %2829 = vmatpush.msra.mxu0 %v1391
    %2830 = vmatpush.msra.mxu0 %v1387
    %2831 = vmatpush.msra.mxu0 %v1383
    %2832 = vmatpush.msra.mxu0 %v1379
    %2833 = vmatpush.msra.mxu0 %v1375
    %2834 = vmatmul.f32.gmra.mxu0 %v600
    %v2835 = vpop.f32.mrf.mxu0
    %v2836 = vadd.f32 %v2816, %v2835
    %2837 = vdwg.mxu0
    %2838 = vmatpush.msra.mxu0 %v1499
    %2839 = vmatpush.msra.mxu0 %v1495
    %2840 = vmatpush.msra.mxu0 %v1491
    %2841 = vmatpush.msra.mxu0 %v1487
    %2842 = vmatpush.msra.mxu0 %v1483
    %2843 = vmatpush.msra.mxu0 %v1479
    %2844 = vmatpush.msra.mxu0 %v1475
    %2845 = vmatpush.msra.mxu0 %v1471
    %2846 = vmatpush.msra.mxu0 %v1467
    %2847 = vmatpush.msra.mxu0 %v1463
    %2848 = vmatpush.msra.mxu0 %v1459
    %2849 = vmatpush.msra.mxu0 %v1455
    %2850 = vmatpush.msra.mxu0 %v1451
    %2851 = vmatpush.msra.mxu0 %v1447
    %2852 = vmatpush.msra.mxu0 %v1443
    %2853 = vmatpush.msra.mxu0 %v1439
    %2854 = vmatmul.f32.gmra.mxu0 %v601
    %v2855 = vpop.f32.mrf.mxu0
    %v2856 = vadd.f32 %v2836, %v2855
    %2857 = vdwg.mxu0
    %2858 = vmatpush.msra.mxu0 %v1563
    %2859 = vmatpush.msra.mxu0 %v1559
    %2860 = vmatpush.msra.mxu0 %v1555
    %2861 = vmatpush.msra.mxu0 %v1551
    %2862 = vmatpush.msra.mxu0 %v1547
    %2863 = vmatpush.msra.mxu0 %v1543
    %2864 = vmatpush.msra.mxu0 %v1539
    %2865 = vmatpush.msra.mxu0 %v1535
    %2866 = vmatpush.msra.mxu0 %v1531
    %2867 = vmatpush.msra.mxu0 %v1527
    %2868 = vmatpush.msra.mxu0 %v1523
    %2869 = vmatpush.msra.mxu0 %v1519
    %2870 = vmatpush.msra.mxu0 %v1515
    %2871 = vmatpush.msra.mxu0 %v1511
    %2872 = vmatpush.msra.mxu0 %v1507
    %2873 = vmatpush.msra.mxu0 %v1503
    %2874 = vmatmul.f32.gmra.mxu0 %v602
    %v2875 = vpop.f32.mrf.mxu0
    %v2876 = vadd.f32 %v2856, %v2875
    %2877 = vdwg.mxu0
    %2878 = vmatpush.msra.mxu0 0.0
    %2879 = vmatpush.msra.mxu0 0.0
    %2880 = vmatpush.msra.mxu0 0.0
    %2881 = vmatpush.msra.mxu0 0.0
    %2882 = vmatpush.msra.mxu0 0.0
    %2883 = vmatpush.msra.mxu0 0.0
    %2884 = vmatpush.msra.mxu0 %v1603
    %2885 = vmatpush.msra.mxu0 %v1599
    %2886 = vmatpush.msra.mxu0 %v1595
    %2887 = vmatpush.msra.mxu0 %v1591
    %2888 = vmatpush.msra.mxu0 %v1587
    %2889 = vmatpush.msra.mxu0 %v1583
    %2890 = vmatpush.msra.mxu0 %v1579
    %2891 = vmatpush.msra.mxu0 %v1575
    %2892 = vmatpush.msra.mxu0 %v1571
    %2893 = vmatpush.msra.mxu0 %v1567
    %2894 = vmatmul.f32.gmra.mxu0 %v1616
    %v2895 = vpop.f32.mrf.mxu0
    %v2896 = vadd.f32 %v2876, %v2895
    %2897 = vdwg.mxu0
    %v2898 = vmax.f32 %v1936, 0.0
    %v2899 = vmax.f32 %v2256, 0.0
    %v2900 = vmax.f32 %v2576, 0.0
    %v2901 = vmax.f32 %v2896, 0.0
    %v2902 = vld [vmem:[#allocation11] sm:$0xff]
    %v2903 = vld [vmem:[#allocation11 + $0x8] sm:$0xff]
    %v2904 = vld [vmem:[#allocation11 + $0x10] sm:$0xff]
    %v2905 = vld [vmem:[#allocation11 + $0x18] sm:$0xff]
    %v2906 = vld [vmem:[#allocation11 + $0x20] sm:$0xff]
    %v2907 = vld [vmem:[#allocation11 + $0x28] sm:$0xff]
    %v2908 = vld [vmem:[#allocation11 + $0x30] sm:$0xff]
    %v2909 = vld [vmem:[#allocation11 + $0x38] sm:$0xff]
    %v2910 = vld [vmem:[#allocation11 + $0x40] sm:$0xff]
    %v2911 = vld [vmem:[#allocation11 + $0x48] sm:$0xff]
    %v2912 = vld [vmem:[#allocation11 + $0x50] sm:$0xff]
    %v2913 = vld [vmem:[#allocation11 + $0x58] sm:$0xff]
    %v2914 = vld [vmem:[#allocation11 + $0x60] sm:$0xff]
    %v2915 = vld [vmem:[#allocation11 + $0x68] sm:$0xff]
    %v2916 = vld [vmem:[#allocation11 + $0x70] sm:$0xff]
    %v2917 = vld [vmem:[#allocation11 + $0x78] sm:$0xff]
    %v2918 = vld [vmem:[#allocation11 + $0x80] sm:$0xff]
    %v2919 = vld [vmem:[#allocation11 + $0x88] sm:$0xff]
    %v2920 = vld [vmem:[#allocation11 + $0x90] sm:$0xff]
    %v2921 = vld [vmem:[#allocation11 + $0x98] sm:$0xff]
    %v2922 = vld [vmem:[#allocation11 + $0xa0] sm:$0xff]
    %v2923 = vld [vmem:[#allocation11 + $0xa8] sm:$0xff]
    %v2924 = vld [vmem:[#allocation11 + $0xb0] sm:$0xff]
    %v2925 = vld [vmem:[#allocation11 + $0xb8] sm:$0xff]
    %v2926 = vld [vmem:[#allocation11 + $0xc0] sm:$0xff]
    %v2927 = vld [vmem:[#allocation11 + $0xc8] sm:$0xff]
    %v2928 = vld [vmem:[#allocation11 + $0xd0] sm:$0xff]
    %v2929 = vld [vmem:[#allocation11 + $0xd8] sm:$0xff]
    %v2930 = vld [vmem:[#allocation11 + $0xe0] sm:$0xff]
    %v2931 = vld [vmem:[#allocation11 + $0xe8] sm:$0xff]
    %v2932 = vld [vmem:[#allocation11 + $0xf0] sm:$0xff]
    %v2933 = vld [vmem:[#allocation11 + $0xf8] sm:$0xff]
    %v2934 = vld [vmem:[#allocation11 + $0x100] sm:$0xff]
    %v2935 = vld [vmem:[#allocation11 + $0x108] sm:$0xff]
    %v2936 = vld [vmem:[#allocation11 + $0x110] sm:$0xff]
    %v2937 = vld [vmem:[#allocation11 + $0x118] sm:$0xff]
    %v2938 = vld [vmem:[#allocation11 + $0x120] sm:$0xff]
    %v2939 = vld [vmem:[#allocation11 + $0x128] sm:$0xff]
    %v2940 = vld [vmem:[#allocation11 + $0x130] sm:$0xff]
    %v2941 = vld [vmem:[#allocation11 + $0x138] sm:$0xff]
    %v2942 = vld [vmem:[#allocation11 + $0x140] sm:$0xff]
    %v2943 = vld [vmem:[#allocation11 + $0x148] sm:$0xff]
    %v2944 = vld [vmem:[#allocation11 + $0x150] sm:$0xff]
    %v2945 = vld [vmem:[#allocation11 + $0x158] sm:$0xff]
    %v2946 = vld [vmem:[#allocation11 + $0x160] sm:$0xff]
    %v2947 = vld [vmem:[#allocation11 + $0x168] sm:$0xff]
    %v2948 = vld [vmem:[#allocation11 + $0x170] sm:$0xff]
    %v2949 = vld [vmem:[#allocation11 + $0x178] sm:$0xff]
    %v2950 = vld [vmem:[#allocation11 + $0x180] sm:$0xff]
    %v2951 = vld [vmem:[#allocation11 + $0x188] sm:$0xff]
    %v2952 = vld [vmem:[#allocation11 + $0x190] sm:$0xff]
    %v2953 = vld [vmem:[#allocation11 + $0x198] sm:$0xff]
    %v2954 = vld [vmem:[#allocation11 + $0x1a0] sm:$0xff]
    %v2955 = vld [vmem:[#allocation11 + $0x1a8] sm:$0xff]
    %v2956 = vld [vmem:[#allocation11 + $0x1b0] sm:$0xff]
    %v2957 = vld [vmem:[#allocation11 + $0x1b8] sm:$0xff]
    %v2958 = vld [vmem:[#allocation11 + $0x1c0] sm:$0xff]
    %v2959 = vld [vmem:[#allocation11 + $0x1c8] sm:$0xff]
    %v2960 = vld [vmem:[#allocation11 + $0x1d0] sm:$0xff]
    %v2961 = vld [vmem:[#allocation11 + $0x1d8] sm:$0xff]
    %v2962 = vld [vmem:[#allocation11 + $0x1e0] sm:$0xff]
    %v2963 = vld [vmem:[#allocation11 + $0x1e8] sm:$0xff]
    %v2964 = vld [vmem:[#allocation11 + $0x1f0] sm:$0xff]
    %v2965 = vld [vmem:[#allocation11 + $0x1f8] sm:$0xff]
    %v2966 = vld [vmem:[#allocation11 + $0x200] sm:$0xff]
    %v2967 = vld [vmem:[#allocation11 + $0x208] sm:$0xff]
    %v2968 = vld [vmem:[#allocation11 + $0x210] sm:$0xff]
    %v2969 = vld [vmem:[#allocation11 + $0x218] sm:$0xff]
    %v2970 = vld [vmem:[#allocation11 + $0x220] sm:$0xff]
    %v2971 = vld [vmem:[#allocation11 + $0x228] sm:$0xff]
    %v2972 = vld [vmem:[#allocation11 + $0x230] sm:$0xff]
    %v2973 = vld [vmem:[#allocation11 + $0x238] sm:$0xff]
    %v2974 = vld [vmem:[#allocation11 + $0x240] sm:$0xff]
    %v2975 = vld [vmem:[#allocation11 + $0x248] sm:$0xff]
    %v2976 = vld [vmem:[#allocation11 + $0x250] sm:$0xff]
    %v2977 = vld [vmem:[#allocation11 + $0x258] sm:$0xff]
    %v2978 = vld [vmem:[#allocation11 + $0x260] sm:$0xff]
    %v2979 = vld [vmem:[#allocation11 + $0x268] sm:$0xff]
    %v2980 = vld [vmem:[#allocation11 + $0x270] sm:$0xff]
    %v2981 = vld [vmem:[#allocation11 + $0x278] sm:$0xff]
    %v2982 = vld [vmem:[#allocation11 + $0x280] sm:$0xff]
    %v2983 = vld [vmem:[#allocation11 + $0x288] sm:$0xff]
    %v2984 = vld [vmem:[#allocation11 + $0x290] sm:$0xff]
    %v2985 = vld [vmem:[#allocation11 + $0x298] sm:$0xff]
    %v2986 = vld [vmem:[#allocation11 + $0x2a0] sm:$0xff]
    %v2987 = vld [vmem:[#allocation11 + $0x2a8] sm:$0xff]
    %v2988 = vld [vmem:[#allocation11 + $0x2b0] sm:$0xff]
    %v2989 = vld [vmem:[#allocation11 + $0x2b8] sm:$0xff]
    %v2990 = vld [vmem:[#allocation11 + $0x2c0] sm:$0xff]
    %v2991 = vld [vmem:[#allocation11 + $0x2c8] sm:$0xff]
    %v2992 = vld [vmem:[#allocation11 + $0x2d0] sm:$0xff]
    %v2993 = vld [vmem:[#allocation11 + $0x2d8] sm:$0xff]
    %v2994 = vld [vmem:[#allocation11 + $0x2e0] sm:$0xff]
    %v2995 = vld [vmem:[#allocation11 + $0x2e8] sm:$0xff]
    %v2996 = vld [vmem:[#allocation11 + $0x2f0] sm:$0xff]
    %v2997 = vld [vmem:[#allocation11 + $0x2f8] sm:$0xff]
    %v2998 = vld [vmem:[#allocation11 + $0x300] sm:$0xff]
    %v2999 = vld [vmem:[#allocation11 + $0x308] sm:$0xff]
    %v3000 = vld [vmem:[#allocation11 + $0x310] sm:$0xff]
    %v3001 = vld [vmem:[#allocation11 + $0x318] sm:$0xff]
    %v3002 = vld [vmem:[#allocation11 + $0x320] sm:$0xff]
    %v3003 = vld [vmem:[#allocation11 + $0x328] sm:$0xff]
    %v3004 = vld [vmem:[#allocation11 + $0x330] sm:$0xff]
    %v3005 = vld [vmem:[#allocation11 + $0x338] sm:$0xff]
    %v3006 = vld [vmem:[#allocation11 + $0x340] sm:$0xff]
    %v3007 = vld [vmem:[#allocation11 + $0x348] sm:$0xff]
    %v3008 = vld [vmem:[#allocation11 + $0x350] sm:$0xff]
    %v3009 = vld [vmem:[#allocation11 + $0x358] sm:$0xff]
    %v3010 = vld [vmem:[#allocation11 + $0x360] sm:$0xff]
    %v3011 = vld [vmem:[#allocation11 + $0x368] sm:$0xff]
    %v3012 = vld [vmem:[#allocation11 + $0x370] sm:$0xff]
    %v3013 = vld [vmem:[#allocation11 + $0x378] sm:$0xff]
    %v3014 = vld [vmem:[#allocation11 + $0x380] sm:$0xff]
    %v3015 = vld [vmem:[#allocation11 + $0x388] sm:$0xff]
    %v3016 = vld [vmem:[#allocation11 + $0x390] sm:$0xff]
    %v3017 = vld [vmem:[#allocation11 + $0x398] sm:$0xff]
    %v3018 = vld [vmem:[#allocation11 + $0x3a0] sm:$0xff]
    %v3019 = vld [vmem:[#allocation11 + $0x3a8] sm:$0xff]
    %v3020 = vld [vmem:[#allocation11 + $0x3b0] sm:$0xff]
    %v3021 = vld [vmem:[#allocation11 + $0x3b8] sm:$0xff]
    %v3022 = vld [vmem:[#allocation11 + $0x3c0] sm:$0xff]
    %v3023 = vld [vmem:[#allocation11 + $0x3c8] sm:$0xff]
    %v3024 = vld [vmem:[#allocation11 + $0x3d0] sm:$0xff]
    %v3025 = vld [vmem:[#allocation11 + $0x3d8] sm:$0xff]
    %v3026 = vld [vmem:[#allocation11 + $0x3e0] sm:$0xff]
    %v3027 = vld [vmem:[#allocation11 + $0x3e8] sm:$0xff]
    %v3028 = vld [vmem:[#allocation11 + $0x3f0] sm:$0xff]
    %v3029 = vld [vmem:[#allocation11 + $0x3f8] sm:$0xff]
    %v3030 = vld [vmem:[#allocation11 + $0x400] sm:$0xff]
    %v3031 = vld [vmem:[#allocation11 + $0x408] sm:$0xff]
    %v3032 = vld [vmem:[#allocation11 + $0x410] sm:$0xff]
    %v3033 = vld [vmem:[#allocation11 + $0x418] sm:$0xff]
    %v3034 = vld [vmem:[#allocation11 + $0x420] sm:$0xff]
    %v3035 = vld [vmem:[#allocation11 + $0x428] sm:$0xff]
    %v3036 = vld [vmem:[#allocation11 + $0x430] sm:$0xff]
    %v3037 = vld [vmem:[#allocation11 + $0x438] sm:$0xff]
    %v3038 = vld [vmem:[#allocation11 + $0x440] sm:$0xff]
    %v3039 = vld [vmem:[#allocation11 + $0x448] sm:$0xff]
    %v3040 = vld [vmem:[#allocation11 + $0x450] sm:$0xff]
    %v3041 = vld [vmem:[#allocation11 + $0x458] sm:$0xff]
    %v3042 = vld [vmem:[#allocation11 + $0x460] sm:$0xff]
    %v3043 = vld [vmem:[#allocation11 + $0x468] sm:$0xff]
    %v3044 = vld [vmem:[#allocation11 + $0x470] sm:$0xff]
    %v3045 = vld [vmem:[#allocation11 + $0x478] sm:$0xff]
    %v3046 = vld [vmem:[#allocation11 + $0x480] sm:$0xff]
    %v3047 = vld [vmem:[#allocation11 + $0x488] sm:$0xff]
    %v3048 = vld [vmem:[#allocation11 + $0x490] sm:$0xff]
    %v3049 = vld [vmem:[#allocation11 + $0x498] sm:$0xff]
    %v3050 = vld [vmem:[#allocation11 + $0x4a0] sm:$0xff]
    %v3051 = vld [vmem:[#allocation11 + $0x4a8] sm:$0xff]
    %v3052 = vld [vmem:[#allocation11 + $0x4b0] sm:$0xff]
    %v3053 = vld [vmem:[#allocation11 + $0x4b8] sm:$0xff]
    %v3054 = vld [vmem:[#allocation11 + $0x4c0] sm:$0xff]
    %v3055 = vld [vmem:[#allocation11 + $0x4c8] sm:$0xff]
    %v3056 = vld [vmem:[#allocation11 + $0x4d0] sm:$0xff]
    %v3057 = vld [vmem:[#allocation11 + $0x4d8] sm:$0xff]
    %v3058 = vld [vmem:[#allocation11 + $0x4e0] sm:$0xff]
    %v3059 = vld [vmem:[#allocation11 + $0x4e8] sm:$0xff]
    %v3060 = vld [vmem:[#allocation11 + $0x4f0] sm:$0xff]
    %v3061 = vld [vmem:[#allocation11 + $0x4f8] sm:$0xff]
    %v3062 = vld [vmem:[#allocation11 + $0x500] sm:$0xff]
    %v3063 = vld [vmem:[#allocation11 + $0x508] sm:$0xff]
    %v3064 = vld [vmem:[#allocation11 + $0x510] sm:$0xff]
    %v3065 = vld [vmem:[#allocation11 + $0x518] sm:$0xff]
    %v3066 = vld [vmem:[#allocation11 + $0x520] sm:$0xff]
    %v3067 = vld [vmem:[#allocation11 + $0x528] sm:$0xff]
    %v3068 = vld [vmem:[#allocation11 + $0x530] sm:$0xff]
    %v3069 = vld [vmem:[#allocation11 + $0x538] sm:$0xff]
    %v3070 = vld [vmem:[#allocation11 + $0x540] sm:$0xff]
    %v3071 = vld [vmem:[#allocation11 + $0x548] sm:$0xff]
    %v3072 = vld [vmem:[#allocation11 + $0x550] sm:$0xff]
    %v3073 = vld [vmem:[#allocation11 + $0x558] sm:$0xff]
    %v3074 = vld [vmem:[#allocation11 + $0x560] sm:$0xff]
    %v3075 = vld [vmem:[#allocation11 + $0x568] sm:$0xff]
    %v3076 = vld [vmem:[#allocation11 + $0x570] sm:$0xff]
    %v3077 = vld [vmem:[#allocation11 + $0x578] sm:$0xff]
    %v3078 = vld [vmem:[#allocation11 + $0x580] sm:$0xff]
    %v3079 = vld [vmem:[#allocation11 + $0x588] sm:$0xff]
    %v3080 = vld [vmem:[#allocation11 + $0x590] sm:$0xff]
    %v3081 = vld [vmem:[#allocation11 + $0x598] sm:$0xff]
    %v3082 = vld [vmem:[#allocation11 + $0x5a0] sm:$0xff]
    %v3083 = vld [vmem:[#allocation11 + $0x5a8] sm:$0xff]
    %v3084 = vld [vmem:[#allocation11 + $0x5b0] sm:$0xff]
    %v3085 = vld [vmem:[#allocation11 + $0x5b8] sm:$0xff]
    %v3086 = vld [vmem:[#allocation11 + $0x5c0] sm:$0xff]
    %v3087 = vld [vmem:[#allocation11 + $0x5c8] sm:$0xff]
    %v3088 = vld [vmem:[#allocation11 + $0x5d0] sm:$0xff]
    %v3089 = vld [vmem:[#allocation11 + $0x5d8] sm:$0xff]
    %v3090 = vld [vmem:[#allocation11 + $0x5e0] sm:$0xff]
    %v3091 = vld [vmem:[#allocation11 + $0x5e8] sm:$0xff]
    %v3092 = vld [vmem:[#allocation11 + $0x5f0] sm:$0xff]
    %v3093 = vld [vmem:[#allocation11 + $0x5f8] sm:$0xff]
    %v3094 = vld [vmem:[#allocation11 + $0x600] sm:$0xff]
    %v3095 = vld [vmem:[#allocation11 + $0x608] sm:$0xff]
    %v3096 = vld [vmem:[#allocation11 + $0x610] sm:$0xff]
    %v3097 = vld [vmem:[#allocation11 + $0x618] sm:$0xff]
    %v3098 = vld [vmem:[#allocation11 + $0x620] sm:$0xff]
    %v3099 = vld [vmem:[#allocation11 + $0x628] sm:$0xff]
    %v3100 = vld [vmem:[#allocation11 + $0x630] sm:$0xff]
    %v3101 = vld [vmem:[#allocation11 + $0x638] sm:$0xff]
    %v3102 = vld [vmem:[#allocation11 + $0x640] sm:$0xff]
    %v3103 = vld [vmem:[#allocation11 + $0x648] sm:$0xff]
    %v3104 = vld [vmem:[#allocation11 + $0x650] sm:$0xff]
    %v3105 = vld [vmem:[#allocation11 + $0x658] sm:$0xff]
    %v3106 = vld [vmem:[#allocation11 + $0x660] sm:$0xff]
    %v3107 = vld [vmem:[#allocation11 + $0x668] sm:$0xff]
    %v3108 = vld [vmem:[#allocation11 + $0x670] sm:$0xff]
    %v3109 = vld [vmem:[#allocation11 + $0x678] sm:$0xff]
    %v3110 = vld [vmem:[#allocation11 + $0x680] sm:$0xff]
    %v3111 = vld [vmem:[#allocation11 + $0x688] sm:$0xff]
    %v3112 = vld [vmem:[#allocation11 + $0x690] sm:$0xff]
    %v3113 = vld [vmem:[#allocation11 + $0x698] sm:$0xff]
    %v3114 = vld [vmem:[#allocation11 + $0x6a0] sm:$0xff]
    %v3115 = vld [vmem:[#allocation11 + $0x6a8] sm:$0xff]
    %v3116 = vld [vmem:[#allocation11 + $0x6b0] sm:$0xff]
    %v3117 = vld [vmem:[#allocation11 + $0x6b8] sm:$0xff]
    %v3118 = vld [vmem:[#allocation11 + $0x6c0] sm:$0xff]
    %v3119 = vld [vmem:[#allocation11 + $0x6c8] sm:$0xff]
    %v3120 = vld [vmem:[#allocation11 + $0x6d0] sm:$0xff]
    %v3121 = vld [vmem:[#allocation11 + $0x6d8] sm:$0xff]
    %v3122 = vld [vmem:[#allocation11 + $0x6e0] sm:$0xff]
    %v3123 = vld [vmem:[#allocation11 + $0x6e8] sm:$0xff]
    %v3124 = vld [vmem:[#allocation11 + $0x6f0] sm:$0xff]
    %v3125 = vld [vmem:[#allocation11 + $0x6f8] sm:$0xff]
    %v3126 = vld [vmem:[#allocation11 + $0x700] sm:$0xff]
    %v3127 = vld [vmem:[#allocation11 + $0x708] sm:$0xff]
    %v3128 = vld [vmem:[#allocation11 + $0x710] sm:$0xff]
    %v3129 = vld [vmem:[#allocation11 + $0x718] sm:$0xff]
    %v3130 = vld [vmem:[#allocation11 + $0x720] sm:$0xff]
    %v3131 = vld [vmem:[#allocation11 + $0x728] sm:$0xff]
    %v3132 = vld [vmem:[#allocation11 + $0x730] sm:$0xff]
    %v3133 = vld [vmem:[#allocation11 + $0x738] sm:$0xff]
    %v3134 = vld [vmem:[#allocation11 + $0x740] sm:$0xff]
    %v3135 = vld [vmem:[#allocation11 + $0x748] sm:$0xff]
    %v3136 = vld [vmem:[#allocation11 + $0x750] sm:$0xff]
    %v3137 = vld [vmem:[#allocation11 + $0x758] sm:$0xff]
    %v3138 = vld [vmem:[#allocation11 + $0x760] sm:$0xff]
    %v3139 = vld [vmem:[#allocation11 + $0x768] sm:$0xff]
    %v3140 = vld [vmem:[#allocation11 + $0x770] sm:$0xff]
    %v3141 = vld [vmem:[#allocation11 + $0x778] sm:$0xff]
    %v3142 = vld [vmem:[#allocation11 + $0x780] sm:$0xff]
    %v3143 = vld [vmem:[#allocation11 + $0x788] sm:$0xff]
    %v3144 = vld [vmem:[#allocation11 + $0x790] sm:$0xff]
    %v3145 = vld [vmem:[#allocation11 + $0x798] sm:$0xff]
    %v3146 = vld [vmem:[#allocation11 + $0x7a0] sm:$0xff]
    %v3147 = vld [vmem:[#allocation11 + $0x7a8] sm:$0xff]
    %v3148 = vld [vmem:[#allocation11 + $0x7b0] sm:$0xff]
    %v3149 = vld [vmem:[#allocation11 + $0x7b8] sm:$0xff]
    %v3150 = vld [vmem:[#allocation11 + $0x7c0] sm:$0xf]
    %v3151 = vld [vmem:[#allocation11 + $0x7c8] sm:$0xf]
    %v3152 = vld [vmem:[#allocation11 + $0x7d0] sm:$0xf]
    %v3153 = vld [vmem:[#allocation11 + $0x7d8] sm:$0xf]
    %v3154 = vld [vmem:[#allocation13] sm:$0xf]
    %v3156 = vperm.slane %v3154, 0
    %v3157 = vperm.slane %v3154, 1
    %v3158 = vperm.slane %v3154, 2
    %v3159 = vperm.slane %v3154, 3
    %vm3164 = vcmask 949248
    %v3166 = vsel %vm3164, %v2901, 0
    %vm3168 = vcmask 1043456
    %v3170 = vsel %vm3168, %v3150, 0
    %v3173 = vsel %vm3168, %v3151, 0
    %v3176 = vsel %vm3168, %v3152, 0
    %v3179 = vsel %vm3168, %v3153, 0
    %3181 = vmatpush.msra.mxu0 %v2962
    %3182 = vmatpush.msra.mxu0 %v2958
    %3183 = vmatpush.msra.mxu0 %v2954
    %3184 = vmatpush.msra.mxu0 %v2950
    %3185 = vmatpush.msra.mxu0 %v2946
    %3186 = vmatpush.msra.mxu0 %v2942
    %3187 = vmatpush.msra.mxu0 %v2938
    %3188 = vmatpush.msra.mxu0 %v2934
    %3189 = vmatpush.msra.mxu0 %v2930
    %3190 = vmatpush.msra.mxu0 %v2926
    %3191 = vmatpush.msra.mxu0 %v2922
    %3192 = vmatpush.msra.mxu0 %v2918
    %3193 = vmatpush.msra.mxu0 %v2914
    %3194 = vmatpush.msra.mxu0 %v2910
    %3195 = vmatpush.msra.mxu0 %v2906
    %3196 = vmatpush.msra.mxu0 %v2902
    %3197 = vmatmul.f32.gmra.mxu0 %v2898
    %v3198 = vpop.f32.mrf.mxu0
    %v3199 = vadd.f32 %v3156, %v3198
    %3200 = vdwg.mxu0
    %3201 = vmatpush.msra.mxu0 %v3026
    %3202 = vmatpush.msra.mxu0 %v3022
    %3203 = vmatpush.msra.mxu0 %v3018
    %3204 = vmatpush.msra.mxu0 %v3014
    %3205 = vmatpush.msra.mxu0 %v3010
    %3206 = vmatpush.msra.mxu0 %v3006
    %3207 = vmatpush.msra.mxu0 %v3002
    %3208 = vmatpush.msra.mxu0 %v2998
    %3209 = vmatpush.msra.mxu0 %v2994
    %3210 = vmatpush.msra.mxu0 %v2990
    %3211 = vmatpush.msra.mxu0 %v2986
    %3212 = vmatpush.msra.mxu0 %v2982
    %3213 = vmatpush.msra.mxu0 %v2978
    %3214 = vmatpush.msra.mxu0 %v2974
    %3215 = vmatpush.msra.mxu0 %v2970
    %3216 = vmatpush.msra.mxu0 %v2966
    %3217 = vmatmul.f32.gmra.mxu0 %v2899
    %v3218 = vpop.f32.mrf.mxu0
    %v3219 = vadd.f32 %v3199, %v3218
    %3220 = vdwg.mxu0
    %3221 = vmatpush.msra.mxu0 %v3090
    %3222 = vmatpush.msra.mxu0 %v3086
    %3223 = vmatpush.msra.mxu0 %v3082
    %3224 = vmatpush.msra.mxu0 %v3078
    %3225 = vmatpush.msra.mxu0 %v3074
    %3226 = vmatpush.msra.mxu0 %v3070
    %3227 = vmatpush.msra.mxu0 %v3066
    %3228 = vmatpush.msra.mxu0 %v3062
    %3229 = vmatpush.msra.mxu0 %v3058
    %3230 = vmatpush.msra.mxu0 %v3054
    %3231 = vmatpush.msra.mxu0 %v3050
    %3232 = vmatpush.msra.mxu0 %v3046
    %3233 = vmatpush.msra.mxu0 %v3042
    %3234 = vmatpush.msra.mxu0 %v3038
    %3235 = vmatpush.msra.mxu0 %v3034
    %3236 = vmatpush.msra.mxu0 %v3030
    %3237 = vmatmul.f32.gmra.mxu0 %v2900
    %v3238 = vpop.f32.mrf.mxu0
    %v3239 = vadd.f32 %v3219, %v3238
    %3240 = vdwg.mxu0
    %3241 = vmatpush.msra.mxu0 0.0
    %3242 = vmatpush.msra.mxu0 %v3170
    %3243 = vmatpush.msra.mxu0 %v3146
    %3244 = vmatpush.msra.mxu0 %v3142
    %3245 = vmatpush.msra.mxu0 %v3138
    %3246 = vmatpush.msra.mxu0 %v3134
    %3247 = vmatpush.msra.mxu0 %v3130
    %3248 = vmatpush.msra.mxu0 %v3126
    %3249 = vmatpush.msra.mxu0 %v3122
    %3250 = vmatpush.msra.mxu0 %v3118
    %3251 = vmatpush.msra.mxu0 %v3114
    %3252 = vmatpush.msra.mxu0 %v3110
    %3253 = vmatpush.msra.mxu0 %v3106
    %3254 = vmatpush.msra.mxu0 %v3102
    %3255 = vmatpush.msra.mxu0 %v3098
    %3256 = vmatpush.msra.mxu0 %v3094
    %3257 = vmatmul.f32.gmra.mxu0 %v3166
    %v3258 = vpop.f32.mrf.mxu0
    %v3259 = vadd.f32 %v3239, %v3258
    %3260 = vdwg.mxu0
    %3261 = vmatpush.msra.mxu0 %v2963
    %3262 = vmatpush.msra.mxu0 %v2959
    %3263 = vmatpush.msra.mxu0 %v2955
    %3264 = vmatpush.msra.mxu0 %v2951
    %3265 = vmatpush.msra.mxu0 %v2947
    %3266 = vmatpush.msra.mxu0 %v2943
    %3267 = vmatpush.msra.mxu0 %v2939
    %3268 = vmatpush.msra.mxu0 %v2935
    %3269 = vmatpush.msra.mxu0 %v2931
    %3270 = vmatpush.msra.mxu0 %v2927
    %3271 = vmatpush.msra.mxu0 %v2923
    %3272 = vmatpush.msra.mxu0 %v2919
    %3273 = vmatpush.msra.mxu0 %v2915
    %3274 = vmatpush.msra.mxu0 %v2911
    %3275 = vmatpush.msra.mxu0 %v2907
    %3276 = vmatpush.msra.mxu0 %v2903
    %3277 = vmatmul.f32.gmra.mxu0 %v2898
    %v3278 = vpop.f32.mrf.mxu0
    %v3279 = vadd.f32 %v3157, %v3278
    %3280 = vdwg.mxu0
    %3281 = vmatpush.msra.mxu0 %v3027
    %3282 = vmatpush.msra.mxu0 %v3023
    %3283 = vmatpush.msra.mxu0 %v3019
    %3284 = vmatpush.msra.mxu0 %v3015
    %3285 = vmatpush.msra.mxu0 %v3011
    %3286 = vmatpush.msra.mxu0 %v3007
    %3287 = vmatpush.msra.mxu0 %v3003
    %3288 = vmatpush.msra.mxu0 %v2999
    %3289 = vmatpush.msra.mxu0 %v2995
    %3290 = vmatpush.msra.mxu0 %v2991
    %3291 = vmatpush.msra.mxu0 %v2987
    %3292 = vmatpush.msra.mxu0 %v2983
    %3293 = vmatpush.msra.mxu0 %v2979
    %3294 = vmatpush.msra.mxu0 %v2975
    %3295 = vmatpush.msra.mxu0 %v2971
    %3296 = vmatpush.msra.mxu0 %v2967
    %3297 = vmatmul.f32.gmra.mxu0 %v2899
    %v3298 = vpop.f32.mrf.mxu0
    %v3299 = vadd.f32 %v3279, %v3298
    %3300 = vdwg.mxu0
    %3301 = vmatpush.msra.mxu0 %v3091
    %3302 = vmatpush.msra.mxu0 %v3087
    %3303 = vmatpush.msra.mxu0 %v3083
    %3304 = vmatpush.msra.mxu0 %v3079
    %3305 = vmatpush.msra.mxu0 %v3075
    %3306 = vmatpush.msra.mxu0 %v3071
    %3307 = vmatpush.msra.mxu0 %v3067
    %3308 = vmatpush.msra.mxu0 %v3063
    %3309 = vmatpush.msra.mxu0 %v3059
    %3310 = vmatpush.msra.mxu0 %v3055
    %3311 = vmatpush.msra.mxu0 %v3051
    %3312 = vmatpush.msra.mxu0 %v3047
    %3313 = vmatpush.msra.mxu0 %v3043
    %3314 = vmatpush.msra.mxu0 %v3039
    %3315 = vmatpush.msra.mxu0 %v3035
    %3316 = vmatpush.msra.mxu0 %v3031
    %3317 = vmatmul.f32.gmra.mxu0 %v2900
    %v3318 = vpop.f32.mrf.mxu0
    %v3319 = vadd.f32 %v3299, %v3318
    %3320 = vdwg.mxu0
    %3321 = vmatpush.msra.mxu0 0.0
    %3322 = vmatpush.msra.mxu0 %v3173
    %3323 = vmatpush.msra.mxu0 %v3147
    %3324 = vmatpush.msra.mxu0 %v3143
    %3325 = vmatpush.msra.mxu0 %v3139
    %3326 = vmatpush.msra.mxu0 %v3135
    %3327 = vmatpush.msra.mxu0 %v3131
    %3328 = vmatpush.msra.mxu0 %v3127
    %3329 = vmatpush.msra.mxu0 %v3123
    %3330 = vmatpush.msra.mxu0 %v3119
    %3331 = vmatpush.msra.mxu0 %v3115
    %3332 = vmatpush.msra.mxu0 %v3111
    %3333 = vmatpush.msra.mxu0 %v3107
    %3334 = vmatpush.msra.mxu0 %v3103
    %3335 = vmatpush.msra.mxu0 %v3099
    %3336 = vmatpush.msra.mxu0 %v3095
    %3337 = vmatmul.f32.gmra.mxu0 %v3166
    %v3338 = vpop.f32.mrf.mxu0
    %v3339 = vadd.f32 %v3319, %v3338
    %3340 = vdwg.mxu0
    %3341 = vmatpush.msra.mxu0 %v2964
    %3342 = vmatpush.msra.mxu0 %v2960
    %3343 = vmatpush.msra.mxu0 %v2956
    %3344 = vmatpush.msra.mxu0 %v2952
    %3345 = vmatpush.msra.mxu0 %v2948
    %3346 = vmatpush.msra.mxu0 %v2944
    %3347 = vmatpush.msra.mxu0 %v2940
    %3348 = vmatpush.msra.mxu0 %v2936
    %3349 = vmatpush.msra.mxu0 %v2932
    %3350 = vmatpush.msra.mxu0 %v2928
    %3351 = vmatpush.msra.mxu0 %v2924
    %3352 = vmatpush.msra.mxu0 %v2920
    %3353 = vmatpush.msra.mxu0 %v2916
    %3354 = vmatpush.msra.mxu0 %v2912
    %3355 = vmatpush.msra.mxu0 %v2908
    %3356 = vmatpush.msra.mxu0 %v2904
    %3357 = vmatmul.f32.gmra.mxu0 %v2898
    %v3358 = vpop.f32.mrf.mxu0
    %v3359 = vadd.f32 %v3158, %v3358
    %3360 = vdwg.mxu0
    %3361 = vmatpush.msra.mxu0 %v3028
    %3362 = vmatpush.msra.mxu0 %v3024
    %3363 = vmatpush.msra.mxu0 %v3020
    %3364 = vmatpush.msra.mxu0 %v3016
    %3365 = vmatpush.msra.mxu0 %v3012
    %3366 = vmatpush.msra.mxu0 %v3008
    %3367 = vmatpush.msra.mxu0 %v3004
    %3368 = vmatpush.msra.mxu0 %v3000
    %3369 = vmatpush.msra.mxu0 %v2996
    %3370 = vmatpush.msra.mxu0 %v2992
    %3371 = vmatpush.msra.mxu0 %v2988
    %3372 = vmatpush.msra.mxu0 %v2984
    %3373 = vmatpush.msra.mxu0 %v2980
    %3374 = vmatpush.msra.mxu0 %v2976
    %3375 = vmatpush.msra.mxu0 %v2972
    %3376 = vmatpush.msra.mxu0 %v2968
    %3377 = vmatmul.f32.gmra.mxu0 %v2899
    %v3378 = vpop.f32.mrf.mxu0
    %v3379 = vadd.f32 %v3359, %v3378
    %3380 = vdwg.mxu0
    %3381 = vmatpush.msra.mxu0 %v3092
    %3382 = vmatpush.msra.mxu0 %v3088
    %3383 = vmatpush.msra.mxu0 %v3084
    %3384 = vmatpush.msra.mxu0 %v3080
    %3385 = vmatpush.msra.mxu0 %v3076
    %3386 = vmatpush.msra.mxu0 %v3072
    %3387 = vmatpush.msra.mxu0 %v3068
    %3388 = vmatpush.msra.mxu0 %v3064
    %3389 = vmatpush.msra.mxu0 %v3060
    %3390 = vmatpush.msra.mxu0 %v3056
    %3391 = vmatpush.msra.mxu0 %v3052
    %3392 = vmatpush.msra.mxu0 %v3048
    %3393 = vmatpush.msra.mxu0 %v3044
    %3394 = vmatpush.msra.mxu0 %v3040
    %3395 = vmatpush.msra.mxu0 %v3036
    %3396 = vmatpush.msra.mxu0 %v3032
    %3397 = vmatmul.f32.gmra.mxu0 %v2900
    %v3398 = vpop.f32.mrf.mxu0
    %v3399 = vadd.f32 %v3379, %v3398
    %3400 = vdwg.mxu0
    %3401 = vmatpush.msra.mxu0 0.0
    %3402 = vmatpush.msra.mxu0 %v3176
    %3403 = vmatpush.msra.mxu0 %v3148
    %3404 = vmatpush.msra.mxu0 %v3144
    %3405 = vmatpush.msra.mxu0 %v3140
    %3406 = vmatpush.msra.mxu0 %v3136
    %3407 = vmatpush.msra.mxu0 %v3132
    %3408 = vmatpush.msra.mxu0 %v3128
    %3409 = vmatpush.msra.mxu0 %v3124
    %3410 = vmatpush.msra.mxu0 %v3120
    %3411 = vmatpush.msra.mxu0 %v3116
    %3412 = vmatpush.msra.mxu0 %v3112
    %3413 = vmatpush.msra.mxu0 %v3108
    %3414 = vmatpush.msra.mxu0 %v3104
    %3415 = vmatpush.msra.mxu0 %v3100
    %3416 = vmatpush.msra.mxu0 %v3096
    %3417 = vmatmul.f32.gmra.mxu0 %v3166
    %v3418 = vpop.f32.mrf.mxu0
    %v3419 = vadd.f32 %v3399, %v3418
    %3420 = vdwg.mxu0
    %3421 = vmatpush.msra.mxu0 %v2965
    %3422 = vmatpush.msra.mxu0 %v2961
    %3423 = vmatpush.msra.mxu0 %v2957
    %3424 = vmatpush.msra.mxu0 %v2953
    %3425 = vmatpush.msra.mxu0 %v2949
    %3426 = vmatpush.msra.mxu0 %v2945
    %3427 = vmatpush.msra.mxu0 %v2941
    %3428 = vmatpush.msra.mxu0 %v2937
    %3429 = vmatpush.msra.mxu0 %v2933
    %3430 = vmatpush.msra.mxu0 %v2929
    %3431 = vmatpush.msra.mxu0 %v2925
    %3432 = vmatpush.msra.mxu0 %v2921
    %3433 = vmatpush.msra.mxu0 %v2917
    %3434 = vmatpush.msra.mxu0 %v2913
    %3435 = vmatpush.msra.mxu0 %v2909
    %3436 = vmatpush.msra.mxu0 %v2905
    %3437 = vmatmul.f32.gmra.mxu0 %v2898
    %v3438 = vpop.f32.mrf.mxu0
    %v3439 = vadd.f32 %v3159, %v3438
    %3440 = vdwg.mxu0
    %3441 = vmatpush.msra.mxu0 %v3029
    %3442 = vmatpush.msra.mxu0 %v3025
    %3443 = vmatpush.msra.mxu0 %v3021
    %3444 = vmatpush.msra.mxu0 %v3017
    %3445 = vmatpush.msra.mxu0 %v3013
    %3446 = vmatpush.msra.mxu0 %v3009
    %3447 = vmatpush.msra.mxu0 %v3005
    %3448 = vmatpush.msra.mxu0 %v3001
    %3449 = vmatpush.msra.mxu0 %v2997
    %3450 = vmatpush.msra.mxu0 %v2993
    %3451 = vmatpush.msra.mxu0 %v2989
    %3452 = vmatpush.msra.mxu0 %v2985
    %3453 = vmatpush.msra.mxu0 %v2981
    %3454 = vmatpush.msra.mxu0 %v2977
    %3455 = vmatpush.msra.mxu0 %v2973
    %3456 = vmatpush.msra.mxu0 %v2969
    %3457 = vmatmul.f32.gmra.mxu0 %v2899
    %v3458 = vpop.f32.mrf.mxu0
    %v3459 = vadd.f32 %v3439, %v3458
    %3460 = vdwg.mxu0
    %3461 = vmatpush.msra.mxu0 %v3093
    %3462 = vmatpush.msra.mxu0 %v3089
    %3463 = vmatpush.msra.mxu0 %v3085
    %3464 = vmatpush.msra.mxu0 %v3081
    %3465 = vmatpush.msra.mxu0 %v3077
    %3466 = vmatpush.msra.mxu0 %v3073
    %3467 = vmatpush.msra.mxu0 %v3069
    %3468 = vmatpush.msra.mxu0 %v3065
    %3469 = vmatpush.msra.mxu0 %v3061
    %3470 = vmatpush.msra.mxu0 %v3057
    %3471 = vmatpush.msra.mxu0 %v3053
    %3472 = vmatpush.msra.mxu0 %v3049
    %3473 = vmatpush.msra.mxu0 %v3045
    %3474 = vmatpush.msra.mxu0 %v3041
    %3475 = vmatpush.msra.mxu0 %v3037
    %3476 = vmatpush.msra.mxu0 %v3033
    %3477 = vmatmul.f32.gmra.mxu0 %v2900
    %v3478 = vpop.f32.mrf.mxu0
    %v3479 = vadd.f32 %v3459, %v3478
    %3480 = vdwg.mxu0
    %3481 = vmatpush.msra.mxu0 0.0
    %3482 = vmatpush.msra.mxu0 %v3179
    %3483 = vmatpush.msra.mxu0 %v3149
    %3484 = vmatpush.msra.mxu0 %v3145
    %3485 = vmatpush.msra.mxu0 %v3141
    %3486 = vmatpush.msra.mxu0 %v3137
    %3487 = vmatpush.msra.mxu0 %v3133
    %3488 = vmatpush.msra.mxu0 %v3129
    %3489 = vmatpush.msra.mxu0 %v3125
    %3490 = vmatpush.msra.mxu0 %v3121
    %3491 = vmatpush.msra.mxu0 %v3117
    %3492 = vmatpush.msra.mxu0 %v3113
    %3493 = vmatpush.msra.mxu0 %v3109
    %3494 = vmatpush.msra.mxu0 %v3105
    %3495 = vmatpush.msra.mxu0 %v3101
    %3496 = vmatpush.msra.mxu0 %v3097
    %3497 = vmatmul.f32.gmra.mxu0 %v3166
    %v3498 = vpop.f32.mrf.mxu0
    %v3499 = vadd.f32 %v3479, %v3498
    %3500 = vdwg.mxu0
    %v3501 = vmax.f32 %v3259, 0.0
    %v3502 = vmax.f32 %v3339, 0.0
    %v3503 = vmax.f32 %v3419, 0.0
    %v3504 = vmax.f32 %v3499, 0.0
    %v3505 = vld [vmem:[#allocation14] sm:$0xff]
    %v3506 = vld [vmem:[#allocation14 + $0x8] sm:$0xff]
    %v3507 = vld [vmem:[#allocation14 + $0x10] sm:$0xff]
    %v3508 = vld [vmem:[#allocation14 + $0x18] sm:$0xff]
    %v3509 = vld [vmem:[#allocation14 + $0x20] sm:$0xff]
    %v3510 = vld [vmem:[#allocation14 + $0x28] sm:$0xff]
    %v3511 = vld [vmem:[#allocation14 + $0x30] sm:$0xff]
    %v3512 = vld [vmem:[#allocation14 + $0x38] sm:$0xff]
    %v3513 = vld [vmem:[#allocation14 + $0x40] sm:$0xff]
    %v3514 = vld [vmem:[#allocation14 + $0x48] sm:$0xff]
    %v3515 = vld [vmem:[#allocation14 + $0x50] sm:$0xff]
    %v3516 = vld [vmem:[#allocation14 + $0x58] sm:$0xff]
    %v3517 = vld [vmem:[#allocation14 + $0x60] sm:$0xff]
    %v3518 = vld [vmem:[#allocation14 + $0x68] sm:$0xff]
    %v3519 = vld [vmem:[#allocation14 + $0x70] sm:$0xff]
    %v3520 = vld [vmem:[#allocation14 + $0x78] sm:$0xff]
    %v3521 = vld [vmem:[#allocation14 + $0x80] sm:$0xff]
    %v3522 = vld [vmem:[#allocation14 + $0x88] sm:$0xff]
    %v3523 = vld [vmem:[#allocation14 + $0x90] sm:$0xff]
    %v3524 = vld [vmem:[#allocation14 + $0x98] sm:$0xff]
    %v3525 = vld [vmem:[#allocation14 + $0xa0] sm:$0xff]
    %v3526 = vld [vmem:[#allocation14 + $0xa8] sm:$0xff]
    %v3527 = vld [vmem:[#allocation14 + $0xb0] sm:$0xff]
    %v3528 = vld [vmem:[#allocation14 + $0xb8] sm:$0xff]
    %v3529 = vld [vmem:[#allocation14 + $0xc0] sm:$0xff]
    %v3530 = vld [vmem:[#allocation14 + $0xc8] sm:$0xff]
    %v3531 = vld [vmem:[#allocation14 + $0xd0] sm:$0xff]
    %v3532 = vld [vmem:[#allocation14 + $0xd8] sm:$0xff]
    %v3533 = vld [vmem:[#allocation14 + $0xe0] sm:$0xff]
    %v3534 = vld [vmem:[#allocation14 + $0xe8] sm:$0xff]
    %v3535 = vld [vmem:[#allocation14 + $0xf0] sm:$0xff]
    %v3536 = vld [vmem:[#allocation14 + $0xf8] sm:$0xff]
    %v3537 = vld [vmem:[#allocation14 + $0x100] sm:$0xff]
    %v3538 = vld [vmem:[#allocation14 + $0x108] sm:$0xff]
    %v3539 = vld [vmem:[#allocation14 + $0x110] sm:$0xff]
    %v3540 = vld [vmem:[#allocation14 + $0x118] sm:$0xff]
    %v3541 = vld [vmem:[#allocation14 + $0x120] sm:$0xff]
    %v3542 = vld [vmem:[#allocation14 + $0x128] sm:$0xff]
    %v3543 = vld [vmem:[#allocation14 + $0x130] sm:$0xff]
    %v3544 = vld [vmem:[#allocation14 + $0x138] sm:$0xff]
    %v3545 = vld [vmem:[#allocation14 + $0x140] sm:$0xff]
    %v3546 = vld [vmem:[#allocation14 + $0x148] sm:$0xff]
    %v3547 = vld [vmem:[#allocation14 + $0x150] sm:$0xff]
    %v3548 = vld [vmem:[#allocation14 + $0x158] sm:$0xff]
    %v3549 = vld [vmem:[#allocation14 + $0x160] sm:$0xff]
    %v3550 = vld [vmem:[#allocation14 + $0x168] sm:$0xff]
    %v3551 = vld [vmem:[#allocation14 + $0x170] sm:$0xff]
    %v3552 = vld [vmem:[#allocation14 + $0x178] sm:$0xff]
    %v3553 = vld [vmem:[#allocation14 + $0x180] sm:$0xff]
    %v3554 = vld [vmem:[#allocation14 + $0x188] sm:$0xff]
    %v3555 = vld [vmem:[#allocation14 + $0x190] sm:$0xff]
    %v3556 = vld [vmem:[#allocation14 + $0x198] sm:$0xff]
    %v3557 = vld [vmem:[#allocation14 + $0x1a0] sm:$0xff]
    %v3558 = vld [vmem:[#allocation14 + $0x1a8] sm:$0xff]
    %v3559 = vld [vmem:[#allocation14 + $0x1b0] sm:$0xff]
    %v3560 = vld [vmem:[#allocation14 + $0x1b8] sm:$0xff]
    %v3561 = vld [vmem:[#allocation14 + $0x1c0] sm:$0xff]
    %v3562 = vld [vmem:[#allocation14 + $0x1c8] sm:$0xff]
    %v3563 = vld [vmem:[#allocation14 + $0x1d0] sm:$0xff]
    %v3564 = vld [vmem:[#allocation14 + $0x1d8] sm:$0xff]
    %v3565 = vld [vmem:[#allocation14 + $0x1e0] sm:$0xff]
    %v3566 = vld [vmem:[#allocation14 + $0x1e8] sm:$0xff]
    %v3567 = vld [vmem:[#allocation14 + $0x1f0] sm:$0xf]
    %v3568 = vld [vmem:[#allocation16] sm:$0x1]
    %v3570 = vperm.slane %v3568, 0
    %v3573 = vsel %vm3164, %v3504, 0
    %v3576 = vsel %vm3168, %v3567, 0
    %3578 = vmatpush.msra.mxu0 %v3520
    %3579 = vmatpush.msra.mxu0 %v3519
    %3580 = vmatpush.msra.mxu0 %v3518
    %3581 = vmatpush.msra.mxu0 %v3517
    %3582 = vmatpush.msra.mxu0 %v3516
    %3583 = vmatpush.msra.mxu0 %v3515
    %3584 = vmatpush.msra.mxu0 %v3514
    %3585 = vmatpush.msra.mxu0 %v3513
    %3586 = vmatpush.msra.mxu0 %v3512
    %3587 = vmatpush.msra.mxu0 %v3511
    %3588 = vmatpush.msra.mxu0 %v3510
    %3589 = vmatpush.msra.mxu0 %v3509
    %3590 = vmatpush.msra.mxu0 %v3508
    %3591 = vmatpush.msra.mxu0 %v3507
    %3592 = vmatpush.msra.mxu0 %v3506
    %3593 = vmatpush.msra.mxu0 %v3505
    %3594 = vmatmul.f32.gmra.mxu0 %v3501
    %v3595 = vpop.f32.mrf.mxu0
    %v3596 = vadd.f32 %v3570, %v3595
    %3597 = vdwg.mxu0
    %3598 = vmatpush.msra.mxu0 %v3536
    %3599 = vmatpush.msra.mxu0 %v3535
    %3600 = vmatpush.msra.mxu0 %v3534
    %3601 = vmatpush.msra.mxu0 %v3533
    %3602 = vmatpush.msra.mxu0 %v3532
    %3603 = vmatpush.msra.mxu0 %v3531
    %3604 = vmatpush.msra.mxu0 %v3530
    %3605 = vmatpush.msra.mxu0 %v3529
    %3606 = vmatpush.msra.mxu0 %v3528
    %3607 = vmatpush.msra.mxu0 %v3527
    %3608 = vmatpush.msra.mxu0 %v3526
    %3609 = vmatpush.msra.mxu0 %v3525
    %3610 = vmatpush.msra.mxu0 %v3524
    %3611 = vmatpush.msra.mxu0 %v3523
    %3612 = vmatpush.msra.mxu0 %v3522
    %3613 = vmatpush.msra.mxu0 %v3521
    %3614 = vmatmul.f32.gmra.mxu0 %v3502
    %v3615 = vpop.f32.mrf.mxu0
    %v3616 = vadd.f32 %v3596, %v3615
    %3617 = vdwg.mxu0
    %3618 = vmatpush.msra.mxu0 %v3552
    %3619 = vmatpush.msra.mxu0 %v3551
    %3620 = vmatpush.msra.mxu0 %v3550
    %3621 = vmatpush.msra.mxu0 %v3549
    %3622 = vmatpush.msra.mxu0 %v3548
    %3623 = vmatpush.msra.mxu0 %v3547
    %3624 = vmatpush.msra.mxu0 %v3546
    %3625 = vmatpush.msra.mxu0 %v3545
    %3626 = vmatpush.msra.mxu0 %v3544
    %3627 = vmatpush.msra.mxu0 %v3543
    %3628 = vmatpush.msra.mxu0 %v3542
    %3629 = vmatpush.msra.mxu0 %v3541
    %3630 = vmatpush.msra.mxu0 %v3540
    %3631 = vmatpush.msra.mxu0 %v3539
    %3632 = vmatpush.msra.mxu0 %v3538
    %3633 = vmatpush.msra.mxu0 %v3537
    %3634 = vmatmul.f32.gmra.mxu0 %v3503
    %v3635 = vpop.f32.mrf.mxu0
    %v3636 = vadd.f32 %v3616, %v3635
    %3637 = vdwg.mxu0
    %3638 = vmatpush.msra.mxu0 0.0
    %3639 = vmatpush.msra.mxu0 %v3576
    %3640 = vmatpush.msra.mxu0 %v3566
    %3641 = vmatpush.msra.mxu0 %v3565
    %3642 = vmatpush.msra.mxu0 %v3564
    %3643 = vmatpush.msra.mxu0 %v3563
    %3644 = vmatpush.msra.mxu0 %v3562
    %3645 = vmatpush.msra.mxu0 %v3561
    %3646 = vmatpush.msra.mxu0 %v3560
    %3647 = vmatpush.msra.mxu0 %v3559
    %3648 = vmatpush.msra.mxu0 %v3558
    %3649 = vmatpush.msra.mxu0 %v3557
    %3650 = vmatpush.msra.mxu0 %v3556
    %3651 = vmatpush.msra.mxu0 %v3555
    %3652 = vmatpush.msra.mxu0 %v3554
    %3653 = vmatpush.msra.mxu0 %v3553
    %3654 = vmatmul.f32.gmra.mxu0 %v3573
    %v3655 = vpop.f32.mrf.mxu0
    %v3656 = vadd.f32 %v3636, %v3655
    %3657 = vdwg.mxu0
    %3658 = vst [vmem:[#allocation17] sm:$0xff] %v3656
    // Predicated region
    $region74: #{tpu_custom_call.1} parent=1 // pred_check
      _
    $region75: #{tpu_custom_call.1} parent=1 // pred_check_branch
      %3660 = sbr.rel (0) target = $region77
    $region76: #{tpu_custom_call.1} parent=1 // pred_region
      %3662 = vsyncadd [#allocation4], 0
      %s3664 = sshll.u32 [#allocation17], 4
      %s3665 = int_to_ptr.vmem [resolvable:$true] %s3664
      %s3666 = sshll.u32 %s9, 4
      %s3667 = int_to_ptr.hbm [resolvable:$true] %s3666
      %3669 = dma.vmem_to_hbm [thread:$0]  %s3665, 128, %s3667, [#allocation4]
    $region77: #{tpu_custom_call.1} parent=1 // pred_fallthru
      _
    // Predicated region
    $region78: #{tpu_custom_call.1} parent=1 // pred_check
      _
    $region79: #{tpu_custom_call.1} parent=1 // pred_check_branch
      %3671 = sbr.rel (0) target = $region81
    $region80: #{tpu_custom_call.1} parent=1 // pred_region
      %3673 = dma.done [#allocation4], 128
    $region81: #{tpu_custom_call.1} parent=1 // pred_fallthru
      _
    %3674 = vsyncpa [#allocation3], 1
    %3675 = vsyncpa [#allocation6], 1
    %3676 = vsyncpa [#allocation9], 1
    %3677 = vsyncpa [#allocation12], 1
    %3678 = vsyncpa [#allocation15], 1
    %3679 = vsyncpa [#allocation4], 1

</llo_original>
